<compile_context>
chip_gen: v6e
topology: v6e:2x2x1
jax: 0.10.0
libtpu: 0.0.40
codegen_flags: <defaults>
</compile_context>

<pallas_src>
import math

import jax
import jax.numpy as jnp
from jax.experimental import pallas as pl
from jax.experimental.pallas import tpu as pltpu

BN_EPS = 1e-5
_BATCH_TILE = 512  # multiple of 8; per-block VMEM stays well under 32 MiB


# ----------------------------------------------------------------------------
# Fused Pallas kernel: conv1+BN+ReLU+pool -> conv2 -> conv3 -> FC head
# ----------------------------------------------------------------------------
def _aoa_fused_kernel(x_ref, m1a_ref, m1b_ref, m1c_ref, bb1_ref,
                      m2_ref, bb2_ref, m3_ref, bb3_ref,
                      wf1_ref, bf1_ref, wf2_ref, bf2_ref,
                      wf3_ref, bf3_ref, o_ref):
  f32 = jnp.float32
  x = x_ref[...]                                              # (BT, L)

  # conv1 (BN folded) + MaxPool1d(3,3) + ReLU:
  # three pooling-phase matmuls, elementwise max, shared bias, relu.
  ya = jnp.dot(x, m1a_ref[...], preferred_element_type=f32)
  yb = jnp.dot(x, m1b_ref[...], preferred_element_type=f32)
  yc = jnp.dot(x, m1c_ref[...], preferred_element_type=f32)
  h1 = jnp.maximum(jnp.maximum(jnp.maximum(ya, yb), yc) + bb1_ref[...], 0.0)

  # conv2 + BN + ReLU (dense conv matrix, L-major/C-minor layout)
  h2 = jnp.maximum(
      jnp.dot(h1, m2_ref[...], preferred_element_type=f32) + bb2_ref[...], 0.0)

  # conv3 + BN + ReLU
  h3 = jnp.maximum(
      jnp.dot(h2, m3_ref[...], preferred_element_type=f32) + bb3_ref[...], 0.0)

  # FC head (fc1 rows pre-permuted so h3's layout feeds it directly)
  f1 = jnp.maximum(
      jnp.dot(h3, wf1_ref[...], preferred_element_type=f32) + bf1_ref[...], 0.0)
  f2 = jnp.maximum(
      jnp.dot(f1, wf2_ref[...], preferred_element_type=f32) + bf2_ref[...], 0.0)

  # Linear(200, 1): multiply + cross-lane reduce (avoid an N=1 MXU matmul)
  o_ref[...] = (jnp.sum(f2 * wf3_ref[...], axis=1, keepdims=True)
                + bf3_ref[...])


# ----------------------------------------------------------------------------
# Host-side (JAX) weight preparation: fold BN, densify convs, permute fc1
# ----------------------------------------------------------------------------
def _bn_affine(gamma, beta, mean, var):
  scale = gamma / jnp.sqrt(var + BN_EPS)
  return scale, beta - mean * scale


def _fold_bn(w, b, gamma, beta, mean, var):
  s, t = _bn_affine(gamma, beta, mean, var)
  return w * s[:, None, None], b * s + t


def _conv1_pool_matrices(w1_folded, l_in, l_pool):
  """Three (l_in, l_pool*8) matrices, one per pooling phase (k3 s2 p1 conv)."""
  w = w1_folded[:, 0, :]                                      # (8, 3)
  mats = []
  for phase in range(3):
    l = 3 * jnp.arange(l_pool) + phase                        # conv output pos
    idx = 2 * l[:, None] - 1 + jnp.arange(3)[None, :]         # (l_pool, 3)
    onehot = (jnp.arange(l_in)[:, None, None] == idx[None]).astype(jnp.float32)
    m = jnp.einsum('abt,ct->abc', onehot, w)                  # (l_in, l_pool, 8)
    mats.append(m.reshape(l_in, l_pool * w.shape[0]))
  return mats


def _conv_matrix(w_folded, l_in, l_out):
  """(l_in*Cin, l_out*Cout) dense matrix for a k3 s2 p1 conv, L-major/C-minor."""
  cout, cin, k = w_folded.shape
  idx = 2 * jnp.arange(l_out)[:, None] - 1 + jnp.arange(k)[None, :]   # (l_out, k)
  onehot = (jnp.arange(l_in)[:, None, None] == idx[None]).astype(jnp.float32)
  m = jnp.einsum('abt,cit->aibc', onehot, w_folded)           # (l_in,cin,l_out,cout)
  return m.reshape(l_in * cin, l_out * cout)


def _prepare(p, length):
  l1 = (length + 2 - 3) // 2 + 1      # after conv1 (k3 s2 p1)
  lp = (l1 - 3) // 3 + 1              # after MaxPool1d(3,3)
  l2 = (lp + 2 - 3) // 2 + 1          # after conv2
  l3 = (l2 + 2 - 3) // 2 + 1          # after conv3 (== flat_num)

  w1f, b1f = _fold_bn(p['w1'], p['b1'], p['g1'], p['be1'], p['m1'], p['v1'])
  w2f, b2f = _fold_bn(p['w2'], p['b2'], p['g2'], p['be2'], p['m2'], p['v2'])
  w3f, b3f = _fold_bn(p['w3'], p['b3'], p['g3'], p['be3'], p['m3'], p['v3'])

  m1a, m1b, m1c = _conv1_pool_matrices(w1f, length, lp)
  # fc1 rows re-ordered from PyTorch flatten index (c*l3 + l) to our (l*32 + c)
  wf1p = p['wf1'].reshape(32, l3, p['wf1'].shape[1]).transpose(1, 0, 2)
  wf1p = wf1p.reshape(32 * l3, p['wf1'].shape[1])

  return (m1a, m1b, m1c, jnp.tile(b1f, lp)[None],
          _conv_matrix(w2f, lp, l2), jnp.tile(b2f, l2)[None],
          _conv_matrix(w3f, l2, l3), jnp.tile(b3f, l3)[None],
          wf1p, p['bf1'][None],
          p['wf2'], p['bf2'][None],
          p['wf3'].T, p['bf3'][None])


# ----------------------------------------------------------------------------
# Forward pass
# ----------------------------------------------------------------------------
@jax.jit
def aoa_cnn_forward(x_ncl, p):
  """Fused Pallas forward. x_ncl: (B, 1, L) float32 -> (B, 1)."""
  batch, _, length = x_ncl.shape
  x = x_ncl.reshape(batch, length).astype(jnp.float32)        # in_channels == 1
  weights = _prepare(p, length)

  # Sublane-aligned batch tiling: pad to a multiple of 8, tile at _BATCH_TILE.
  if batch > _BATCH_TILE:
    bt = _BATCH_TILE
  else:
    bt = max(8, pl.cdiv(batch, 8) * 8)
  bp = pl.cdiv(batch, bt) * bt
  if bp != batch:
    x = jnp.pad(x, ((0, bp - batch), (0, 0)))
  grid = (bp // bt,)

  # Constant index maps -> weights stay VMEM-resident across grid steps.
  const_specs = [pl.BlockSpec(w.shape, lambda i: (0, 0)) for w in weights]

  out = pl.pallas_call(
      _aoa_fused_kernel,
      out_shape=jax.ShapeDtypeStruct((bp, 1), jnp.float32),
      grid=grid,
      in_specs=[pl.BlockSpec((bt, length), lambda i: (i, 0))] + const_specs,
      out_specs=pl.BlockSpec((bt, 1), lambda i: (i, 0)),
      compiler_params=pltpu.CompilerParams(
          dimension_semantics=("parallel",)),
  )(x, *weights)
  return out[:batch]


# ----------------------------------------------------------------------------
# Pure-JAX (non-Pallas) reference, used only to validate the kernel
# ----------------------------------------------------------------------------
def reference_forward(x_ncl, p):
  def conv_bn_relu(x, w, b, gamma, beta, mean, var, stride):
    y = jax.lax.conv_general_dilated(x, w, window_strides=(stride,),
                                     padding=((1, 1),),
                                     dimension_numbers=('NCH', 'OIH', 'NCH'))
    y = y + b[None, :, None]
    s, t = _bn_affine(gamma, beta, mean, var)
    return jnp.maximum(y * s[None, :, None] + t[None, :, None], 0.0)

  h = conv_bn_relu(x_ncl, p['w1'], p['b1'], p['g1'], p['be1'], p['m1'], p['v1'], 2)
  h = jax.lax.reduce_window(h, -jnp.inf, jax.lax.max, (1, 1, 3), (1, 1, 3), 'VALID')
  h = conv_bn_relu(h, p['w2'], p['b2'], p['g2'], p['be2'], p['m2'], p['v2'], 2)
  h = conv_bn_relu(h, p['w3'], p['b3'], p['g3'], p['be3'], p['m3'], p['v3'], 2)
  f = h.reshape(h.shape[0], -1)
  f = jnp.maximum(f @ p['wf1'] + p['bf1'], 0.0)
  f = jnp.maximum(f @ p['wf2'] + p['bf2'], 0.0)
  return f @ p['wf3'] + p['bf3']


# ----------------------------------------------------------------------------
# Deterministic synthetic parameters (shapes from AoACNN.__init__, flat_num=13)
# ----------------------------------------------------------------------------
def init_params(key):
  ks = jax.random.split(key, 12)

  def u(k, shape, fan_in):
    lim = 1.0 / math.sqrt(fan_in)
    return jax.random.uniform(k, shape, jnp.float32, -lim, lim)

  p = {}
  p['w1'], p['b1'] = u(ks[0], (8, 1, 3), 3), u(ks[1], (8,), 3)
  p['w2'], p['b2'] = u(ks[2], (16, 8, 3), 24), u(ks[3], (16,), 24)
  p['w3'], p['b3'] = u(ks[4], (32, 16, 3), 48), u(ks[5], (32,), 48)
  for i, c in zip((1, 2, 3), (8, 16, 32)):
    r = jnp.arange(c, dtype=jnp.float32) / c
    p[f'g{i}'] = 1.0 + 0.1 * r         # BN gamma
    p[f'be{i}'] = 0.05 * r             # BN beta
    p[f'm{i}'] = 0.01 * (r - 0.5)      # BN running mean
    p[f'v{i}'] = 1.0 + 0.2 * r         # BN running var
  p['wf1'], p['bf1'] = u(ks[6], (32 * 13, 256), 416), u(ks[7], (256,), 416)
  p['wf2'], p['bf2'] = u(ks[8], (256, 200), 256), u(ks[9], (200,), 256)
  p['wf3'], p['bf3'] = u(ks[10], (200, 1), 200), u(ks[11], (1,), 200)
  return p


if __name__ == "__main__":
  key = jax.random.PRNGKey(0)
  kx, kp = jax.random.split(key)

  # input consistent with flat_num=13: (B, C_in=1, L=300)
  x = jax.random.normal(kx, (2, 1, 300), jnp.float32)
  params = init_params(kp)

  out = aoa_cnn_forward(x, params)
  out = jax.block_until_ready(out)
  assert out.shape == (2, 1) and out.dtype == jnp.float32

  ref = reference_forward(x, params)
  max_err = float(jnp.max(jnp.abs(out - ref)))
  tol = 5e-2 * (1.0 + float(jnp.max(jnp.abs(ref))))
  assert max_err < tol, f"Pallas vs reference mismatch: {max_err} (tol {tol})"

  print("KERNEL_OK")
</pallas_src>

<mosaic_0001>
module attributes {stable_mosaic.version = 11 : i64} {
  func.func @_aoa_fused_kernel(%arg0: i32, %arg1: memref<8x300xf32, #tpu.memory_space<vmem>>, %arg2: memref<300x400xf32, #tpu.memory_space<vmem>>, %arg3: memref<300x400xf32, #tpu.memory_space<vmem>>, %arg4: memref<300x400xf32, #tpu.memory_space<vmem>>, %arg5: memref<1x400xf32, #tpu.memory_space<vmem>>, %arg6: memref<400x400xf32, #tpu.memory_space<vmem>>, %arg7: memref<1x400xf32, #tpu.memory_space<vmem>>, %arg8: memref<400x416xf32, #tpu.memory_space<vmem>>, %arg9: memref<1x416xf32, #tpu.memory_space<vmem>>, %arg10: memref<416x256xf32, #tpu.memory_space<vmem>>, %arg11: memref<1x256xf32, #tpu.memory_space<vmem>>, %arg12: memref<256x200xf32, #tpu.memory_space<vmem>>, %arg13: memref<1x200xf32, #tpu.memory_space<vmem>>, %arg14: memref<1x200xf32, #tpu.memory_space<vmem>>, %arg15: memref<1x1xf32, #tpu.memory_space<vmem>>, %arg16: memref<8x1xf32, #tpu.memory_space<vmem>>) attributes {dimension_semantics = [#tpu.dimension_semantics<parallel>], iteration_bounds = array<i64: 1>, scalar_prefetch = 0 : i64, scratch_operands = 0 : i64, tpu.core_type = #tpu.core_type<tc>, window_params = [{transform_indices = @transform_0, window_bounds = array<i64: 8, 300>}, {pipeline_mode = #tpu.pipeline_mode<synchronous>, transform_indices = @transform_1, window_bounds = array<i64: 300, 400>}, {pipeline_mode = #tpu.pipeline_mode<synchronous>, transform_indices = @transform_2, window_bounds = array<i64: 300, 400>}, {pipeline_mode = #tpu.pipeline_mode<synchronous>, transform_indices = @transform_3, window_bounds = array<i64: 300, 400>}, {pipeline_mode = #tpu.pipeline_mode<synchronous>, transform_indices = @transform_4, window_bounds = array<i64: 1, 400>}, {pipeline_mode = #tpu.pipeline_mode<synchronous>, transform_indices = @transform_5, window_bounds = array<i64: 400, 400>}, {pipeline_mode = #tpu.pipeline_mode<synchronous>, transform_indices = @transform_6, window_bounds = array<i64: 1, 400>}, {pipeline_mode = #tpu.pipeline_mode<synchronous>, transform_indices = @transform_7, window_bounds = array<i64: 400, 416>}, {pipeline_mode = #tpu.pipeline_mode<synchronous>, transform_indices = @transform_8, window_bounds = array<i64: 1, 416>}, {pipeline_mode = #tpu.pipeline_mode<synchronous>, transform_indices = @transform_9, window_bounds = array<i64: 416, 256>}, {pipeline_mode = #tpu.pipeline_mode<synchronous>, transform_indices = @transform_10, window_bounds = array<i64: 1, 256>}, {pipeline_mode = #tpu.pipeline_mode<synchronous>, transform_indices = @transform_11, window_bounds = array<i64: 256, 200>}, {pipeline_mode = #tpu.pipeline_mode<synchronous>, transform_indices = @transform_12, window_bounds = array<i64: 1, 200>}, {pipeline_mode = #tpu.pipeline_mode<synchronous>, transform_indices = @transform_13, window_bounds = array<i64: 1, 200>}, {pipeline_mode = #tpu.pipeline_mode<synchronous>, transform_indices = @transform_14, window_bounds = array<i64: 1, 1>}, {transform_indices = @transform_15, window_bounds = array<i64: 8, 1>}]} {
    %c0 = arith.constant 0 : index
    %c0_0 = arith.constant 0 : index
    %0 = vector.load %arg1[%c0, %c0_0] : memref<8x300xf32, #tpu.memory_space<vmem>>, vector<8x300xf32>
    %c0_1 = arith.constant 0 : index
    %c0_2 = arith.constant 0 : index
    %1 = vector.load %arg2[%c0_1, %c0_2] : memref<300x400xf32, #tpu.memory_space<vmem>>, vector<300x400xf32>
    %cst = arith.constant dense<0.000000e+00> : vector<8x400xf32>
    %2 = tpu.matmul %0, %1, %cst {dimension_numbers = #tpu.dot_dimension_numbers<[1], [0], [0], [1], [0, 0, 1, 1], [], []>} : vector<8x300xf32>, vector<300x400xf32>, vector<8x400xf32> -> vector<8x400xf32>
    %c0_3 = arith.constant 0 : index
    %c0_4 = arith.constant 0 : index
    %3 = vector.load %arg3[%c0_3, %c0_4] : memref<300x400xf32, #tpu.memory_space<vmem>>, vector<300x400xf32>
    %cst_5 = arith.constant dense<0.000000e+00> : vector<8x400xf32>
    %4 = tpu.matmul %0, %3, %cst_5 {dimension_numbers = #tpu.dot_dimension_numbers<[1], [0], [0], [1], [0, 0, 1, 1], [], []>} : vector<8x300xf32>, vector<300x400xf32>, vector<8x400xf32> -> vector<8x400xf32>
    %c0_6 = arith.constant 0 : index
    %c0_7 = arith.constant 0 : index
    %5 = vector.load %arg4[%c0_6, %c0_7] : memref<300x400xf32, #tpu.memory_space<vmem>>, vector<300x400xf32>
    %cst_8 = arith.constant dense<0.000000e+00> : vector<8x400xf32>
    %6 = tpu.matmul %0, %5, %cst_8 {dimension_numbers = #tpu.dot_dimension_numbers<[1], [0], [0], [1], [0, 0, 1, 1], [], []>} : vector<8x300xf32>, vector<300x400xf32>, vector<8x400xf32> -> vector<8x400xf32>
    %7 = arith.maximumf %2, %4 : vector<8x400xf32>
    %8 = arith.maximumf %7, %6 : vector<8x400xf32>
    %c0_9 = arith.constant 0 : index
    %c0_10 = arith.constant 0 : index
    %9 = vector.load %arg5[%c0_9, %c0_10] : memref<1x400xf32, #tpu.memory_space<vmem>>, vector<1x400xf32>
    %10 = vector.broadcast %9 : vector<1x400xf32> to vector<8x400xf32>
    %11 = arith.addf %8, %10 : vector<8x400xf32>
    %cst_11 = arith.constant 0.000000e+00 : f32
    %12 = vector.broadcast %cst_11 : f32 to vector<8x400xf32>
    %13 = arith.maximumf %11, %12 : vector<8x400xf32>
    %c0_12 = arith.constant 0 : index
    %c0_13 = arith.constant 0 : index
    %14 = vector.load %arg6[%c0_12, %c0_13] : memref<400x400xf32, #tpu.memory_space<vmem>>, vector<400x400xf32>
    %cst_14 = arith.constant dense<0.000000e+00> : vector<8x400xf32>
    %15 = tpu.matmul %13, %14, %cst_14 {dimension_numbers = #tpu.dot_dimension_numbers<[1], [0], [0], [1], [0, 0, 1, 1], [], []>} : vector<8x400xf32>, vector<400x400xf32>, vector<8x400xf32> -> vector<8x400xf32>
    %c0_15 = arith.constant 0 : index
    %c0_16 = arith.constant 0 : index
    %16 = vector.load %arg7[%c0_15, %c0_16] : memref<1x400xf32, #tpu.memory_space<vmem>>, vector<1x400xf32>
    %17 = vector.broadcast %16 : vector<1x400xf32> to vector<8x400xf32>
    %18 = arith.addf %15, %17 : vector<8x400xf32>
    %cst_17 = arith.constant 0.000000e+00 : f32
    %19 = vector.broadcast %cst_17 : f32 to vector<8x400xf32>
    %20 = arith.maximumf %18, %19 : vector<8x400xf32>
    %c0_18 = arith.constant 0 : index
    %c0_19 = arith.constant 0 : index
    %21 = vector.load %arg8[%c0_18, %c0_19] : memref<400x416xf32, #tpu.memory_space<vmem>>, vector<400x416xf32>
    %cst_20 = arith.constant dense<0.000000e+00> : vector<8x416xf32>
    %22 = tpu.matmul %20, %21, %cst_20 {dimension_numbers = #tpu.dot_dimension_numbers<[1], [0], [0], [1], [0, 0, 1, 1], [], []>} : vector<8x400xf32>, vector<400x416xf32>, vector<8x416xf32> -> vector<8x416xf32>
    %c0_21 = arith.constant 0 : index
    %c0_22 = arith.constant 0 : index
    %23 = vector.load %arg9[%c0_21, %c0_22] : memref<1x416xf32, #tpu.memory_space<vmem>>, vector<1x416xf32>
    %24 = vector.broadcast %23 : vector<1x416xf32> to vector<8x416xf32>
    %25 = arith.addf %22, %24 : vector<8x416xf32>
    %cst_23 = arith.constant 0.000000e+00 : f32
    %26 = vector.broadcast %cst_23 : f32 to vector<8x416xf32>
    %27 = arith.maximumf %25, %26 : vector<8x416xf32>
    %c0_24 = arith.constant 0 : index
    %c0_25 = arith.constant 0 : index
    %28 = vector.load %arg10[%c0_24, %c0_25] : memref<416x256xf32, #tpu.memory_space<vmem>>, vector<416x256xf32>
    %cst_26 = arith.constant dense<0.000000e+00> : vector<8x256xf32>
    %29 = tpu.matmul %27, %28, %cst_26 {dimension_numbers = #tpu.dot_dimension_numbers<[1], [0], [0], [1], [0, 0, 1, 1], [], []>} : vector<8x416xf32>, vector<416x256xf32>, vector<8x256xf32> -> vector<8x256xf32>
    %c0_27 = arith.constant 0 : index
    %c0_28 = arith.constant 0 : index
    %30 = vector.load %arg11[%c0_27, %c0_28] : memref<1x256xf32, #tpu.memory_space<vmem>>, vector<1x256xf32>
    %31 = vector.broadcast %30 : vector<1x256xf32> to vector<8x256xf32>
    %32 = arith.addf %29, %31 : vector<8x256xf32>
    %cst_29 = arith.constant 0.000000e+00 : f32
    %33 = vector.broadcast %cst_29 : f32 to vector<8x256xf32>
    %34 = arith.maximumf %32, %33 : vector<8x256xf32>
    %c0_30 = arith.constant 0 : index
    %c0_31 = arith.constant 0 : index
    %35 = vector.load %arg12[%c0_30, %c0_31] : memref<256x200xf32, #tpu.memory_space<vmem>>, vector<256x200xf32>
    %cst_32 = arith.constant dense<0.000000e+00> : vector<8x200xf32>
    %36 = tpu.matmul %34, %35, %cst_32 {dimension_numbers = #tpu.dot_dimension_numbers<[1], [0], [0], [1], [0, 0, 1, 1], [], []>} : vector<8x256xf32>, vector<256x200xf32>, vector<8x200xf32> -> vector<8x200xf32>
    %c0_33 = arith.constant 0 : index
    %c0_34 = arith.constant 0 : index
    %37 = vector.load %arg13[%c0_33, %c0_34] : memref<1x200xf32, #tpu.memory_space<vmem>>, vector<1x200xf32>
    %38 = vector.broadcast %37 : vector<1x200xf32> to vector<8x200xf32>
    %39 = arith.addf %36, %38 : vector<8x200xf32>
    %cst_35 = arith.constant 0.000000e+00 : f32
    %40 = vector.broadcast %cst_35 : f32 to vector<8x200xf32>
    %41 = arith.maximumf %39, %40 : vector<8x200xf32>
    %c0_36 = arith.constant 0 : index
    %c0_37 = arith.constant 0 : index
    %42 = vector.load %arg14[%c0_36, %c0_37] : memref<1x200xf32, #tpu.memory_space<vmem>>, vector<1x200xf32>
    %43 = vector.broadcast %42 : vector<1x200xf32> to vector<8x200xf32>
    %44 = arith.mulf %41, %43 : vector<8x200xf32>
    %cst_38 = arith.constant dense<0.000000e+00> : vector<8xf32>
    %45 = vector.multi_reduction <add>, %44, %cst_38 [1] : vector<8x200xf32> to vector<8xf32>
    %46 = vector.shape_cast %45 : vector<8xf32> to vector<8x1xf32>
    %c0_39 = arith.constant 0 : index
    %c0_40 = arith.constant 0 : index
    %47 = vector.load %arg15[%c0_39, %c0_40] : memref<1x1xf32, #tpu.memory_space<vmem>>, vector<1x1xf32>
    %48 = vector.broadcast %47 : vector<1x1xf32> to vector<8x1xf32>
    %49 = arith.addf %46, %48 : vector<8x1xf32>
    %c0_41 = arith.constant 0 : index
    %c0_42 = arith.constant 0 : index
    %50 = vector.load %arg16[%c0_41, %c0_42] : memref<8x1xf32, #tpu.memory_space<vmem>>, vector<8x1xf32>
    tpu.vector_store %arg16[%c0_41, %c0_42], %49 {strides = array<i32>} : memref<8x1xf32, #tpu.memory_space<vmem>>, vector<8x1xf32>,
    return
  }
  func.func @transform_0(%arg0: i32) -> (i32, i32) {
    %c0_i32 = arith.constant 0 : i32
    %c0_i32_0 = arith.constant 0 : i32
    return %arg0, %c0_i32 : i32, i32
  }
  func.func @transform_1(%arg0: i32) -> (i32, i32) {
    %c0_i32 = arith.constant 0 : i32
    %c0_i32_0 = arith.constant 0 : i32
    %c0_i32_1 = arith.constant 0 : i32
    return %c0_i32, %c0_i32_0 : i32, i32
  }
  func.func @transform_2(%arg0: i32) -> (i32, i32) {
    %c0_i32 = arith.constant 0 : i32
    %c0_i32_0 = arith.constant 0 : i32
    %c0_i32_1 = arith.constant 0 : i32
    return %c0_i32, %c0_i32_0 : i32, i32
  }
  func.func @transform_3(%arg0: i32) -> (i32, i32) {
    %c0_i32 = arith.constant 0 : i32
    %c0_i32_0 = arith.constant 0 : i32
    %c0_i32_1 = arith.constant 0 : i32
    return %c0_i32, %c0_i32_0 : i32, i32
  }
  func.func @transform_4(%arg0: i32) -> (i32, i32) {
    %c0_i32 = arith.constant 0 : i32
    %c0_i32_0 = arith.constant 0 : i32
    %c0_i32_1 = arith.constant 0 : i32
    return %c0_i32, %c0_i32_0 : i32, i32
  }
  func.func @transform_5(%arg0: i32) -> (i32, i32) {
    %c0_i32 = arith.constant 0 : i32
    %c0_i32_0 = arith.constant 0 : i32
    %c0_i32_1 = arith.constant 0 : i32
    return %c0_i32, %c0_i32_0 : i32, i32
  }
  func.func @transform_6(%arg0: i32) -> (i32, i32) {
    %c0_i32 = arith.constant 0 : i32
    %c0_i32_0 = arith.constant 0 : i32
    %c0_i32_1 = arith.constant 0 : i32
    return %c0_i32, %c0_i32_0 : i32, i32
  }
  func.func @transform_7(%arg0: i32) -> (i32, i32) {
    %c0_i32 = arith.constant 0 : i32
    %c0_i32_0 = arith.constant 0 : i32
    %c0_i32_1 = arith.constant 0 : i32
    return %c0_i32, %c0_i32_0 : i32, i32
  }
  func.func @transform_8(%arg0: i32) -> (i32, i32) {
    %c0_i32 = arith.constant 0 : i32
    %c0_i32_0 = arith.constant 0 : i32
    %c0_i32_1 = arith.constant 0 : i32
    return %c0_i32, %c0_i32_0 : i32, i32
  }
  func.func @transform_9(%arg0: i32) -> (i32, i32) {
    %c0_i32 = arith.constant 0 : i32
    %c0_i32_0 = arith.constant 0 : i32
    %c0_i32_1 = arith.constant 0 : i32
    return %c0_i32, %c0_i32_0 : i32, i32
  }
  func.func @transform_10(%arg0: i32) -> (i32, i32) {
    %c0_i32 = arith.constant 0 : i32
    %c0_i32_0 = arith.constant 0 : i32
    %c0_i32_1 = arith.constant 0 : i32
    return %c0_i32, %c0_i32_0 : i32, i32
  }
  func.func @transform_11(%arg0: i32) -> (i32, i32) {
    %c0_i32 = arith.constant 0 : i32
    %c0_i32_0 = arith.constant 0 : i32
    %c0_i32_1 = arith.constant 0 : i32
    return %c0_i32, %c0_i32_0 : i32, i32
  }
  func.func @transform_12(%arg0: i32) -> (i32, i32) {
    %c0_i32 = arith.constant 0 : i32
    %c0_i32_0 = arith.constant 0 : i32
    %c0_i32_1 = arith.constant 0 : i32
    return %c0_i32, %c0_i32_0 : i32, i32
  }
  func.func @transform_13(%arg0: i32) -> (i32, i32) {
    %c0_i32 = arith.constant 0 : i32
    %c0_i32_0 = arith.constant 0 : i32
    %c0_i32_1 = arith.constant 0 : i32
    return %c0_i32, %c0_i32_0 : i32, i32
  }
  func.func @transform_14(%arg0: i32) -> (i32, i32) {
    %c0_i32 = arith.constant 0 : i32
    %c0_i32_0 = arith.constant 0 : i32
    %c0_i32_1 = arith.constant 0 : i32
    return %c0_i32, %c0_i32_0 : i32, i32
  }
  func.func @transform_15(%arg0: i32) -> (i32, i32) {
    %c0_i32 = arith.constant 0 : i32
    %c0_i32_0 = arith.constant 0 : i32
    return %arg0, %c0_i32 : i32, i32
  }
}

</mosaic_0001>

<llo_original>
// kernel: tile.18
$region0: #{tile.18}
  #allocation0 [shape = 's32[1]{0}', space=sflag, size = 0x4, scoped, tag = 'scoped memory for tile.18']
  %s0 = inlined_call_operand.vmem [shape: f32[8], index: 0, kind: input, shape index: {}]
  %s1 = inlined_call_operand.vmem [shape: f32[50,8], index: 1, kind: output, shape index: {}]
  // Predicated region
  $region2: #{tile.18} parent=0 // pred_check
    _
  $region3: #{tile.18} parent=0 // pred_check_branch
    %3 = sbr.rel (0) target = $region5
  $region4: #{tile.18} parent=0 // pred_region
    _
  $region5: #{tile.18} parent=0 // pred_fallthru
    _
  %v4 = vld [vmem:[%s0] ss:$0 sm:$0xff]
  %5 = vst [vmem:[%s1] sm:$0xff] %v4
  %s6 = scalar_lea.vmem %s1, 8
  %7 = vst [vmem:[%s6] sm:$0xff] %v4
  %s8 = scalar_lea.vmem %s1, 16
  %9 = vst [vmem:[%s8] sm:$0xff] %v4
  %s10 = scalar_lea.vmem %s1, 24
  %11 = vst [vmem:[%s10] sm:$0xff] %v4
  %s12 = scalar_lea.vmem %s1, 32
  %13 = vst [vmem:[%s12] sm:$0xff] %v4
  %s14 = scalar_lea.vmem %s1, 40
  %15 = vst [vmem:[%s14] sm:$0xff] %v4
  %s16 = scalar_lea.vmem %s1, 48
  %17 = vst [vmem:[%s16] sm:$0xff] %v4

// kernel: tile.19
$region0: #{tile.19}
  %s0 = inlined_call_operand.vmem [shape: f32[50,8], index: 0, kind: input, shape index: {}]
  %s1 = inlined_call_operand.vmem [shape: f32[1,400], index: 1, kind: output, shape index: {}]
  $region1: #{tile.19} parent=0
    #allocation0 [shape = 'u8[16384]{0}', space=vmem, size = 0x4000, scoped, tag = 'scoped mem for output reshape']
    %s2 = smov 3
    %v3 = vld [vmem:[%s0] ss:$16 sm:%s2]
    %s4 = smov 12
    %v5 = vld [vmem:[%s0] ss:$16 sm:%s4]
    %vm6 = vcmask 1043458
    %v7 = vsel %vm6, %v5, %v3
    %vm8 = vcmask 64512
    %9 = vst.msk [vmem:[#allocation0] ss:$8 sm:$0xf] %vm8, %v7
    %s10 = scalar_lea.vmem %s0, 15
    %s11 = smov 3
    %v12 = vld [vmem:[%s10] ss:$16 sm:%s11]
    %s13 = scalar_lea.vmem %s0, 45
    %v14 = vld [vmem:[%s13] sm:$0x4]
    %vm15 = vcmask 1042434
    %v16 = vsel %vm15, %v14, %v12
    %17 = vrot.lane.b32.xlu0 %v16, 120
    %v18 = vpop.permute.xlu0 %17
    %vm19 = vcmask 1048512
    %20 = vst.msk [vmem:[#allocation0] ss:$8 sm:$0x7] %vm19, %v18
    %s21 = scalar_lea.vmem %s0, 14
    %s22 = smov 3
    %v23 = vld [vmem:[%s21] ss:$16 sm:%s22]
    %s24 = scalar_lea.vmem %s0, 44
    %v25 = vld [vmem:[%s24] sm:$0x4]
    %vm26 = vcmask 1042434
    %v27 = vsel %vm26, %v25, %v23
    %28 = vrot.lane.b32.xlu0 %v27, 112
    %v29 = vpop.permute.xlu0 %28
    %vm30 = vcmask 982912
    %31 = vst.msk [vmem:[#allocation0] ss:$8 sm:$0x7] %vm30, %v29
    %s32 = scalar_lea.vmem %s0, 13
    %s33 = smov 3
    %v34 = vld [vmem:[%s32] ss:$16 sm:%s33]
    %s35 = scalar_lea.vmem %s0, 43
    %v36 = vld [vmem:[%s35] sm:$0x4]
    %vm37 = vcmask 1042434
    %v38 = vsel %vm37, %v36, %v34
    %39 = vrot.lane.b32.xlu0 %v38, 104
    %v40 = vpop.permute.xlu0 %39
    %vm41 = vcmask 917312
    %42 = vst.msk [vmem:[#allocation0] ss:$8 sm:$0x7] %vm41, %v40
    %s43 = scalar_lea.vmem %s0, 12
    %s44 = smov 3
    %v45 = vld [vmem:[%s43] ss:$16 sm:%s44]
    %s46 = scalar_lea.vmem %s0, 42
    %v47 = vld [vmem:[%s46] sm:$0x4]
    %vm48 = vcmask 1042434
    %v49 = vsel %vm48, %v47, %v45
    %50 = vrot.lane.b32.xlu0 %v49, 96
    %v51 = vpop.permute.xlu0 %50
    %vm52 = vcmask 851712
    %53 = vst.msk [vmem:[#allocation0] ss:$8 sm:$0x7] %vm52, %v51
    %s54 = scalar_lea.vmem %s0, 11
    %s55 = smov 3
    %v56 = vld [vmem:[%s54] ss:$16 sm:%s55]
    %s57 = scalar_lea.vmem %s0, 41
    %v58 = vld [vmem:[%s57] sm:$0x4]
    %vm59 = vcmask 1042434
    %v60 = vsel %vm59, %v58, %v56
    %61 = vrot.lane.b32.xlu0 %v60, 88
    %v62 = vpop.permute.xlu0 %61
    %vm63 = vcmask 786112
    %64 = vst.msk [vmem:[#allocation0] ss:$8 sm:$0x7] %vm63, %v62
    %s65 = scalar_lea.vmem %s0, 10
    %s66 = smov 3
    %v67 = vld [vmem:[%s65] ss:$16 sm:%s66]
    %s68 = scalar_lea.vmem %s0, 40
    %v69 = vld [vmem:[%s68] sm:$0x4]
    %vm70 = vcmask 1042434
    %v71 = vsel %vm70, %v69, %v67
    %72 = vrot.lane.b32.xlu0 %v71, 80
    %v73 = vpop.permute.xlu0 %72
    %vm74 = vcmask 720512
    %75 = vst.msk [vmem:[#allocation0] ss:$8 sm:$0x7] %vm74, %v73
    %s76 = scalar_lea.vmem %s0, 9
    %s77 = smov 3
    %v78 = vld [vmem:[%s76] ss:$16 sm:%s77]
    %s79 = scalar_lea.vmem %s0, 39
    %v80 = vld [vmem:[%s79] sm:$0x4]
    %vm81 = vcmask 1042434
    %v82 = vsel %vm81, %v80, %v78
    %83 = vrot.lane.b32.xlu0 %v82, 72
    %v84 = vpop.permute.xlu0 %83
    %vm85 = vcmask 654912
    %86 = vst.msk [vmem:[#allocation0] ss:$8 sm:$0x7] %vm85, %v84
    %s87 = scalar_lea.vmem %s0, 8
    %s88 = smov 3
    %v89 = vld [vmem:[%s87] ss:$16 sm:%s88]
    %s90 = scalar_lea.vmem %s0, 38
    %v91 = vld [vmem:[%s90] sm:$0x4]
    %vm92 = vcmask 1042434
    %v93 = vsel %vm92, %v91, %v89
    %94 = vrot.lane.b32.xlu0 %v93, 64
    %v95 = vpop.permute.xlu0 %94
    %vm96 = vcmask 589312
    %97 = vst.msk [vmem:[#allocation0] ss:$8 sm:$0x7] %vm96, %v95
    %s98 = scalar_lea.vmem %s0, 7
    %s99 = smov 3
    %v100 = vld [vmem:[%s98] ss:$16 sm:%s99]
    %s101 = scalar_lea.vmem %s0, 37
    %v102 = vld [vmem:[%s101] sm:$0x4]
    %vm103 = vcmask 1042434
    %v104 = vsel %vm103, %v102, %v100
    %105 = vrot.lane.b32.xlu0 %v104, 56
    %v106 = vpop.permute.xlu0 %105
    %vm107 = vcmask 523712
    %108 = vst.msk [vmem:[#allocation0] ss:$8 sm:$0x7] %vm107, %v106
    %s109 = scalar_lea.vmem %s0, 6
    %s110 = smov 3
    %v111 = vld [vmem:[%s109] ss:$16 sm:%s110]
    %s112 = scalar_lea.vmem %s0, 36
    %v113 = vld [vmem:[%s112] sm:$0x4]
    %vm114 = vcmask 1042434
    %v115 = vsel %vm114, %v113, %v111
    %116 = vrot.lane.b32.xlu0 %v115, 48
    %v117 = vpop.permute.xlu0 %116
    %vm118 = vcmask 458112
    %119 = vst.msk [vmem:[#allocation0] ss:$8 sm:$0x7] %vm118, %v117
    %s120 = scalar_lea.vmem %s0, 5
    %s121 = smov 3
    %v122 = vld [vmem:[%s120] ss:$16 sm:%s121]
    %s123 = scalar_lea.vmem %s0, 35
    %v124 = vld [vmem:[%s123] sm:$0x4]
    %vm125 = vcmask 1042434
    %v126 = vsel %vm125, %v124, %v122
    %127 = vrot.lane.b32.xlu0 %v126, 40
    %v128 = vpop.permute.xlu0 %127
    %vm129 = vcmask 392512
    %130 = vst.msk [vmem:[#allocation0] ss:$8 sm:$0x7] %vm129, %v128
    %s131 = scalar_lea.vmem %s0, 4
    %s132 = smov 3
    %v133 = vld [vmem:[%s131] ss:$16 sm:%s132]
    %s134 = scalar_lea.vmem %s0, 34
    %v135 = vld [vmem:[%s134] sm:$0x4]
    %vm136 = vcmask 1042434
    %v137 = vsel %vm136, %v135, %v133
    %138 = vrot.lane.b32.xlu0 %v137, 32
    %v139 = vpop.permute.xlu0 %138
    %vm140 = vcmask 326912
    %141 = vst.msk [vmem:[#allocation0] ss:$8 sm:$0x7] %vm140, %v139
    %s142 = scalar_lea.vmem %s0, 3
    %s143 = smov 3
    %v144 = vld [vmem:[%s142] ss:$16 sm:%s143]
    %s145 = scalar_lea.vmem %s0, 33
    %v146 = vld [vmem:[%s145] sm:$0x4]
    %vm147 = vcmask 1042434
    %v148 = vsel %vm147, %v146, %v144
    %149 = vrot.lane.b32.xlu0 %v148, 24
    %v150 = vpop.permute.xlu0 %149
    %vm151 = vcmask 261312
    %152 = vst.msk [vmem:[#allocation0] ss:$8 sm:$0x7] %vm151, %v150
    %s153 = scalar_lea.vmem %s0, 2
    %s154 = smov 3
    %v155 = vld [vmem:[%s153] ss:$16 sm:%s154]
    %s156 = scalar_lea.vmem %s0, 32
    %v157 = vld [vmem:[%s156] sm:$0x4]
    %vm158 = vcmask 1042434
    %v159 = vsel %vm158, %v157, %v155
    %160 = vrot.lane.b32.xlu0 %v159, 16
    %v161 = vpop.permute.xlu0 %160
    %vm162 = vcmask 195712
    %163 = vst.msk [vmem:[#allocation0] ss:$8 sm:$0x7] %vm162, %v161
    %s164 = scalar_lea.vmem %s0, 1
    %s165 = smov 3
    %v166 = vld [vmem:[%s164] ss:$16 sm:%s165]
    %s167 = scalar_lea.vmem %s0, 1
    %s168 = smov 12
    %v169 = vld [vmem:[%s167] ss:$16 sm:%s168]
    %vm170 = vcmask 1043458
    %v171 = vsel %vm170, %v169, %v166
    %172 = vrot.lane.b32.xlu0 %v171, 8
    %v173 = vpop.permute.xlu0 %172
    %vm174 = vcmask 130112
    %175 = vst.msk [vmem:[#allocation0] ss:$8 sm:$0xf] %vm174, %v173
    %s177 = sshll.u32 1, 1
    %s178 = ssub.s32 %s177, 1
    %v180 = vld [vmem:[#allocation0] sm:%s178]
    %s181 = sshll.u32 1, 1
    %s182 = ssub.s32 %s181, 1
    %183 = vst [vmem:[%s1] sm:%s182] %v180
    %s184 = scalar_lea.vmem [#allocation0], 8
    %v185 = vld [vmem:[%s184] sm:%s178]
    %s186 = sshll.u32 1, 1
    %s187 = ssub.s32 %s186, 1
    %s188 = scalar_lea.vmem %s1, 1
    %189 = vst [vmem:[%s188] sm:%s187] %v185
    %s190 = scalar_lea.vmem [#allocation0], 16
    %v191 = vld [vmem:[%s190] sm:%s178]
    %s192 = sshll.u32 1, 1
    %s193 = ssub.s32 %s192, 1
    %s194 = smul.addr 1, 2
    %s195 = scalar_lea.vmem %s1, %s194
    %196 = vst [vmem:[%s195] sm:%s193] %v191
    %s197 = scalar_lea.vmem [#allocation0], 24
    %v198 = vld [vmem:[%s197] sm:%s178]
    %s199 = sshll.u32 1, 1
    %s200 = ssub.s32 %s199, 1
    %s201 = smul.addr 1, 3
    %s202 = scalar_lea.vmem %s1, %s201
    %203 = vst [vmem:[%s202] sm:%s200] %v198

// kernel: tile.23
$region0: #{tile.23}
  #allocation0 [shape = 's32[1]{0}', space=sflag, size = 0x4, scoped, tag = 'scoped memory for tile.23']
  %s0 = inlined_call_operand.vmem [shape: f32[16], index: 0, kind: input, shape index: {}]
  %s1 = inlined_call_operand.vmem [shape: f32[25,16], index: 1, kind: output, shape index: {}]
  // Predicated region
  $region2: #{tile.23} parent=0 // pred_check
    _
  $region3: #{tile.23} parent=0 // pred_check_branch
    %3 = sbr.rel (0) target = $region5
  $region4: #{tile.23} parent=0 // pred_region
    _
  $region5: #{tile.23} parent=0 // pred_fallthru
    _
  %v4 = vld [vmem:[%s0] ss:$0 sm:$0xff]
  %5 = vst [vmem:[%s1] sm:$0xff] %v4
  %s6 = scalar_lea.vmem %s1, 8
  %7 = vst [vmem:[%s6] sm:$0xff] %v4
  %s8 = scalar_lea.vmem %s1, 16
  %9 = vst [vmem:[%s8] sm:$0xff] %v4
  %s10 = scalar_lea.vmem %s1, 24
  %11 = vst [vmem:[%s10] sm:$0xff] %v4

// kernel: tile.24
$region0: #{tile.24}
  %s0 = inlined_call_operand.vmem [shape: f32[25,16], index: 0, kind: input, shape index: {}]
  %s1 = inlined_call_operand.vmem [shape: f32[1,400], index: 1, kind: output, shape index: {}]
  $region1: #{tile.24} parent=0
    #allocation0 [shape = 'u8[16384]{0}', space=vmem, size = 0x4000, scoped, tag = 'scoped mem for output reshape']
    %v2 = vld [vmem:[%s0] ss:$8 sm:$0xf]
    %vm3 = vcmask 130048
    %4 = vst.msk [vmem:[#allocation0] ss:$8 sm:$0xf] %vm3, %v2
    %s5 = scalar_lea.vmem %s0, 7
    %v6 = vld [vmem:[%s5] ss:$8 sm:$0x7]
    %7 = vrot.lane.b32.xlu0 %v6, 112
    %v8 = vpop.permute.xlu0 %7
    %vm9 = vcmask 1048448
    %10 = vst.msk [vmem:[#allocation0] ss:$8 sm:$0x7] %vm9, %v8
    %s11 = scalar_lea.vmem %s0, 6
    %v12 = vld [vmem:[%s11] ss:$8 sm:$0x7]
    %13 = vrot.lane.b32.xlu0 %v12, 96
    %v14 = vpop.permute.xlu0 %13
    %vm15 = vcmask 917248
    %16 = vst.msk [vmem:[#allocation0] ss:$8 sm:$0x7] %vm15, %v14
    %s17 = scalar_lea.vmem %s0, 5
    %v18 = vld [vmem:[%s17] ss:$8 sm:$0x7]
    %19 = vrot.lane.b32.xlu0 %v18, 80
    %v20 = vpop.permute.xlu0 %19
    %vm21 = vcmask 786048
    %22 = vst.msk [vmem:[#allocation0] ss:$8 sm:$0x7] %vm21, %v20
    %s23 = scalar_lea.vmem %s0, 4
    %v24 = vld [vmem:[%s23] ss:$8 sm:$0x7]
    %25 = vrot.lane.b32.xlu0 %v24, 64
    %v26 = vpop.permute.xlu0 %25
    %vm27 = vcmask 654848
    %28 = vst.msk [vmem:[#allocation0] ss:$8 sm:$0x7] %vm27, %v26
    %s29 = scalar_lea.vmem %s0, 3
    %v30 = vld [vmem:[%s29] ss:$8 sm:$0x7]
    %31 = vrot.lane.b32.xlu0 %v30, 48
    %v32 = vpop.permute.xlu0 %31
    %vm33 = vcmask 523648
    %34 = vst.msk [vmem:[#allocation0] ss:$8 sm:$0x7] %vm33, %v32
    %s35 = scalar_lea.vmem %s0, 2
    %v36 = vld [vmem:[%s35] ss:$8 sm:$0x7]
    %37 = vrot.lane.b32.xlu0 %v36, 32
    %v38 = vpop.permute.xlu0 %37
    %vm39 = vcmask 392448
    %40 = vst.msk [vmem:[#allocation0] ss:$8 sm:$0x7] %vm39, %v38
    %s41 = scalar_lea.vmem %s0, 1
    %v42 = vld [vmem:[%s41] ss:$8 sm:$0x7]
    %43 = vrot.lane.b32.xlu0 %v42, 16
    %v44 = vpop.permute.xlu0 %43
    %vm45 = vcmask 261248
    %46 = vst.msk [vmem:[#allocation0] ss:$8 sm:$0x7] %vm45, %v44
    %s48 = sshll.u32 1, 1
    %s49 = ssub.s32 %s48, 1
    %v51 = vld [vmem:[#allocation0] sm:%s49]
    %s52 = sshll.u32 1, 1
    %s53 = ssub.s32 %s52, 1
    %54 = vst [vmem:[%s1] sm:%s53] %v51
    %s55 = scalar_lea.vmem [#allocation0], 8
    %v56 = vld [vmem:[%s55] sm:%s49]
    %s57 = sshll.u32 1, 1
    %s58 = ssub.s32 %s57, 1
    %s59 = scalar_lea.vmem %s1, 1
    %60 = vst [vmem:[%s59] sm:%s58] %v56
    %s61 = scalar_lea.vmem [#allocation0], 16
    %v62 = vld [vmem:[%s61] sm:%s49]
    %s63 = sshll.u32 1, 1
    %s64 = ssub.s32 %s63, 1
    %s65 = smul.addr 1, 2
    %s66 = scalar_lea.vmem %s1, %s65
    %67 = vst [vmem:[%s66] sm:%s64] %v62
    %s68 = scalar_lea.vmem [#allocation0], 24
    %v69 = vld [vmem:[%s68] sm:%s49]
    %s70 = sshll.u32 1, 1
    %s71 = ssub.s32 %s70, 1
    %s72 = smul.addr 1, 3
    %s73 = scalar_lea.vmem %s1, %s72
    %74 = vst [vmem:[%s73] sm:%s71] %v69

// kernel: tile.28
$region0: #{tile.28}
  #allocation0 [shape = 's32[1]{0}', space=sflag, size = 0x4, scoped, tag = 'scoped memory for tile.28']
  %s0 = inlined_call_operand.vmem [shape: f32[32], index: 0, kind: input, shape index: {}]
  %s1 = inlined_call_operand.vmem [shape: f32[13,32], index: 1, kind: output, shape index: {}]
  // Predicated region
  $region2: #{tile.28} parent=0 // pred_check
    _
  $region3: #{tile.28} parent=0 // pred_check_branch
    %3 = sbr.rel (0) target = $region5
  $region4: #{tile.28} parent=0 // pred_region
    _
  $region5: #{tile.28} parent=0 // pred_fallthru
    _
  %v4 = vld [vmem:[%s0] ss:$0 sm:$0xff]
  %5 = vst [vmem:[%s1] sm:$0xff] %v4
  %s6 = scalar_lea.vmem %s1, 8
  %7 = vst [vmem:[%s6] sm:$0xff] %v4

// kernel: tile.29
$region0: #{tile.29}
  %s0 = inlined_call_operand.vmem [shape: f32[13,32], index: 0, kind: input, shape index: {}]
  %s1 = inlined_call_operand.vmem [shape: f32[1,416], index: 1, kind: output, shape index: {}]
  $region1: #{tile.29} parent=0
    #allocation0 [shape = 'u8[16384]{0}', space=vmem, size = 0x4000, scoped, tag = 'scoped mem for output reshape']
    %v2 = vld [vmem:[%s0] ss:$4 sm:$0xf]
    %vm3 = vcmask 261120
    %4 = vst.msk [vmem:[#allocation0] ss:$8 sm:$0xf] %vm3, %v2
    %s5 = scalar_lea.vmem %s0, 3
    %v6 = vld [vmem:[%s5] ss:$4 sm:$0x7]
    %7 = vrot.lane.b32.xlu0 %v6, 96
    %v8 = vpop.permute.xlu0 %7
    %vm9 = vcmask 1048320
    %10 = vst.msk [vmem:[#allocation0] ss:$8 sm:$0x7] %vm9, %v8
    %s11 = scalar_lea.vmem %s0, 2
    %v12 = vld [vmem:[%s11] ss:$4 sm:$0x7]
    %13 = vrot.lane.b32.xlu0 %v12, 64
    %v14 = vpop.permute.xlu0 %13
    %vm15 = vcmask 785920
    %16 = vst.msk [vmem:[#allocation0] ss:$8 sm:$0x7] %vm15, %v14
    %s17 = scalar_lea.vmem %s0, 1
    %v18 = vld [vmem:[%s17] ss:$4 sm:$0x7]
    %19 = vrot.lane.b32.xlu0 %v18, 32
    %v20 = vpop.permute.xlu0 %19
    %vm21 = vcmask 523520
    %22 = vst.msk [vmem:[#allocation0] ss:$8 sm:$0x7] %vm21, %v20
    %s24 = sshll.u32 1, 1
    %s25 = ssub.s32 %s24, 1
    %v27 = vld [vmem:[#allocation0] sm:%s25]
    %s28 = sshll.u32 1, 1
    %s29 = ssub.s32 %s28, 1
    %30 = vst [vmem:[%s1] sm:%s29] %v27
    %s31 = scalar_lea.vmem [#allocation0], 8
    %v32 = vld [vmem:[%s31] sm:%s25]
    %s33 = sshll.u32 1, 1
    %s34 = ssub.s32 %s33, 1
    %s35 = scalar_lea.vmem %s1, 1
    %36 = vst [vmem:[%s35] sm:%s34] %v32
    %s37 = scalar_lea.vmem [#allocation0], 16
    %v38 = vld [vmem:[%s37] sm:%s25]
    %s39 = sshll.u32 1, 1
    %s40 = ssub.s32 %s39, 1
    %s41 = smul.addr 1, 2
    %s42 = scalar_lea.vmem %s1, %s41
    %43 = vst [vmem:[%s42] sm:%s40] %v38
    %s44 = scalar_lea.vmem [#allocation0], 24
    %v45 = vld [vmem:[%s44] sm:%s25]
    %s46 = sshll.u32 1, 1
    %s47 = ssub.s32 %s46, 1
    %s48 = smul.addr 1, 3
    %s49 = scalar_lea.vmem %s1, %s48
    %50 = vst [vmem:[%s49] sm:%s47] %v45

// kernel: aoa_cnn_forward.1
$region0: #{aoa_cnn_forward.1}
  #allocation0 [shape = 'u32[]', space=smem, size = 0x4, offset = 0x4, fixed_abs, tag = 'smem constant byte address 0x4 - core index']
  #allocation1 [shape = 'u32[144,128]{1,0:T(1,128)}', space=vmem, size = 0x12000, scoped, tag = 'internal scratch']
  #allocation2 [shape = 'f32[1,1]{1,0:T(1,128)S(1)}', space=vmem, size = 0x200, scoped, tag = 'scoped memory for aoa_cnn_forward.1']
  %s0 = inlined_call_operand.vmem [shape: f32[8,300], index: 0, kind: input, shape index: {}]
  %s1 = inlined_call_operand.vmem [shape: f32[300,400], index: 1, kind: input, shape index: {}]
  %s2 = inlined_call_operand.vmem [shape: f32[300,400], index: 2, kind: input, shape index: {}]
  %s3 = inlined_call_operand.vmem [shape: f32[300,400], index: 3, kind: input, shape index: {}]
  %s4 = inlined_call_operand.vmem [shape: f32[1,400], index: 4, kind: input, shape index: {}]
  %s5 = inlined_call_operand.vmem [shape: f32[400,400], index: 5, kind: input, shape index: {}]
  %s6 = inlined_call_operand.vmem [shape: f32[1,400], index: 6, kind: input, shape index: {}]
  %s7 = inlined_call_operand.vmem [shape: f32[400,416], index: 7, kind: input, shape index: {}]
  %s8 = inlined_call_operand.vmem [shape: f32[1,416], index: 8, kind: input, shape index: {}]
  %s9 = inlined_call_operand.vmem [shape: f32[416,256], index: 9, kind: input, shape index: {}]
  %s10 = inlined_call_operand.vmem [shape: f32[1,256], index: 10, kind: input, shape index: {}]
  %s11 = inlined_call_operand.vmem [shape: f32[256,200], index: 11, kind: input, shape index: {}]
  %s12 = inlined_call_operand.vmem [shape: f32[1,200], index: 12, kind: input, shape index: {}]
  %s13 = inlined_call_operand.vmem [shape: f32[1,200], index: 13, kind: input, shape index: {}]
  %s14 = inlined_call_operand.<no memory space> [shape: f32[1,1], index: 14, kind: input, shape index: {}]
  %s15 = inlined_call_operand.vmem [shape: f32[8,1], index: 15, kind: output, shape index: {}]
  %s16 = sld [smem:[#allocation0]]
  $region70: #{aoa_cnn_forward.1} parent=0
    _
  %s18 = ssub.s32 1, %s16
  %s19 = scalar_select 0, %s18, %s16
  %v20 = vstv %s14
  %21 = vst [vmem:[#allocation2] sm:$0x1] %v20
  // Predicated region
  $region2: #{aoa_cnn_forward.1} parent=0 // pred_check
    _
  $region3: #{aoa_cnn_forward.1} parent=0 // pred_check_branch
    %23 = sbr.rel (0) target = $region5
  $region4: #{aoa_cnn_forward.1} parent=0 // pred_region
    _
  $region5: #{aoa_cnn_forward.1} parent=0 // pred_fallthru
    _
  // Predicated region
  $region6: #{aoa_cnn_forward.1} parent=0 // pred_check
    _
  $region7: #{aoa_cnn_forward.1} parent=0 // pred_check_branch
    %25 = sbr.rel (0) target = $region9
  $region8: #{aoa_cnn_forward.1} parent=0 // pred_region
    _
  $region9: #{aoa_cnn_forward.1} parent=0 // pred_fallthru
    _
  // Predicated region
  $region10: #{aoa_cnn_forward.1} parent=0 // pred_check
    _
  $region11: #{aoa_cnn_forward.1} parent=0 // pred_check_branch
    %27 = sbr.rel (0) target = $region13
  $region12: #{aoa_cnn_forward.1} parent=0 // pred_region
    _
  $region13: #{aoa_cnn_forward.1} parent=0 // pred_fallthru
    _
  // Predicated region
  $region14: #{aoa_cnn_forward.1} parent=0 // pred_check
    _
  $region15: #{aoa_cnn_forward.1} parent=0 // pred_check_branch
    %29 = sbr.rel (0) target = $region17
  $region16: #{aoa_cnn_forward.1} parent=0 // pred_region
    _
  $region17: #{aoa_cnn_forward.1} parent=0 // pred_fallthru
    _
  // Predicated region
  $region18: #{aoa_cnn_forward.1} parent=0 // pred_check
    _
  $region19: #{aoa_cnn_forward.1} parent=0 // pred_check_branch
    %31 = sbr.rel (0) target = $region21
  $region20: #{aoa_cnn_forward.1} parent=0 // pred_region
    _
  $region21: #{aoa_cnn_forward.1} parent=0 // pred_fallthru
    _
  // Predicated region
  $region22: #{aoa_cnn_forward.1} parent=0 // pred_check
    _
  $region23: #{aoa_cnn_forward.1} parent=0 // pred_check_branch
    %33 = sbr.rel (0) target = $region25
  $region24: #{aoa_cnn_forward.1} parent=0 // pred_region
    _
  $region25: #{aoa_cnn_forward.1} parent=0 // pred_fallthru
    _
  // Predicated region
  $region26: #{aoa_cnn_forward.1} parent=0 // pred_check
    _
  $region27: #{aoa_cnn_forward.1} parent=0 // pred_check_branch
    %35 = sbr.rel (0) target = $region29
  $region28: #{aoa_cnn_forward.1} parent=0 // pred_region
    _
  $region29: #{aoa_cnn_forward.1} parent=0 // pred_fallthru
    _
  // Predicated region
  $region30: #{aoa_cnn_forward.1} parent=0 // pred_check
    _
  $region31: #{aoa_cnn_forward.1} parent=0 // pred_check_branch
    %37 = sbr.rel (0) target = $region33
  $region32: #{aoa_cnn_forward.1} parent=0 // pred_region
    _
  $region33: #{aoa_cnn_forward.1} parent=0 // pred_fallthru
    _
  // Predicated region
  $region34: #{aoa_cnn_forward.1} parent=0 // pred_check
    _
  $region35: #{aoa_cnn_forward.1} parent=0 // pred_check_branch
    %39 = sbr.rel (0) target = $region37
  $region36: #{aoa_cnn_forward.1} parent=0 // pred_region
    _
  $region37: #{aoa_cnn_forward.1} parent=0 // pred_fallthru
    _
  // Predicated region
  $region38: #{aoa_cnn_forward.1} parent=0 // pred_check
    _
  $region39: #{aoa_cnn_forward.1} parent=0 // pred_check_branch
    %41 = sbr.rel (0) target = $region41
  $region40: #{aoa_cnn_forward.1} parent=0 // pred_region
    _
  $region41: #{aoa_cnn_forward.1} parent=0 // pred_fallthru
    _
  // Predicated region
  $region42: #{aoa_cnn_forward.1} parent=0 // pred_check
    _
  $region43: #{aoa_cnn_forward.1} parent=0 // pred_check_branch
    %43 = sbr.rel (0) target = $region45
  $region44: #{aoa_cnn_forward.1} parent=0 // pred_region
    _
  $region45: #{aoa_cnn_forward.1} parent=0 // pred_fallthru
    _
  // Predicated region
  $region46: #{aoa_cnn_forward.1} parent=0 // pred_check
    _
  $region47: #{aoa_cnn_forward.1} parent=0 // pred_check_branch
    %45 = sbr.rel (0) target = $region49
  $region48: #{aoa_cnn_forward.1} parent=0 // pred_region
    _
  $region49: #{aoa_cnn_forward.1} parent=0 // pred_fallthru
    _
  // Predicated region
  $region50: #{aoa_cnn_forward.1} parent=0 // pred_check
    _
  $region51: #{aoa_cnn_forward.1} parent=0 // pred_check_branch
    %47 = sbr.rel (0) target = $region53
  $region52: #{aoa_cnn_forward.1} parent=0 // pred_region
    _
  $region53: #{aoa_cnn_forward.1} parent=0 // pred_fallthru
    _
  // Predicated region
  $region54: #{aoa_cnn_forward.1} parent=0 // pred_check
    _
  $region55: #{aoa_cnn_forward.1} parent=0 // pred_check_branch
    %49 = sbr.rel (0) target = $region57
  $region56: #{aoa_cnn_forward.1} parent=0 // pred_region
    _
  $region57: #{aoa_cnn_forward.1} parent=0 // pred_fallthru
    _
  // Predicated region
  $region58: #{aoa_cnn_forward.1} parent=0 // pred_check
    _
  $region59: #{aoa_cnn_forward.1} parent=0 // pred_check_branch
    %51 = sbr.rel (0) target = $region61
  $region60: #{aoa_cnn_forward.1} parent=0 // pred_region
    _
  $region61: #{aoa_cnn_forward.1} parent=0 // pred_fallthru
    _
  %v52 = vld [vmem:[%s0] sm:$0xff]
  %v53 = vld [vmem:[%s0 + $0x8] sm:$0xff]
  %v54 = vld [vmem:[%s0 + $0x10] sm:$0xff]
  %v55 = vld [vmem:[%s1] sm:$0xff]
  %v56 = vld [vmem:[%s1 + $0x8] sm:$0xff]
  %v57 = vld [vmem:[%s1 + $0x10] sm:$0xff]
  %v58 = vld [vmem:[%s1 + $0x18] sm:$0xff]
  %v59 = vld [vmem:[%s1 + $0x20] sm:$0xff]
  %v60 = vld [vmem:[%s1 + $0x28] sm:$0xff]
  %v61 = vld [vmem:[%s1 + $0x30] sm:$0xff]
  %v62 = vld [vmem:[%s1 + $0x38] sm:$0xff]
  %v63 = vld [vmem:[%s1 + $0x40] sm:$0xff]
  %v64 = vld [vmem:[%s1 + $0x48] sm:$0xff]
  %v65 = vld [vmem:[%s1 + $0x50] sm:$0xff]
  %v66 = vld [vmem:[%s1 + $0x58] sm:$0xff]
  %v67 = vld [vmem:[%s1 + $0x60] sm:$0xff]
  %v68 = vld [vmem:[%s1 + $0x68] sm:$0xff]
  %v69 = vld [vmem:[%s1 + $0x70] sm:$0xff]
  %v70 = vld [vmem:[%s1 + $0x78] sm:$0xff]
  %v71 = vld [vmem:[%s1 + $0x80] sm:$0xff]
  %v72 = vld [vmem:[%s1 + $0x88] sm:$0xff]
  %v73 = vld [vmem:[%s1 + $0x90] sm:$0xff]
  %v74 = vld [vmem:[%s1 + $0x98] sm:$0xff]
  %v75 = vld [vmem:[%s1 + $0xa0] sm:$0xff]
  %v76 = vld [vmem:[%s1 + $0xa8] sm:$0xff]
  %v77 = vld [vmem:[%s1 + $0xb0] sm:$0xff]
  %v78 = vld [vmem:[%s1 + $0xb8] sm:$0xff]
  %v79 = vld [vmem:[%s1 + $0xc0] sm:$0xff]
  %v80 = vld [vmem:[%s1 + $0xc8] sm:$0xff]
  %v81 = vld [vmem:[%s1 + $0xd0] sm:$0xff]
  %v82 = vld [vmem:[%s1 + $0xd8] sm:$0xff]
  %v83 = vld [vmem:[%s1 + $0xe0] sm:$0xff]
  %v84 = vld [vmem:[%s1 + $0xe8] sm:$0xff]
  %v85 = vld [vmem:[%s1 + $0xf0] sm:$0xff]
  %v86 = vld [vmem:[%s1 + $0xf8] sm:$0xff]
  %v87 = vld [vmem:[%s1 + $0x100] sm:$0xff]
  %v88 = vld [vmem:[%s1 + $0x108] sm:$0xff]
  %v89 = vld [vmem:[%s1 + $0x110] sm:$0xff]
  %v90 = vld [vmem:[%s1 + $0x118] sm:$0xff]
  %v91 = vld [vmem:[%s1 + $0x120] sm:$0xff]
  %v92 = vld [vmem:[%s1 + $0x128] sm:$0xff]
  %v93 = vld [vmem:[%s1 + $0x130] sm:$0xff]
  %v94 = vld [vmem:[%s1 + $0x138] sm:$0xff]
  %v95 = vld [vmem:[%s1 + $0x140] sm:$0xff]
  %v96 = vld [vmem:[%s1 + $0x148] sm:$0xff]
  %v97 = vld [vmem:[%s1 + $0x150] sm:$0xff]
  %v98 = vld [vmem:[%s1 + $0x158] sm:$0xff]
  %v99 = vld [vmem:[%s1 + $0x160] sm:$0xff]
  %v100 = vld [vmem:[%s1 + $0x168] sm:$0xff]
  %v101 = vld [vmem:[%s1 + $0x170] sm:$0xff]
  %v102 = vld [vmem:[%s1 + $0x178] sm:$0xff]
  %v103 = vld [vmem:[%s1 + $0x180] sm:$0xff]
  %v104 = vld [vmem:[%s1 + $0x188] sm:$0xff]
  %v105 = vld [vmem:[%s1 + $0x190] sm:$0xff]
  %v106 = vld [vmem:[%s1 + $0x198] sm:$0xff]
  %v107 = vld [vmem:[%s1 + $0x1a0] sm:$0xff]
  %v108 = vld [vmem:[%s1 + $0x1a8] sm:$0xff]
  %v109 = vld [vmem:[%s1 + $0x1b0] sm:$0xff]
  %v110 = vld [vmem:[%s1 + $0x1b8] sm:$0xff]
  %v111 = vld [vmem:[%s1 + $0x1c0] sm:$0xff]
  %v112 = vld [vmem:[%s1 + $0x1c8] sm:$0xff]
  %v113 = vld [vmem:[%s1 + $0x1d0] sm:$0xff]
  %v114 = vld [vmem:[%s1 + $0x1d8] sm:$0xff]
  %v115 = vld [vmem:[%s1 + $0x1e0] sm:$0xff]
  %v116 = vld [vmem:[%s1 + $0x1e8] sm:$0xff]
  %v117 = vld [vmem:[%s1 + $0x1f0] sm:$0xff]
  %v118 = vld [vmem:[%s1 + $0x1f8] sm:$0xff]
  %v119 = vld [vmem:[%s1 + $0x200] sm:$0xff]
  %v120 = vld [vmem:[%s1 + $0x208] sm:$0xff]
  %v121 = vld [vmem:[%s1 + $0x210] sm:$0xff]
  %v122 = vld [vmem:[%s1 + $0x218] sm:$0xff]
  %v123 = vld [vmem:[%s1 + $0x220] sm:$0xff]
  %v124 = vld [vmem:[%s1 + $0x228] sm:$0xff]
  %v125 = vld [vmem:[%s1 + $0x230] sm:$0xff]
  %v126 = vld [vmem:[%s1 + $0x238] sm:$0xff]
  %v127 = vld [vmem:[%s1 + $0x240] sm:$0xff]
  %v128 = vld [vmem:[%s1 + $0x248] sm:$0xff]
  %v129 = vld [vmem:[%s1 + $0x250] sm:$0xff]
  %v130 = vld [vmem:[%s1 + $0x258] sm:$0xff]
  %v131 = vld [vmem:[%s1 + $0x260] sm:$0xff]
  %v132 = vld [vmem:[%s1 + $0x268] sm:$0xff]
  %v133 = vld [vmem:[%s1 + $0x270] sm:$0xff]
  %v134 = vld [vmem:[%s1 + $0x278] sm:$0xff]
  %v135 = vld [vmem:[%s1 + $0x280] sm:$0xff]
  %v136 = vld [vmem:[%s1 + $0x288] sm:$0xff]
  %v137 = vld [vmem:[%s1 + $0x290] sm:$0xff]
  %v138 = vld [vmem:[%s1 + $0x298] sm:$0xff]
  %v139 = vld [vmem:[%s1 + $0x2a0] sm:$0xff]
  %v140 = vld [vmem:[%s1 + $0x2a8] sm:$0xff]
  %v141 = vld [vmem:[%s1 + $0x2b0] sm:$0xff]
  %v142 = vld [vmem:[%s1 + $0x2b8] sm:$0xff]
  %v143 = vld [vmem:[%s1 + $0x2c0] sm:$0xff]
  %v144 = vld [vmem:[%s1 + $0x2c8] sm:$0xff]
  %v145 = vld [vmem:[%s1 + $0x2d0] sm:$0xff]
  %v146 = vld [vmem:[%s1 + $0x2d8] sm:$0xff]
  %v147 = vld [vmem:[%s1 + $0x2e0] sm:$0xff]
  %v148 = vld [vmem:[%s1 + $0x2e8] sm:$0xff]
  %v149 = vld [vmem:[%s1 + $0x2f0] sm:$0xff]
  %v150 = vld [vmem:[%s1 + $0x2f8] sm:$0xff]
  %v151 = vld [vmem:[%s1 + $0x300] sm:$0xff]
  %v152 = vld [vmem:[%s1 + $0x308] sm:$0xff]
  %v153 = vld [vmem:[%s1 + $0x310] sm:$0xff]
  %v154 = vld [vmem:[%s1 + $0x318] sm:$0xff]
  %v155 = vld [vmem:[%s1 + $0x320] sm:$0xff]
  %v156 = vld [vmem:[%s1 + $0x328] sm:$0xff]
  %v157 = vld [vmem:[%s1 + $0x330] sm:$0xff]
  %v158 = vld [vmem:[%s1 + $0x338] sm:$0xff]
  %v159 = vld [vmem:[%s1 + $0x340] sm:$0xff]
  %v160 = vld [vmem:[%s1 + $0x348] sm:$0xff]
  %v161 = vld [vmem:[%s1 + $0x350] sm:$0xff]
  %v162 = vld [vmem:[%s1 + $0x358] sm:$0xff]
  %v163 = vld [vmem:[%s1 + $0x360] sm:$0xff]
  %v164 = vld [vmem:[%s1 + $0x368] sm:$0xff]
  %v165 = vld [vmem:[%s1 + $0x370] sm:$0xff]
  %v166 = vld [vmem:[%s1 + $0x378] sm:$0xff]
  %v167 = vld [vmem:[%s1 + $0x380] sm:$0xff]
  %v168 = vld [vmem:[%s1 + $0x388] sm:$0xff]
  %v169 = vld [vmem:[%s1 + $0x390] sm:$0xff]
  %v170 = vld [vmem:[%s1 + $0x398] sm:$0xff]
  %v171 = vld [vmem:[%s1 + $0x3a0] sm:$0xff]
  %v172 = vld [vmem:[%s1 + $0x3a8] sm:$0xff]
  %v173 = vld [vmem:[%s1 + $0x3b0] sm:$0xff]
  %v174 = vld [vmem:[%s1 + $0x3b8] sm:$0xff]
  %v175 = vld [vmem:[%s1 + $0x3c0] sm:$0xff]
  %v176 = vld [vmem:[%s1 + $0x3c8] sm:$0xff]
  %v177 = vld [vmem:[%s1 + $0x3d0] sm:$0xff]
  %v178 = vld [vmem:[%s1 + $0x3d8] sm:$0xff]
  %v179 = vld [vmem:[%s1 + $0x3e0] sm:$0xff]
  %v180 = vld [vmem:[%s1 + $0x3e8] sm:$0xff]
  %v181 = vld [vmem:[%s1 + $0x3f0] sm:$0xff]
  %v182 = vld [vmem:[%s1 + $0x3f8] sm:$0xff]
  %v183 = vld [vmem:[%s1 + $0x400] sm:$0xff]
  %v184 = vld [vmem:[%s1 + $0x408] sm:$0xff]
  %v185 = vld [vmem:[%s1 + $0x410] sm:$0xff]
  %v186 = vld [vmem:[%s1 + $0x418] sm:$0xff]
  %v187 = vld [vmem:[%s1 + $0x420] sm:$0xff]
  %v188 = vld [vmem:[%s1 + $0x428] sm:$0xff]
  %v189 = vld [vmem:[%s1 + $0x430] sm:$0xff]
  %v190 = vld [vmem:[%s1 + $0x438] sm:$0xff]
  %v191 = vld [vmem:[%s1 + $0x440] sm:$0xff]
  %v192 = vld [vmem:[%s1 + $0x448] sm:$0xff]
  %v193 = vld [vmem:[%s1 + $0x450] sm:$0xff]
  %v194 = vld [vmem:[%s1 + $0x458] sm:$0xff]
  %v195 = vld [vmem:[%s1 + $0x460] sm:$0xff]
  %v196 = vld [vmem:[%s1 + $0x468] sm:$0xff]
  %v197 = vld [vmem:[%s1 + $0x470] sm:$0xff]
  %v198 = vld [vmem:[%s1 + $0x478] sm:$0xff]
  %v199 = vld [vmem:[%s1 + $0x480] sm:$0xff]
  %v200 = vld [vmem:[%s1 + $0x488] sm:$0xff]
  %v201 = vld [vmem:[%s1 + $0x490] sm:$0xff]
  %v202 = vld [vmem:[%s1 + $0x498] sm:$0xff]
  %v203 = vld [vmem:[%s1 + $0x4a0] sm:$0xf]
  %v204 = vld [vmem:[%s1 + $0x4a8] sm:$0xf]
  %v205 = vld [vmem:[%s1 + $0x4b0] sm:$0xf]
  %v206 = vld [vmem:[%s1 + $0x4b8] sm:$0xf]
  %vm207 = vcmask 359424
  %v209 = vsel %vm207, %v54, 0
  %vm211 = vcmask 1043456
  %v213 = vsel %vm211, %v203, 0
  %v216 = vsel %vm211, %v204, 0
  %v219 = vsel %vm211, %v205, 0
  %v222 = vsel %vm211, %v206, 0
  %224 = vmatprep.subr.mxu0 %v116
  %225 = vmatpush1.msra.mxu0 %v115
  %226 = vmatprep.subr.mxu0 %v112
  %227 = vmatpush1.msra.mxu0 %v111
  %228 = vmatprep.subr.mxu0 %v108
  %229 = vmatpush1.msra.mxu0 %v107
  %230 = vmatprep.subr.mxu0 %v104
  %231 = vmatpush1.msra.mxu0 %v103
  %232 = vmatprep.subr.mxu0 %v100
  %233 = vmatpush1.msra.mxu0 %v99
  %234 = vmatprep.subr.mxu0 %v96
  %235 = vmatpush1.msra.mxu0 %v95
  %236 = vmatprep.subr.mxu0 %v92
  %237 = vmatpush1.msra.mxu0 %v91
  %238 = vmatprep.subr.mxu0 %v88
  %239 = vmatpush1.msra.mxu0 %v87
  %240 = vmatprep.subr.mxu0 %v84
  %241 = vmatpush1.msra.mxu0 %v83
  %242 = vmatprep.subr.mxu0 %v80
  %243 = vmatpush1.msra.mxu0 %v79
  %244 = vmatprep.subr.mxu0 %v76
  %245 = vmatpush1.msra.mxu0 %v75
  %246 = vmatprep.subr.mxu0 %v72
  %247 = vmatpush1.msra.mxu0 %v71
  %248 = vmatprep.subr.mxu0 %v68
  %249 = vmatpush1.msra.mxu0 %v67
  %250 = vmatprep.subr.mxu0 %v64
  %251 = vmatpush1.msra.mxu0 %v63
  %252 = vmatprep.subr.mxu0 %v60
  %253 = vmatpush1.msra.mxu0 %v59
  %254 = vmatprep.subr.mxu0 %v56
  %255 = vmatpush1.msra.mxu0 %v55
  %256 = vmatprep.subr.mxu0 %v180
  %257 = vmatpush2.msra.mxu0 %v179
  %258 = vmatprep.subr.mxu0 %v176
  %259 = vmatpush2.msra.mxu0 %v175
  %260 = vmatprep.subr.mxu0 %v172
  %261 = vmatpush2.msra.mxu0 %v171
  %262 = vmatprep.subr.mxu0 %v168
  %263 = vmatpush2.msra.mxu0 %v167
  %264 = vmatprep.subr.mxu0 %v164
  %265 = vmatpush2.msra.mxu0 %v163
  %266 = vmatprep.subr.mxu0 %v160
  %267 = vmatpush2.msra.mxu0 %v159
  %268 = vmatprep.subr.mxu0 %v156
  %269 = vmatpush2.msra.mxu0 %v155
  %270 = vmatprep.subr.mxu0 %v152
  %271 = vmatpush2.msra.mxu0 %v151
  %272 = vmatprep.subr.mxu0 %v148
  %273 = vmatpush2.msra.mxu0 %v147
  %274 = vmatprep.subr.mxu0 %v144
  %275 = vmatpush2.msra.mxu0 %v143
  %276 = vmatprep.subr.mxu0 %v140
  %277 = vmatpush2.msra.mxu0 %v139
  %278 = vmatprep.subr.mxu0 %v136
  %279 = vmatpush2.msra.mxu0 %v135
  %280 = vmatprep.subr.mxu0 %v132
  %281 = vmatpush2.msra.mxu0 %v131
  %282 = vmatprep.subr.mxu0 %v128
  %283 = vmatpush2.msra.mxu0 %v127
  %284 = vmatprep.subr.mxu0 %v124
  %285 = vmatpush2.msra.mxu0 %v123
  %286 = vmatprep.subr.mxu0 %v120
  %287 = vmatpush2.msra.mxu0 %v119
  %288 = vmatprep.mubr.f32.mxu0 %v53
  %289 = vmatmul.mubr.f32.gmra.mxu0 %v52
  %v290 = vpop.f32.mrf.mxu0
  %v291 = vadd.f32 0.0, %v290
  %v292 = vpop.f32.mrf.mxu0
  %v293 = vadd.f32 0.0, %v292
  %294 = vdwg.mxu0
  %295 = vmatprep.subr.mxu0 0.0
  %296 = vmatpush1.msra.mxu0 0.0
  %297 = vmatprep.subr.mxu0 0.0
  %298 = vmatpush1.msra.mxu0 0.0
  %299 = vmatprep.subr.mxu0 0.0
  %300 = vmatpush1.msra.mxu0 0.0
  %301 = vmatprep.subr.mxu0 0.0
  %302 = vmatpush1.msra.mxu0 0.0
  %303 = vmatprep.subr.mxu0 0.0
  %304 = vmatpush1.msra.mxu0 0.0
  %305 = vmatprep.subr.mxu0 0.0
  %306 = vmatpush1.msra.mxu0 0.0
  %307 = vmatprep.subr.mxu0 0.0
  %308 = vmatpush1.msra.mxu0 0.0
  %309 = vmatprep.subr.mxu0 0.0
  %310 = vmatpush1.msra.mxu0 0.0
  %311 = vmatprep.subr.mxu0 0.0
  %312 = vmatpush1.msra.mxu0 0.0
  %313 = vmatprep.subr.mxu0 0.0
  %314 = vmatpush1.msra.mxu0 0.0
  %315 = vmatprep.subr.mxu0 %v216
  %316 = vmatpush1.msra.mxu0 %v213
  %317 = vmatprep.subr.mxu0 %v200
  %318 = vmatpush1.msra.mxu0 %v199
  %319 = vmatprep.subr.mxu0 %v196
  %320 = vmatpush1.msra.mxu0 %v195
  %321 = vmatprep.subr.mxu0 %v192
  %322 = vmatpush1.msra.mxu0 %v191
  %323 = vmatprep.subr.mxu0 %v188
  %324 = vmatpush1.msra.mxu0 %v187
  %325 = vmatprep.subr.mxu0 %v184
  %326 = vmatpush1.msra.mxu0 %v183
  %327 = vmatprep.subr.mxu0 0.0
  %328 = vmatpush2.msra.mxu0 0.0
  %329 = vmatprep.subr.mxu0 0.0
  %330 = vmatpush2.msra.mxu0 0.0
  %331 = vmatprep.subr.mxu0 0.0
  %332 = vmatpush2.msra.mxu0 0.0
  %333 = vmatprep.subr.mxu0 0.0
  %334 = vmatpush2.msra.mxu0 0.0
  %335 = vmatprep.subr.mxu0 0.0
  %336 = vmatpush2.msra.mxu0 0.0
  %337 = vmatprep.subr.mxu0 0.0
  %338 = vmatpush2.msra.mxu0 0.0
  %339 = vmatprep.subr.mxu0 0.0
  %340 = vmatpush2.msra.mxu0 0.0
  %341 = vmatprep.subr.mxu0 0.0
  %342 = vmatpush2.msra.mxu0 0.0
  %343 = vmatprep.subr.mxu0 0.0
  %344 = vmatpush2.msra.mxu0 0.0
  %345 = vmatprep.subr.mxu0 0.0
  %346 = vmatpush2.msra.mxu0 0.0
  %347 = vmatprep.subr.mxu0 0.0
  %348 = vmatpush2.msra.mxu0 0.0
  %349 = vmatprep.subr.mxu0 0.0
  %350 = vmatpush2.msra.mxu0 0.0
  %351 = vmatprep.subr.mxu0 0.0
  %352 = vmatpush2.msra.mxu0 0.0
  %353 = vmatprep.subr.mxu0 0.0
  %354 = vmatpush2.msra.mxu0 0.0
  %355 = vmatprep.subr.mxu0 0.0
  %356 = vmatpush2.msra.mxu0 0.0
  %357 = vmatprep.subr.mxu0 0.0
  %358 = vmatpush2.msra.mxu0 0.0
  %359 = vmatprep.mubr.f32.mxu0 0.0
  %360 = vmatmul.mubr.f32.gmra.mxu0 %v209
  %v361 = vpop.f32.mrf.mxu0
  %v362 = vadd.f32 %v291, %v361
  %v363 = vpop.f32.mrf.mxu0
  %v364 = vadd.f32 %v293, %v363
  %365 = vdwg.mxu0
  %366 = vmatprep.subr.mxu0 %v118
  %367 = vmatpush1.msra.mxu0 %v117
  %368 = vmatprep.subr.mxu0 %v114
  %369 = vmatpush1.msra.mxu0 %v113
  %370 = vmatprep.subr.mxu0 %v110
  %371 = vmatpush1.msra.mxu0 %v109
  %372 = vmatprep.subr.mxu0 %v106
  %373 = vmatpush1.msra.mxu0 %v105
  %374 = vmatprep.subr.mxu0 %v102
  %375 = vmatpush1.msra.mxu0 %v101
  %376 = vmatprep.subr.mxu0 %v98
  %377 = vmatpush1.msra.mxu0 %v97
  %378 = vmatprep.subr.mxu0 %v94
  %379 = vmatpush1.msra.mxu0 %v93
  %380 = vmatprep.subr.mxu0 %v90
  %381 = vmatpush1.msra.mxu0 %v89
  %382 = vmatprep.subr.mxu0 %v86
  %383 = vmatpush1.msra.mxu0 %v85
  %384 = vmatprep.subr.mxu0 %v82
  %385 = vmatpush1.msra.mxu0 %v81
  %386 = vmatprep.subr.mxu0 %v78
  %387 = vmatpush1.msra.mxu0 %v77
  %388 = vmatprep.subr.mxu0 %v74
  %389 = vmatpush1.msra.mxu0 %v73
  %390 = vmatprep.subr.mxu0 %v70
  %391 = vmatpush1.msra.mxu0 %v69
  %392 = vmatprep.subr.mxu0 %v66
  %393 = vmatpush1.msra.mxu0 %v65
  %394 = vmatprep.subr.mxu0 %v62
  %395 = vmatpush1.msra.mxu0 %v61
  %396 = vmatprep.subr.mxu0 %v58
  %397 = vmatpush1.msra.mxu0 %v57
  %398 = vmatprep.subr.mxu0 %v182
  %399 = vmatpush2.msra.mxu0 %v181
  %400 = vmatprep.subr.mxu0 %v178
  %401 = vmatpush2.msra.mxu0 %v177
  %402 = vmatprep.subr.mxu0 %v174
  %403 = vmatpush2.msra.mxu0 %v173
  %404 = vmatprep.subr.mxu0 %v170
  %405 = vmatpush2.msra.mxu0 %v169
  %406 = vmatprep.subr.mxu0 %v166
  %407 = vmatpush2.msra.mxu0 %v165
  %408 = vmatprep.subr.mxu0 %v162
  %409 = vmatpush2.msra.mxu0 %v161
  %410 = vmatprep.subr.mxu0 %v158
  %411 = vmatpush2.msra.mxu0 %v157
  %412 = vmatprep.subr.mxu0 %v154
  %413 = vmatpush2.msra.mxu0 %v153
  %414 = vmatprep.subr.mxu0 %v150
  %415 = vmatpush2.msra.mxu0 %v149
  %416 = vmatprep.subr.mxu0 %v146
  %417 = vmatpush2.msra.mxu0 %v145
  %418 = vmatprep.subr.mxu0 %v142
  %419 = vmatpush2.msra.mxu0 %v141
  %420 = vmatprep.subr.mxu0 %v138
  %421 = vmatpush2.msra.mxu0 %v137
  %422 = vmatprep.subr.mxu0 %v134
  %423 = vmatpush2.msra.mxu0 %v133
  %424 = vmatprep.subr.mxu0 %v130
  %425 = vmatpush2.msra.mxu0 %v129
  %426 = vmatprep.subr.mxu0 %v126
  %427 = vmatpush2.msra.mxu0 %v125
  %428 = vmatprep.subr.mxu0 %v122
  %429 = vmatpush2.msra.mxu0 %v121
  %430 = vmatprep.mubr.f32.mxu0 %v53
  %431 = vmatmul.mubr.f32.gmra.mxu0 %v52
  %v432 = vpop.f32.mrf.mxu0
  %v433 = vadd.f32 0.0, %v432
  %v434 = vpop.f32.mrf.mxu0
  %v435 = vadd.f32 0.0, %v434
  %436 = vdwg.mxu0
  %437 = vmatprep.subr.mxu0 0.0
  %438 = vmatpush1.msra.mxu0 0.0
  %439 = vmatprep.subr.mxu0 0.0
  %440 = vmatpush1.msra.mxu0 0.0
  %441 = vmatprep.subr.mxu0 0.0
  %442 = vmatpush1.msra.mxu0 0.0
  %443 = vmatprep.subr.mxu0 0.0
  %444 = vmatpush1.msra.mxu0 0.0
  %445 = vmatprep.subr.mxu0 0.0
  %446 = vmatpush1.msra.mxu0 0.0
  %447 = vmatprep.subr.mxu0 0.0
  %448 = vmatpush1.msra.mxu0 0.0
  %449 = vmatprep.subr.mxu0 0.0
  %450 = vmatpush1.msra.mxu0 0.0
  %451 = vmatprep.subr.mxu0 0.0
  %452 = vmatpush1.msra.mxu0 0.0
  %453 = vmatprep.subr.mxu0 0.0
  %454 = vmatpush1.msra.mxu0 0.0
  %455 = vmatprep.subr.mxu0 0.0
  %456 = vmatpush1.msra.mxu0 0.0
  %457 = vmatprep.subr.mxu0 %v222
  %458 = vmatpush1.msra.mxu0 %v219
  %459 = vmatprep.subr.mxu0 %v202
  %460 = vmatpush1.msra.mxu0 %v201
  %461 = vmatprep.subr.mxu0 %v198
  %462 = vmatpush1.msra.mxu0 %v197
  %463 = vmatprep.subr.mxu0 %v194
  %464 = vmatpush1.msra.mxu0 %v193
  %465 = vmatprep.subr.mxu0 %v190
  %466 = vmatpush1.msra.mxu0 %v189
  %467 = vmatprep.subr.mxu0 %v186
  %468 = vmatpush1.msra.mxu0 %v185
  %469 = vmatprep.subr.mxu0 0.0
  %470 = vmatpush2.msra.mxu0 0.0
  %471 = vmatprep.subr.mxu0 0.0
  %472 = vmatpush2.msra.mxu0 0.0
  %473 = vmatprep.subr.mxu0 0.0
  %474 = vmatpush2.msra.mxu0 0.0
  %475 = vmatprep.subr.mxu0 0.0
  %476 = vmatpush2.msra.mxu0 0.0
  %477 = vmatprep.subr.mxu0 0.0
  %478 = vmatpush2.msra.mxu0 0.0
  %479 = vmatprep.subr.mxu0 0.0
  %480 = vmatpush2.msra.mxu0 0.0
  %481 = vmatprep.subr.mxu0 0.0
  %482 = vmatpush2.msra.mxu0 0.0
  %483 = vmatprep.subr.mxu0 0.0
  %484 = vmatpush2.msra.mxu0 0.0
  %485 = vmatprep.subr.mxu0 0.0
  %486 = vmatpush2.msra.mxu0 0.0
  %487 = vmatprep.subr.mxu0 0.0
  %488 = vmatpush2.msra.mxu0 0.0
  %489 = vmatprep.subr.mxu0 0.0
  %490 = vmatpush2.msra.mxu0 0.0
  %491 = vmatprep.subr.mxu0 0.0
  %492 = vmatpush2.msra.mxu0 0.0
  %493 = vmatprep.subr.mxu0 0.0
  %494 = vmatpush2.msra.mxu0 0.0
  %495 = vmatprep.subr.mxu0 0.0
  %496 = vmatpush2.msra.mxu0 0.0
  %497 = vmatprep.subr.mxu0 0.0
  %498 = vmatpush2.msra.mxu0 0.0
  %499 = vmatprep.subr.mxu0 0.0
  %500 = vmatpush2.msra.mxu0 0.0
  %501 = vmatprep.mubr.f32.mxu0 0.0
  %502 = vmatmul.mubr.f32.gmra.mxu0 %v209
  %v503 = vpop.f32.mrf.mxu0
  %v504 = vadd.f32 %v433, %v503
  %v505 = vpop.f32.mrf.mxu0
  %v506 = vadd.f32 %v435, %v505
  %507 = vdwg.mxu0
  %v508 = vld [vmem:[%s2] sm:$0xff]
  %v509 = vld [vmem:[%s2 + $0x8] sm:$0xff]
  %v510 = vld [vmem:[%s2 + $0x10] sm:$0xff]
  %v511 = vld [vmem:[%s2 + $0x18] sm:$0xff]
  %v512 = vld [vmem:[%s2 + $0x20] sm:$0xff]
  %v513 = vld [vmem:[%s2 + $0x28] sm:$0xff]
  %v514 = vld [vmem:[%s2 + $0x30] sm:$0xff]
  %v515 = vld [vmem:[%s2 + $0x38] sm:$0xff]
  %v516 = vld [vmem:[%s2 + $0x40] sm:$0xff]
  %v517 = vld [vmem:[%s2 + $0x48] sm:$0xff]
  %v518 = vld [vmem:[%s2 + $0x50] sm:$0xff]
  %v519 = vld [vmem:[%s2 + $0x58] sm:$0xff]
  %v520 = vld [vmem:[%s2 + $0x60] sm:$0xff]
  %v521 = vld [vmem:[%s2 + $0x68] sm:$0xff]
  %v522 = vld [vmem:[%s2 + $0x70] sm:$0xff]
  %v523 = vld [vmem:[%s2 + $0x78] sm:$0xff]
  %v524 = vld [vmem:[%s2 + $0x80] sm:$0xff]
  %v525 = vld [vmem:[%s2 + $0x88] sm:$0xff]
  %v526 = vld [vmem:[%s2 + $0x90] sm:$0xff]
  %v527 = vld [vmem:[%s2 + $0x98] sm:$0xff]
  %v528 = vld [vmem:[%s2 + $0xa0] sm:$0xff]
  %v529 = vld [vmem:[%s2 + $0xa8] sm:$0xff]
  %v530 = vld [vmem:[%s2 + $0xb0] sm:$0xff]
  %v531 = vld [vmem:[%s2 + $0xb8] sm:$0xff]
  %v532 = vld [vmem:[%s2 + $0xc0] sm:$0xff]
  %v533 = vld [vmem:[%s2 + $0xc8] sm:$0xff]
  %v534 = vld [vmem:[%s2 + $0xd0] sm:$0xff]
  %v535 = vld [vmem:[%s2 + $0xd8] sm:$0xff]
  %v536 = vld [vmem:[%s2 + $0xe0] sm:$0xff]
  %v537 = vld [vmem:[%s2 + $0xe8] sm:$0xff]
  %v538 = vld [vmem:[%s2 + $0xf0] sm:$0xff]
  %v539 = vld [vmem:[%s2 + $0xf8] sm:$0xff]
  %v540 = vld [vmem:[%s2 + $0x100] sm:$0xff]
  %v541 = vld [vmem:[%s2 + $0x108] sm:$0xff]
  %v542 = vld [vmem:[%s2 + $0x110] sm:$0xff]
  %v543 = vld [vmem:[%s2 + $0x118] sm:$0xff]
  %v544 = vld [vmem:[%s2 + $0x120] sm:$0xff]
  %v545 = vld [vmem:[%s2 + $0x128] sm:$0xff]
  %v546 = vld [vmem:[%s2 + $0x130] sm:$0xff]
  %v547 = vld [vmem:[%s2 + $0x138] sm:$0xff]
  %v548 = vld [vmem:[%s2 + $0x140] sm:$0xff]
  %v549 = vld [vmem:[%s2 + $0x148] sm:$0xff]
  %v550 = vld [vmem:[%s2 + $0x150] sm:$0xff]
  %v551 = vld [vmem:[%s2 + $0x158] sm:$0xff]
  %v552 = vld [vmem:[%s2 + $0x160] sm:$0xff]
  %v553 = vld [vmem:[%s2 + $0x168] sm:$0xff]
  %v554 = vld [vmem:[%s2 + $0x170] sm:$0xff]
  %v555 = vld [vmem:[%s2 + $0x178] sm:$0xff]
  %v556 = vld [vmem:[%s2 + $0x180] sm:$0xff]
  %v557 = vld [vmem:[%s2 + $0x188] sm:$0xff]
  %v558 = vld [vmem:[%s2 + $0x190] sm:$0xff]
  %v559 = vld [vmem:[%s2 + $0x198] sm:$0xff]
  %v560 = vld [vmem:[%s2 + $0x1a0] sm:$0xff]
  %v561 = vld [vmem:[%s2 + $0x1a8] sm:$0xff]
  %v562 = vld [vmem:[%s2 + $0x1b0] sm:$0xff]
  %v563 = vld [vmem:[%s2 + $0x1b8] sm:$0xff]
  %v564 = vld [vmem:[%s2 + $0x1c0] sm:$0xff]
  %v565 = vld [vmem:[%s2 + $0x1c8] sm:$0xff]
  %v566 = vld [vmem:[%s2 + $0x1d0] sm:$0xff]
  %v567 = vld [vmem:[%s2 + $0x1d8] sm:$0xff]
  %v568 = vld [vmem:[%s2 + $0x1e0] sm:$0xff]
  %v569 = vld [vmem:[%s2 + $0x1e8] sm:$0xff]
  %v570 = vld [vmem:[%s2 + $0x1f0] sm:$0xff]
  %v571 = vld [vmem:[%s2 + $0x1f8] sm:$0xff]
  %v572 = vld [vmem:[%s2 + $0x200] sm:$0xff]
  %v573 = vld [vmem:[%s2 + $0x208] sm:$0xff]
  %v574 = vld [vmem:[%s2 + $0x210] sm:$0xff]
  %v575 = vld [vmem:[%s2 + $0x218] sm:$0xff]
  %v576 = vld [vmem:[%s2 + $0x220] sm:$0xff]
  %v577 = vld [vmem:[%s2 + $0x228] sm:$0xff]
  %v578 = vld [vmem:[%s2 + $0x230] sm:$0xff]
  %v579 = vld [vmem:[%s2 + $0x238] sm:$0xff]
  %v580 = vld [vmem:[%s2 + $0x240] sm:$0xff]
  %v581 = vld [vmem:[%s2 + $0x248] sm:$0xff]
  %v582 = vld [vmem:[%s2 + $0x250] sm:$0xff]
  %v583 = vld [vmem:[%s2 + $0x258] sm:$0xff]
  %v584 = vld [vmem:[%s2 + $0x260] sm:$0xff]
  %v585 = vld [vmem:[%s2 + $0x268] sm:$0xff]
  %v586 = vld [vmem:[%s2 + $0x270] sm:$0xff]
  %v587 = vld [vmem:[%s2 + $0x278] sm:$0xff]
  %v588 = vld [vmem:[%s2 + $0x280] sm:$0xff]
  %v589 = vld [vmem:[%s2 + $0x288] sm:$0xff]
  %v590 = vld [vmem:[%s2 + $0x290] sm:$0xff]
  %v591 = vld [vmem:[%s2 + $0x298] sm:$0xff]
  %v592 = vld [vmem:[%s2 + $0x2a0] sm:$0xff]
  %v593 = vld [vmem:[%s2 + $0x2a8] sm:$0xff]
  %v594 = vld [vmem:[%s2 + $0x2b0] sm:$0xff]
  %v595 = vld [vmem:[%s2 + $0x2b8] sm:$0xff]
  %v596 = vld [vmem:[%s2 + $0x2c0] sm:$0xff]
  %v597 = vld [vmem:[%s2 + $0x2c8] sm:$0xff]
  %v598 = vld [vmem:[%s2 + $0x2d0] sm:$0xff]
  %v599 = vld [vmem:[%s2 + $0x2d8] sm:$0xff]
  %v600 = vld [vmem:[%s2 + $0x2e0] sm:$0xff]
  %v601 = vld [vmem:[%s2 + $0x2e8] sm:$0xff]
  %v602 = vld [vmem:[%s2 + $0x2f0] sm:$0xff]
  %v603 = vld [vmem:[%s2 + $0x2f8] sm:$0xff]
  %v604 = vld [vmem:[%s2 + $0x300] sm:$0xff]
  %v605 = vld [vmem:[%s2 + $0x308] sm:$0xff]
  %v606 = vld [vmem:[%s2 + $0x310] sm:$0xff]
  %v607 = vld [vmem:[%s2 + $0x318] sm:$0xff]
  %v608 = vld [vmem:[%s2 + $0x320] sm:$0xff]
  %v609 = vld [vmem:[%s2 + $0x328] sm:$0xff]
  %v610 = vld [vmem:[%s2 + $0x330] sm:$0xff]
  %v611 = vld [vmem:[%s2 + $0x338] sm:$0xff]
  %v612 = vld [vmem:[%s2 + $0x340] sm:$0xff]
  %v613 = vld [vmem:[%s2 + $0x348] sm:$0xff]
  %v614 = vld [vmem:[%s2 + $0x350] sm:$0xff]
  %v615 = vld [vmem:[%s2 + $0x358] sm:$0xff]
  %v616 = vld [vmem:[%s2 + $0x360] sm:$0xff]
  %v617 = vld [vmem:[%s2 + $0x368] sm:$0xff]
  %v618 = vld [vmem:[%s2 + $0x370] sm:$0xff]
  %v619 = vld [vmem:[%s2 + $0x378] sm:$0xff]
  %v620 = vld [vmem:[%s2 + $0x380] sm:$0xff]
  %v621 = vld [vmem:[%s2 + $0x388] sm:$0xff]
  %v622 = vld [vmem:[%s2 + $0x390] sm:$0xff]
  %v623 = vld [vmem:[%s2 + $0x398] sm:$0xff]
  %v624 = vld [vmem:[%s2 + $0x3a0] sm:$0xff]
  %v625 = vld [vmem:[%s2 + $0x3a8] sm:$0xff]
  %v626 = vld [vmem:[%s2 + $0x3b0] sm:$0xff]
  %v627 = vld [vmem:[%s2 + $0x3b8] sm:$0xff]
  %v628 = vld [vmem:[%s2 + $0x3c0] sm:$0xff]
  %v629 = vld [vmem:[%s2 + $0x3c8] sm:$0xff]
  %v630 = vld [vmem:[%s2 + $0x3d0] sm:$0xff]
  %v631 = vld [vmem:[%s2 + $0x3d8] sm:$0xff]
  %v632 = vld [vmem:[%s2 + $0x3e0] sm:$0xff]
  %v633 = vld [vmem:[%s2 + $0x3e8] sm:$0xff]
  %v634 = vld [vmem:[%s2 + $0x3f0] sm:$0xff]
  %v635 = vld [vmem:[%s2 + $0x3f8] sm:$0xff]
  %v636 = vld [vmem:[%s2 + $0x400] sm:$0xff]
  %v637 = vld [vmem:[%s2 + $0x408] sm:$0xff]
  %v638 = vld [vmem:[%s2 + $0x410] sm:$0xff]
  %v639 = vld [vmem:[%s2 + $0x418] sm:$0xff]
  %v640 = vld [vmem:[%s2 + $0x420] sm:$0xff]
  %v641 = vld [vmem:[%s2 + $0x428] sm:$0xff]
  %v642 = vld [vmem:[%s2 + $0x430] sm:$0xff]
  %v643 = vld [vmem:[%s2 + $0x438] sm:$0xff]
  %v644 = vld [vmem:[%s2 + $0x440] sm:$0xff]
  %v645 = vld [vmem:[%s2 + $0x448] sm:$0xff]
  %v646 = vld [vmem:[%s2 + $0x450] sm:$0xff]
  %v647 = vld [vmem:[%s2 + $0x458] sm:$0xff]
  %v648 = vld [vmem:[%s2 + $0x460] sm:$0xff]
  %v649 = vld [vmem:[%s2 + $0x468] sm:$0xff]
  %v650 = vld [vmem:[%s2 + $0x470] sm:$0xff]
  %v651 = vld [vmem:[%s2 + $0x478] sm:$0xff]
  %v652 = vld [vmem:[%s2 + $0x480] sm:$0xff]
  %v653 = vld [vmem:[%s2 + $0x488] sm:$0xff]
  %v654 = vld [vmem:[%s2 + $0x490] sm:$0xff]
  %v655 = vld [vmem:[%s2 + $0x498] sm:$0xff]
  %v656 = vld [vmem:[%s2 + $0x4a0] sm:$0xf]
  %v657 = vld [vmem:[%s2 + $0x4a8] sm:$0xf]
  %v658 = vld [vmem:[%s2 + $0x4b0] sm:$0xf]
  %v659 = vld [vmem:[%s2 + $0x4b8] sm:$0xf]
  %v661 = vsel %vm211, %v656, 0
  %v664 = vsel %vm211, %v657, 0
  %v667 = vsel %vm211, %v658, 0
  %v670 = vsel %vm211, %v659, 0
  %672 = vmatprep.subr.mxu0 %v569
  %673 = vmatpush1.msra.mxu0 %v568
  %674 = vmatprep.subr.mxu0 %v565
  %675 = vmatpush1.msra.mxu0 %v564
  %676 = vmatprep.subr.mxu0 %v561
  %677 = vmatpush1.msra.mxu0 %v560
  %678 = vmatprep.subr.mxu0 %v557
  %679 = vmatpush1.msra.mxu0 %v556
  %680 = vmatprep.subr.mxu0 %v553
  %681 = vmatpush1.msra.mxu0 %v552
  %682 = vmatprep.subr.mxu0 %v549
  %683 = vmatpush1.msra.mxu0 %v548
  %684 = vmatprep.subr.mxu0 %v545
  %685 = vmatpush1.msra.mxu0 %v544
  %686 = vmatprep.subr.mxu0 %v541
  %687 = vmatpush1.msra.mxu0 %v540
  %688 = vmatprep.subr.mxu0 %v537
  %689 = vmatpush1.msra.mxu0 %v536
  %690 = vmatprep.subr.mxu0 %v533
  %691 = vmatpush1.msra.mxu0 %v532
  %692 = vmatprep.subr.mxu0 %v529
  %693 = vmatpush1.msra.mxu0 %v528
  %694 = vmatprep.subr.mxu0 %v525
  %695 = vmatpush1.msra.mxu0 %v524
  %696 = vmatprep.subr.mxu0 %v521
  %697 = vmatpush1.msra.mxu0 %v520
  %698 = vmatprep.subr.mxu0 %v517
  %699 = vmatpush1.msra.mxu0 %v516
  %700 = vmatprep.subr.mxu0 %v513
  %701 = vmatpush1.msra.mxu0 %v512
  %702 = vmatprep.subr.mxu0 %v509
  %703 = vmatpush1.msra.mxu0 %v508
  %704 = vmatprep.subr.mxu0 %v633
  %705 = vmatpush2.msra.mxu0 %v632
  %706 = vmatprep.subr.mxu0 %v629
  %707 = vmatpush2.msra.mxu0 %v628
  %708 = vmatprep.subr.mxu0 %v625
  %709 = vmatpush2.msra.mxu0 %v624
  %710 = vmatprep.subr.mxu0 %v621
  %711 = vmatpush2.msra.mxu0 %v620
  %712 = vmatprep.subr.mxu0 %v617
  %713 = vmatpush2.msra.mxu0 %v616
  %714 = vmatprep.subr.mxu0 %v613
  %715 = vmatpush2.msra.mxu0 %v612
  %716 = vmatprep.subr.mxu0 %v609
  %717 = vmatpush2.msra.mxu0 %v608
  %718 = vmatprep.subr.mxu0 %v605
  %719 = vmatpush2.msra.mxu0 %v604
  %720 = vmatprep.subr.mxu0 %v601
  %721 = vmatpush2.msra.mxu0 %v600
  %722 = vmatprep.subr.mxu0 %v597
  %723 = vmatpush2.msra.mxu0 %v596
  %724 = vmatprep.subr.mxu0 %v593
  %725 = vmatpush2.msra.mxu0 %v592
  %726 = vmatprep.subr.mxu0 %v589
  %727 = vmatpush2.msra.mxu0 %v588
  %728 = vmatprep.subr.mxu0 %v585
  %729 = vmatpush2.msra.mxu0 %v584
  %730 = vmatprep.subr.mxu0 %v581
  %731 = vmatpush2.msra.mxu0 %v580
  %732 = vmatprep.subr.mxu0 %v577
  %733 = vmatpush2.msra.mxu0 %v576
  %734 = vmatprep.subr.mxu0 %v573
  %735 = vmatpush2.msra.mxu0 %v572
  %736 = vmatprep.mubr.f32.mxu0 %v53
  %737 = vmatmul.mubr.f32.gmra.mxu0 %v52
  %v738 = vpop.f32.mrf.mxu0
  %v739 = vadd.f32 0.0, %v738
  %v740 = vpop.f32.mrf.mxu0
  %v741 = vadd.f32 0.0, %v740
  %742 = vdwg.mxu0
  %743 = vmatprep.subr.mxu0 0.0
  %744 = vmatpush1.msra.mxu0 0.0
  %745 = vmatprep.subr.mxu0 0.0
  %746 = vmatpush1.msra.mxu0 0.0
  %747 = vmatprep.subr.mxu0 0.0
  %748 = vmatpush1.msra.mxu0 0.0
  %749 = vmatprep.subr.mxu0 0.0
  %750 = vmatpush1.msra.mxu0 0.0
  %751 = vmatprep.subr.mxu0 0.0
  %752 = vmatpush1.msra.mxu0 0.0
  %753 = vmatprep.subr.mxu0 0.0
  %754 = vmatpush1.msra.mxu0 0.0
  %755 = vmatprep.subr.mxu0 0.0
  %756 = vmatpush1.msra.mxu0 0.0
  %757 = vmatprep.subr.mxu0 0.0
  %758 = vmatpush1.msra.mxu0 0.0
  %759 = vmatprep.subr.mxu0 0.0
  %760 = vmatpush1.msra.mxu0 0.0
  %761 = vmatprep.subr.mxu0 0.0
  %762 = vmatpush1.msra.mxu0 0.0
  %763 = vmatprep.subr.mxu0 %v664
  %764 = vmatpush1.msra.mxu0 %v661
  %765 = vmatprep.subr.mxu0 %v653
  %766 = vmatpush1.msra.mxu0 %v652
  %767 = vmatprep.subr.mxu0 %v649
  %768 = vmatpush1.msra.mxu0 %v648
  %769 = vmatprep.subr.mxu0 %v645
  %770 = vmatpush1.msra.mxu0 %v644
  %771 = vmatprep.subr.mxu0 %v641
  %772 = vmatpush1.msra.mxu0 %v640
  %773 = vmatprep.subr.mxu0 %v637
  %774 = vmatpush1.msra.mxu0 %v636
  %775 = vmatprep.subr.mxu0 0.0
  %776 = vmatpush2.msra.mxu0 0.0
  %777 = vmatprep.subr.mxu0 0.0
  %778 = vmatpush2.msra.mxu0 0.0
  %779 = vmatprep.subr.mxu0 0.0
  %780 = vmatpush2.msra.mxu0 0.0
  %781 = vmatprep.subr.mxu0 0.0
  %782 = vmatpush2.msra.mxu0 0.0
  %783 = vmatprep.subr.mxu0 0.0
  %784 = vmatpush2.msra.mxu0 0.0
  %785 = vmatprep.subr.mxu0 0.0
  %786 = vmatpush2.msra.mxu0 0.0
  %787 = vmatprep.subr.mxu0 0.0
  %788 = vmatpush2.msra.mxu0 0.0
  %789 = vmatprep.subr.mxu0 0.0
  %790 = vmatpush2.msra.mxu0 0.0
  %791 = vmatprep.subr.mxu0 0.0
  %792 = vmatpush2.msra.mxu0 0.0
  %793 = vmatprep.subr.mxu0 0.0
  %794 = vmatpush2.msra.mxu0 0.0
  %795 = vmatprep.subr.mxu0 0.0
  %796 = vmatpush2.msra.mxu0 0.0
  %797 = vmatprep.subr.mxu0 0.0
  %798 = vmatpush2.msra.mxu0 0.0
  %799 = vmatprep.subr.mxu0 0.0
  %800 = vmatpush2.msra.mxu0 0.0
  %801 = vmatprep.subr.mxu0 0.0
  %802 = vmatpush2.msra.mxu0 0.0
  %803 = vmatprep.subr.mxu0 0.0
  %804 = vmatpush2.msra.mxu0 0.0
  %805 = vmatprep.subr.mxu0 0.0
  %806 = vmatpush2.msra.mxu0 0.0
  %807 = vmatprep.mubr.f32.mxu0 0.0
  %808 = vmatmul.mubr.f32.gmra.mxu0 %v209
  %v809 = vpop.f32.mrf.mxu0
  %v810 = vadd.f32 %v739, %v809
  %v811 = vpop.f32.mrf.mxu0
  %v812 = vadd.f32 %v741, %v811
  %813 = vdwg.mxu0
  %814 = vmatprep.subr.mxu0 %v571
  %815 = vmatpush1.msra.mxu0 %v570
  %816 = vmatprep.subr.mxu0 %v567
  %817 = vmatpush1.msra.mxu0 %v566
  %818 = vmatprep.subr.mxu0 %v563
  %819 = vmatpush1.msra.mxu0 %v562
  %820 = vmatprep.subr.mxu0 %v559
  %821 = vmatpush1.msra.mxu0 %v558
  %822 = vmatprep.subr.mxu0 %v555
  %823 = vmatpush1.msra.mxu0 %v554
  %824 = vmatprep.subr.mxu0 %v551
  %825 = vmatpush1.msra.mxu0 %v550
  %826 = vmatprep.subr.mxu0 %v547
  %827 = vmatpush1.msra.mxu0 %v546
  %828 = vmatprep.subr.mxu0 %v543
  %829 = vmatpush1.msra.mxu0 %v542
  %830 = vmatprep.subr.mxu0 %v539
  %831 = vmatpush1.msra.mxu0 %v538
  %832 = vmatprep.subr.mxu0 %v535
  %833 = vmatpush1.msra.mxu0 %v534
  %834 = vmatprep.subr.mxu0 %v531
  %835 = vmatpush1.msra.mxu0 %v530
  %836 = vmatprep.subr.mxu0 %v527
  %837 = vmatpush1.msra.mxu0 %v526
  %838 = vmatprep.subr.mxu0 %v523
  %839 = vmatpush1.msra.mxu0 %v522
  %840 = vmatprep.subr.mxu0 %v519
  %841 = vmatpush1.msra.mxu0 %v518
  %842 = vmatprep.subr.mxu0 %v515
  %843 = vmatpush1.msra.mxu0 %v514
  %844 = vmatprep.subr.mxu0 %v511
  %845 = vmatpush1.msra.mxu0 %v510
  %846 = vmatprep.subr.mxu0 %v635
  %847 = vmatpush2.msra.mxu0 %v634
  %848 = vmatprep.subr.mxu0 %v631
  %849 = vmatpush2.msra.mxu0 %v630
  %850 = vmatprep.subr.mxu0 %v627
  %851 = vmatpush2.msra.mxu0 %v626
  %852 = vmatprep.subr.mxu0 %v623
  %853 = vmatpush2.msra.mxu0 %v622
  %854 = vmatprep.subr.mxu0 %v619
  %855 = vmatpush2.msra.mxu0 %v618
  %856 = vmatprep.subr.mxu0 %v615
  %857 = vmatpush2.msra.mxu0 %v614
  %858 = vmatprep.subr.mxu0 %v611
  %859 = vmatpush2.msra.mxu0 %v610
  %860 = vmatprep.subr.mxu0 %v607
  %861 = vmatpush2.msra.mxu0 %v606
  %862 = vmatprep.subr.mxu0 %v603
  %863 = vmatpush2.msra.mxu0 %v602
  %864 = vmatprep.subr.mxu0 %v599
  %865 = vmatpush2.msra.mxu0 %v598
  %866 = vmatprep.subr.mxu0 %v595
  %867 = vmatpush2.msra.mxu0 %v594
  %868 = vmatprep.subr.mxu0 %v591
  %869 = vmatpush2.msra.mxu0 %v590
  %870 = vmatprep.subr.mxu0 %v587
  %871 = vmatpush2.msra.mxu0 %v586
  %872 = vmatprep.subr.mxu0 %v583
  %873 = vmatpush2.msra.mxu0 %v582
  %874 = vmatprep.subr.mxu0 %v579
  %875 = vmatpush2.msra.mxu0 %v578
  %876 = vmatprep.subr.mxu0 %v575
  %877 = vmatpush2.msra.mxu0 %v574
  %878 = vmatprep.mubr.f32.mxu0 %v53
  %879 = vmatmul.mubr.f32.gmra.mxu0 %v52
  %v880 = vpop.f32.mrf.mxu0
  %v881 = vadd.f32 0.0, %v880
  %v882 = vpop.f32.mrf.mxu0
  %v883 = vadd.f32 0.0, %v882
  %884 = vdwg.mxu0
  %885 = vmatprep.subr.mxu0 0.0
  %886 = vmatpush1.msra.mxu0 0.0
  %887 = vmatprep.subr.mxu0 0.0
  %888 = vmatpush1.msra.mxu0 0.0
  %889 = vmatprep.subr.mxu0 0.0
  %890 = vmatpush1.msra.mxu0 0.0
  %891 = vmatprep.subr.mxu0 0.0
  %892 = vmatpush1.msra.mxu0 0.0
  %893 = vmatprep.subr.mxu0 0.0
  %894 = vmatpush1.msra.mxu0 0.0
  %895 = vmatprep.subr.mxu0 0.0
  %896 = vmatpush1.msra.mxu0 0.0
  %897 = vmatprep.subr.mxu0 0.0
  %898 = vmatpush1.msra.mxu0 0.0
  %899 = vmatprep.subr.mxu0 0.0
  %900 = vmatpush1.msra.mxu0 0.0
  %901 = vmatprep.subr.mxu0 0.0
  %902 = vmatpush1.msra.mxu0 0.0
  %903 = vmatprep.subr.mxu0 0.0
  %904 = vmatpush1.msra.mxu0 0.0
  %905 = vmatprep.subr.mxu0 %v670
  %906 = vmatpush1.msra.mxu0 %v667
  %907 = vmatprep.subr.mxu0 %v655
  %908 = vmatpush1.msra.mxu0 %v654
  %909 = vmatprep.subr.mxu0 %v651
  %910 = vmatpush1.msra.mxu0 %v650
  %911 = vmatprep.subr.mxu0 %v647
  %912 = vmatpush1.msra.mxu0 %v646
  %913 = vmatprep.subr.mxu0 %v643
  %914 = vmatpush1.msra.mxu0 %v642
  %915 = vmatprep.subr.mxu0 %v639
  %916 = vmatpush1.msra.mxu0 %v638
  %917 = vmatprep.subr.mxu0 0.0
  %918 = vmatpush2.msra.mxu0 0.0
  %919 = vmatprep.subr.mxu0 0.0
  %920 = vmatpush2.msra.mxu0 0.0
  %921 = vmatprep.subr.mxu0 0.0
  %922 = vmatpush2.msra.mxu0 0.0
  %923 = vmatprep.subr.mxu0 0.0
  %924 = vmatpush2.msra.mxu0 0.0
  %925 = vmatprep.subr.mxu0 0.0
  %926 = vmatpush2.msra.mxu0 0.0
  %927 = vmatprep.subr.mxu0 0.0
  %928 = vmatpush2.msra.mxu0 0.0
  %929 = vmatprep.subr.mxu0 0.0
  %930 = vmatpush2.msra.mxu0 0.0
  %931 = vmatprep.subr.mxu0 0.0
  %932 = vmatpush2.msra.mxu0 0.0
  %933 = vmatprep.subr.mxu0 0.0
  %934 = vmatpush2.msra.mxu0 0.0
  %935 = vmatprep.subr.mxu0 0.0
  %936 = vmatpush2.msra.mxu0 0.0
  %937 = vmatprep.subr.mxu0 0.0
  %938 = vmatpush2.msra.mxu0 0.0
  %939 = vmatprep.subr.mxu0 0.0
  %940 = vmatpush2.msra.mxu0 0.0
  %941 = vmatprep.subr.mxu0 0.0
  %942 = vmatpush2.msra.mxu0 0.0
  %943 = vmatprep.subr.mxu0 0.0
  %944 = vmatpush2.msra.mxu0 0.0
  %945 = vmatprep.subr.mxu0 0.0
  %946 = vmatpush2.msra.mxu0 0.0
  %947 = vmatprep.subr.mxu0 0.0
  %948 = vmatpush2.msra.mxu0 0.0
  %949 = vmatprep.mubr.f32.mxu0 0.0
  %950 = vmatmul.mubr.f32.gmra.mxu0 %v209
  %v951 = vpop.f32.mrf.mxu0
  %v952 = vadd.f32 %v881, %v951
  %v953 = vpop.f32.mrf.mxu0
  %v954 = vadd.f32 %v883, %v953
  %955 = vdwg.mxu0
  %v956 = vld [vmem:[%s3] sm:$0xff]
  %v957 = vld [vmem:[%s3 + $0x8] sm:$0xff]
  %v958 = vld [vmem:[%s3 + $0x10] sm:$0xff]
  %v959 = vld [vmem:[%s3 + $0x18] sm:$0xff]
  %v960 = vld [vmem:[%s3 + $0x20] sm:$0xff]
  %v961 = vld [vmem:[%s3 + $0x28] sm:$0xff]
  %v962 = vld [vmem:[%s3 + $0x30] sm:$0xff]
  %v963 = vld [vmem:[%s3 + $0x38] sm:$0xff]
  %v964 = vld [vmem:[%s3 + $0x40] sm:$0xff]
  %v965 = vld [vmem:[%s3 + $0x48] sm:$0xff]
  %v966 = vld [vmem:[%s3 + $0x50] sm:$0xff]
  %v967 = vld [vmem:[%s3 + $0x58] sm:$0xff]
  %v968 = vld [vmem:[%s3 + $0x60] sm:$0xff]
  %v969 = vld [vmem:[%s3 + $0x68] sm:$0xff]
  %v970 = vld [vmem:[%s3 + $0x70] sm:$0xff]
  %v971 = vld [vmem:[%s3 + $0x78] sm:$0xff]
  %v972 = vld [vmem:[%s3 + $0x80] sm:$0xff]
  %v973 = vld [vmem:[%s3 + $0x88] sm:$0xff]
  %v974 = vld [vmem:[%s3 + $0x90] sm:$0xff]
  %v975 = vld [vmem:[%s3 + $0x98] sm:$0xff]
  %v976 = vld [vmem:[%s3 + $0xa0] sm:$0xff]
  %v977 = vld [vmem:[%s3 + $0xa8] sm:$0xff]
  %v978 = vld [vmem:[%s3 + $0xb0] sm:$0xff]
  %v979 = vld [vmem:[%s3 + $0xb8] sm:$0xff]
  %v980 = vld [vmem:[%s3 + $0xc0] sm:$0xff]
  %v981 = vld [vmem:[%s3 + $0xc8] sm:$0xff]
  %v982 = vld [vmem:[%s3 + $0xd0] sm:$0xff]
  %v983 = vld [vmem:[%s3 + $0xd8] sm:$0xff]
  %v984 = vld [vmem:[%s3 + $0xe0] sm:$0xff]
  %v985 = vld [vmem:[%s3 + $0xe8] sm:$0xff]
  %v986 = vld [vmem:[%s3 + $0xf0] sm:$0xff]
  %v987 = vld [vmem:[%s3 + $0xf8] sm:$0xff]
  %v988 = vld [vmem:[%s3 + $0x100] sm:$0xff]
  %v989 = vld [vmem:[%s3 + $0x108] sm:$0xff]
  %v990 = vld [vmem:[%s3 + $0x110] sm:$0xff]
  %v991 = vld [vmem:[%s3 + $0x118] sm:$0xff]
  %v992 = vld [vmem:[%s3 + $0x120] sm:$0xff]
  %v993 = vld [vmem:[%s3 + $0x128] sm:$0xff]
  %v994 = vld [vmem:[%s3 + $0x130] sm:$0xff]
  %v995 = vld [vmem:[%s3 + $0x138] sm:$0xff]
  %v996 = vld [vmem:[%s3 + $0x140] sm:$0xff]
  %v997 = vld [vmem:[%s3 + $0x148] sm:$0xff]
  %v998 = vld [vmem:[%s3 + $0x150] sm:$0xff]
  %v999 = vld [vmem:[%s3 + $0x158] sm:$0xff]
  %v1000 = vld [vmem:[%s3 + $0x160] sm:$0xff]
  %v1001 = vld [vmem:[%s3 + $0x168] sm:$0xff]
  %v1002 = vld [vmem:[%s3 + $0x170] sm:$0xff]
  %v1003 = vld [vmem:[%s3 + $0x178] sm:$0xff]
  %v1004 = vld [vmem:[%s3 + $0x180] sm:$0xff]
  %v1005 = vld [vmem:[%s3 + $0x188] sm:$0xff]
  %v1006 = vld [vmem:[%s3 + $0x190] sm:$0xff]
  %v1007 = vld [vmem:[%s3 + $0x198] sm:$0xff]
  %v1008 = vld [vmem:[%s3 + $0x1a0] sm:$0xff]
  %v1009 = vld [vmem:[%s3 + $0x1a8] sm:$0xff]
  %v1010 = vld [vmem:[%s3 + $0x1b0] sm:$0xff]
  %v1011 = vld [vmem:[%s3 + $0x1b8] sm:$0xff]
  %v1012 = vld [vmem:[%s3 + $0x1c0] sm:$0xff]
  %v1013 = vld [vmem:[%s3 + $0x1c8] sm:$0xff]
  %v1014 = vld [vmem:[%s3 + $0x1d0] sm:$0xff]
  %v1015 = vld [vmem:[%s3 + $0x1d8] sm:$0xff]
  %v1016 = vld [vmem:[%s3 + $0x1e0] sm:$0xff]
  %v1017 = vld [vmem:[%s3 + $0x1e8] sm:$0xff]
  %v1018 = vld [vmem:[%s3 + $0x1f0] sm:$0xff]
  %v1019 = vld [vmem:[%s3 + $0x1f8] sm:$0xff]
  %v1020 = vld [vmem:[%s3 + $0x200] sm:$0xff]
  %v1021 = vld [vmem:[%s3 + $0x208] sm:$0xff]
  %v1022 = vld [vmem:[%s3 + $0x210] sm:$0xff]
  %v1023 = vld [vmem:[%s3 + $0x218] sm:$0xff]
  %v1024 = vld [vmem:[%s3 + $0x220] sm:$0xff]
  %v1025 = vld [vmem:[%s3 + $0x228] sm:$0xff]
  %v1026 = vld [vmem:[%s3 + $0x230] sm:$0xff]
  %v1027 = vld [vmem:[%s3 + $0x238] sm:$0xff]
  %v1028 = vld [vmem:[%s3 + $0x240] sm:$0xff]
  %v1029 = vld [vmem:[%s3 + $0x248] sm:$0xff]
  %v1030 = vld [vmem:[%s3 + $0x250] sm:$0xff]
  %v1031 = vld [vmem:[%s3 + $0x258] sm:$0xff]
  %v1032 = vld [vmem:[%s3 + $0x260] sm:$0xff]
  %v1033 = vld [vmem:[%s3 + $0x268] sm:$0xff]
  %v1034 = vld [vmem:[%s3 + $0x270] sm:$0xff]
  %v1035 = vld [vmem:[%s3 + $0x278] sm:$0xff]
  %v1036 = vld [vmem:[%s3 + $0x280] sm:$0xff]
  %v1037 = vld [vmem:[%s3 + $0x288] sm:$0xff]
  %v1038 = vld [vmem:[%s3 + $0x290] sm:$0xff]
  %v1039 = vld [vmem:[%s3 + $0x298] sm:$0xff]
  %v1040 = vld [vmem:[%s3 + $0x2a0] sm:$0xff]
  %v1041 = vld [vmem:[%s3 + $0x2a8] sm:$0xff]
  %v1042 = vld [vmem:[%s3 + $0x2b0] sm:$0xff]
  %v1043 = vld [vmem:[%s3 + $0x2b8] sm:$0xff]
  %v1044 = vld [vmem:[%s3 + $0x2c0] sm:$0xff]
  %v1045 = vld [vmem:[%s3 + $0x2c8] sm:$0xff]
  %v1046 = vld [vmem:[%s3 + $0x2d0] sm:$0xff]
  %v1047 = vld [vmem:[%s3 + $0x2d8] sm:$0xff]
  %v1048 = vld [vmem:[%s3 + $0x2e0] sm:$0xff]
  %v1049 = vld [vmem:[%s3 + $0x2e8] sm:$0xff]
  %v1050 = vld [vmem:[%s3 + $0x2f0] sm:$0xff]
  %v1051 = vld [vmem:[%s3 + $0x2f8] sm:$0xff]
  %v1052 = vld [vmem:[%s3 + $0x300] sm:$0xff]
  %v1053 = vld [vmem:[%s3 + $0x308] sm:$0xff]
  %v1054 = vld [vmem:[%s3 + $0x310] sm:$0xff]
  %v1055 = vld [vmem:[%s3 + $0x318] sm:$0xff]
  %v1056 = vld [vmem:[%s3 + $0x320] sm:$0xff]
  %v1057 = vld [vmem:[%s3 + $0x328] sm:$0xff]
  %v1058 = vld [vmem:[%s3 + $0x330] sm:$0xff]
  %v1059 = vld [vmem:[%s3 + $0x338] sm:$0xff]
  %v1060 = vld [vmem:[%s3 + $0x340] sm:$0xff]
  %v1061 = vld [vmem:[%s3 + $0x348] sm:$0xff]
  %v1062 = vld [vmem:[%s3 + $0x350] sm:$0xff]
  %v1063 = vld [vmem:[%s3 + $0x358] sm:$0xff]
  %v1064 = vld [vmem:[%s3 + $0x360] sm:$0xff]
  %v1065 = vld [vmem:[%s3 + $0x368] sm:$0xff]
  %v1066 = vld [vmem:[%s3 + $0x370] sm:$0xff]
  %v1067 = vld [vmem:[%s3 + $0x378] sm:$0xff]
  %v1068 = vld [vmem:[%s3 + $0x380] sm:$0xff]
  %v1069 = vld [vmem:[%s3 + $0x388] sm:$0xff]
  %v1070 = vld [vmem:[%s3 + $0x390] sm:$0xff]
  %v1071 = vld [vmem:[%s3 + $0x398] sm:$0xff]
  %v1072 = vld [vmem:[%s3 + $0x3a0] sm:$0xff]
  %v1073 = vld [vmem:[%s3 + $0x3a8] sm:$0xff]
  %v1074 = vld [vmem:[%s3 + $0x3b0] sm:$0xff]
  %v1075 = vld [vmem:[%s3 + $0x3b8] sm:$0xff]
  %v1076 = vld [vmem:[%s3 + $0x3c0] sm:$0xff]
  %v1077 = vld [vmem:[%s3 + $0x3c8] sm:$0xff]
  %v1078 = vld [vmem:[%s3 + $0x3d0] sm:$0xff]
  %v1079 = vld [vmem:[%s3 + $0x3d8] sm:$0xff]
  %v1080 = vld [vmem:[%s3 + $0x3e0] sm:$0xff]
  %v1081 = vld [vmem:[%s3 + $0x3e8] sm:$0xff]
  %v1082 = vld [vmem:[%s3 + $0x3f0] sm:$0xff]
  %v1083 = vld [vmem:[%s3 + $0x3f8] sm:$0xff]
  %v1084 = vld [vmem:[%s3 + $0x400] sm:$0xff]
  %v1085 = vld [vmem:[%s3 + $0x408] sm:$0xff]
  %v1086 = vld [vmem:[%s3 + $0x410] sm:$0xff]
  %v1087 = vld [vmem:[%s3 + $0x418] sm:$0xff]
  %v1088 = vld [vmem:[%s3 + $0x420] sm:$0xff]
  %v1089 = vld [vmem:[%s3 + $0x428] sm:$0xff]
  %v1090 = vld [vmem:[%s3 + $0x430] sm:$0xff]
  %v1091 = vld [vmem:[%s3 + $0x438] sm:$0xff]
  %v1092 = vld [vmem:[%s3 + $0x440] sm:$0xff]
  %v1093 = vld [vmem:[%s3 + $0x448] sm:$0xff]
  %v1094 = vld [vmem:[%s3 + $0x450] sm:$0xff]
  %v1095 = vld [vmem:[%s3 + $0x458] sm:$0xff]
  %v1096 = vld [vmem:[%s3 + $0x460] sm:$0xff]
  %v1097 = vld [vmem:[%s3 + $0x468] sm:$0xff]
  %v1098 = vld [vmem:[%s3 + $0x470] sm:$0xff]
  %v1099 = vld [vmem:[%s3 + $0x478] sm:$0xff]
  %v1100 = vld [vmem:[%s3 + $0x480] sm:$0xff]
  %v1101 = vld [vmem:[%s3 + $0x488] sm:$0xff]
  %v1102 = vld [vmem:[%s3 + $0x490] sm:$0xff]
  %v1103 = vld [vmem:[%s3 + $0x498] sm:$0xff]
  %v1104 = vld [vmem:[%s3 + $0x4a0] sm:$0xf]
  %v1105 = vld [vmem:[%s3 + $0x4a8] sm:$0xf]
  %v1106 = vld [vmem:[%s3 + $0x4b0] sm:$0xf]
  %v1107 = vld [vmem:[%s3 + $0x4b8] sm:$0xf]
  %v1109 = vsel %vm211, %v1104, 0
  %v1112 = vsel %vm211, %v1105, 0
  %v1115 = vsel %vm211, %v1106, 0
  %v1118 = vsel %vm211, %v1107, 0
  %1120 = vmatprep.subr.mxu0 %v1017
  %1121 = vmatpush1.msra.mxu0 %v1016
  %1122 = vmatprep.subr.mxu0 %v1013
  %1123 = vmatpush1.msra.mxu0 %v1012
  %1124 = vmatprep.subr.mxu0 %v1009
  %1125 = vmatpush1.msra.mxu0 %v1008
  %1126 = vmatprep.subr.mxu0 %v1005
  %1127 = vmatpush1.msra.mxu0 %v1004
  %1128 = vmatprep.subr.mxu0 %v1001
  %1129 = vmatpush1.msra.mxu0 %v1000
  %1130 = vmatprep.subr.mxu0 %v997
  %1131 = vmatpush1.msra.mxu0 %v996
  %1132 = vmatprep.subr.mxu0 %v993
  %1133 = vmatpush1.msra.mxu0 %v992
  %1134 = vmatprep.subr.mxu0 %v989
  %1135 = vmatpush1.msra.mxu0 %v988
  %1136 = vmatprep.subr.mxu0 %v985
  %1137 = vmatpush1.msra.mxu0 %v984
  %1138 = vmatprep.subr.mxu0 %v981
  %1139 = vmatpush1.msra.mxu0 %v980
  %1140 = vmatprep.subr.mxu0 %v977
  %1141 = vmatpush1.msra.mxu0 %v976
  %1142 = vmatprep.subr.mxu0 %v973
  %1143 = vmatpush1.msra.mxu0 %v972
  %1144 = vmatprep.subr.mxu0 %v969
  %1145 = vmatpush1.msra.mxu0 %v968
  %1146 = vmatprep.subr.mxu0 %v965
  %1147 = vmatpush1.msra.mxu0 %v964
  %1148 = vmatprep.subr.mxu0 %v961
  %1149 = vmatpush1.msra.mxu0 %v960
  %1150 = vmatprep.subr.mxu0 %v957
  %1151 = vmatpush1.msra.mxu0 %v956
  %1152 = vmatprep.subr.mxu0 %v1081
  %1153 = vmatpush2.msra.mxu0 %v1080
  %1154 = vmatprep.subr.mxu0 %v1077
  %1155 = vmatpush2.msra.mxu0 %v1076
  %1156 = vmatprep.subr.mxu0 %v1073
  %1157 = vmatpush2.msra.mxu0 %v1072
  %1158 = vmatprep.subr.mxu0 %v1069
  %1159 = vmatpush2.msra.mxu0 %v1068
  %1160 = vmatprep.subr.mxu0 %v1065
  %1161 = vmatpush2.msra.mxu0 %v1064
  %1162 = vmatprep.subr.mxu0 %v1061
  %1163 = vmatpush2.msra.mxu0 %v1060
  %1164 = vmatprep.subr.mxu0 %v1057
  %1165 = vmatpush2.msra.mxu0 %v1056
  %1166 = vmatprep.subr.mxu0 %v1053
  %1167 = vmatpush2.msra.mxu0 %v1052
  %1168 = vmatprep.subr.mxu0 %v1049
  %1169 = vmatpush2.msra.mxu0 %v1048
  %1170 = vmatprep.subr.mxu0 %v1045
  %1171 = vmatpush2.msra.mxu0 %v1044
  %1172 = vmatprep.subr.mxu0 %v1041
  %1173 = vmatpush2.msra.mxu0 %v1040
  %1174 = vmatprep.subr.mxu0 %v1037
  %1175 = vmatpush2.msra.mxu0 %v1036
  %1176 = vmatprep.subr.mxu0 %v1033
  %1177 = vmatpush2.msra.mxu0 %v1032
  %1178 = vmatprep.subr.mxu0 %v1029
  %1179 = vmatpush2.msra.mxu0 %v1028
  %1180 = vmatprep.subr.mxu0 %v1025
  %1181 = vmatpush2.msra.mxu0 %v1024
  %1182 = vmatprep.subr.mxu0 %v1021
  %1183 = vmatpush2.msra.mxu0 %v1020
  %1184 = vmatprep.mubr.f32.mxu0 %v53
  %1185 = vmatmul.mubr.f32.gmra.mxu0 %v52
  %v1186 = vpop.f32.mrf.mxu0
  %v1187 = vadd.f32 0.0, %v1186
  %v1188 = vpop.f32.mrf.mxu0
  %v1189 = vadd.f32 0.0, %v1188
  %1190 = vdwg.mxu0
  %1191 = vmatprep.subr.mxu0 0.0
  %1192 = vmatpush1.msra.mxu0 0.0
  %1193 = vmatprep.subr.mxu0 0.0
  %1194 = vmatpush1.msra.mxu0 0.0
  %1195 = vmatprep.subr.mxu0 0.0
  %1196 = vmatpush1.msra.mxu0 0.0
  %1197 = vmatprep.subr.mxu0 0.0
  %1198 = vmatpush1.msra.mxu0 0.0
  %1199 = vmatprep.subr.mxu0 0.0
  %1200 = vmatpush1.msra.mxu0 0.0
  %1201 = vmatprep.subr.mxu0 0.0
  %1202 = vmatpush1.msra.mxu0 0.0
  %1203 = vmatprep.subr.mxu0 0.0
  %1204 = vmatpush1.msra.mxu0 0.0
  %1205 = vmatprep.subr.mxu0 0.0
  %1206 = vmatpush1.msra.mxu0 0.0
  %1207 = vmatprep.subr.mxu0 0.0
  %1208 = vmatpush1.msra.mxu0 0.0
  %1209 = vmatprep.subr.mxu0 0.0
  %1210 = vmatpush1.msra.mxu0 0.0
  %1211 = vmatprep.subr.mxu0 %v1112
  %1212 = vmatpush1.msra.mxu0 %v1109
  %1213 = vmatprep.subr.mxu0 %v1101
  %1214 = vmatpush1.msra.mxu0 %v1100
  %1215 = vmatprep.subr.mxu0 %v1097
  %1216 = vmatpush1.msra.mxu0 %v1096
  %1217 = vmatprep.subr.mxu0 %v1093
  %1218 = vmatpush1.msra.mxu0 %v1092
  %1219 = vmatprep.subr.mxu0 %v1089
  %1220 = vmatpush1.msra.mxu0 %v1088
  %1221 = vmatprep.subr.mxu0 %v1085
  %1222 = vmatpush1.msra.mxu0 %v1084
  %1223 = vmatprep.subr.mxu0 0.0
  %1224 = vmatpush2.msra.mxu0 0.0
  %1225 = vmatprep.subr.mxu0 0.0
  %1226 = vmatpush2.msra.mxu0 0.0
  %1227 = vmatprep.subr.mxu0 0.0
  %1228 = vmatpush2.msra.mxu0 0.0
  %1229 = vmatprep.subr.mxu0 0.0
  %1230 = vmatpush2.msra.mxu0 0.0
  %1231 = vmatprep.subr.mxu0 0.0
  %1232 = vmatpush2.msra.mxu0 0.0
  %1233 = vmatprep.subr.mxu0 0.0
  %1234 = vmatpush2.msra.mxu0 0.0
  %1235 = vmatprep.subr.mxu0 0.0
  %1236 = vmatpush2.msra.mxu0 0.0
  %1237 = vmatprep.subr.mxu0 0.0
  %1238 = vmatpush2.msra.mxu0 0.0
  %1239 = vmatprep.subr.mxu0 0.0
  %1240 = vmatpush2.msra.mxu0 0.0
  %1241 = vmatprep.subr.mxu0 0.0
  %1242 = vmatpush2.msra.mxu0 0.0
  %1243 = vmatprep.subr.mxu0 0.0
  %1244 = vmatpush2.msra.mxu0 0.0
  %1245 = vmatprep.subr.mxu0 0.0
  %1246 = vmatpush2.msra.mxu0 0.0
  %1247 = vmatprep.subr.mxu0 0.0
  %1248 = vmatpush2.msra.mxu0 0.0
  %1249 = vmatprep.subr.mxu0 0.0
  %1250 = vmatpush2.msra.mxu0 0.0
  %1251 = vmatprep.subr.mxu0 0.0
  %1252 = vmatpush2.msra.mxu0 0.0
  %1253 = vmatprep.subr.mxu0 0.0
  %1254 = vmatpush2.msra.mxu0 0.0
  %1255 = vmatprep.mubr.f32.mxu0 0.0
  %1256 = vmatmul.mubr.f32.gmra.mxu0 %v209
  %v1257 = vpop.f32.mrf.mxu0
  %v1258 = vadd.f32 %v1187, %v1257
  %v1259 = vpop.f32.mrf.mxu0
  %v1260 = vadd.f32 %v1189, %v1259
  %1261 = vdwg.mxu0
  %1262 = vmatprep.subr.mxu0 %v1019
  %1263 = vmatpush1.msra.mxu0 %v1018
  %1264 = vmatprep.subr.mxu0 %v1015
  %1265 = vmatpush1.msra.mxu0 %v1014
  %1266 = vmatprep.subr.mxu0 %v1011
  %1267 = vmatpush1.msra.mxu0 %v1010
  %1268 = vmatprep.subr.mxu0 %v1007
  %1269 = vmatpush1.msra.mxu0 %v1006
  %1270 = vmatprep.subr.mxu0 %v1003
  %1271 = vmatpush1.msra.mxu0 %v1002
  %1272 = vmatprep.subr.mxu0 %v999
  %1273 = vmatpush1.msra.mxu0 %v998
  %1274 = vmatprep.subr.mxu0 %v995
  %1275 = vmatpush1.msra.mxu0 %v994
  %1276 = vmatprep.subr.mxu0 %v991
  %1277 = vmatpush1.msra.mxu0 %v990
  %1278 = vmatprep.subr.mxu0 %v987
  %1279 = vmatpush1.msra.mxu0 %v986
  %1280 = vmatprep.subr.mxu0 %v983
  %1281 = vmatpush1.msra.mxu0 %v982
  %1282 = vmatprep.subr.mxu0 %v979
  %1283 = vmatpush1.msra.mxu0 %v978
  %1284 = vmatprep.subr.mxu0 %v975
  %1285 = vmatpush1.msra.mxu0 %v974
  %1286 = vmatprep.subr.mxu0 %v971
  %1287 = vmatpush1.msra.mxu0 %v970
  %1288 = vmatprep.subr.mxu0 %v967
  %1289 = vmatpush1.msra.mxu0 %v966
  %1290 = vmatprep.subr.mxu0 %v963
  %1291 = vmatpush1.msra.mxu0 %v962
  %1292 = vmatprep.subr.mxu0 %v959
  %1293 = vmatpush1.msra.mxu0 %v958
  %1294 = vmatprep.subr.mxu0 %v1083
  %1295 = vmatpush2.msra.mxu0 %v1082
  %1296 = vmatprep.subr.mxu0 %v1079
  %1297 = vmatpush2.msra.mxu0 %v1078
  %1298 = vmatprep.subr.mxu0 %v1075
  %1299 = vmatpush2.msra.mxu0 %v1074
  %1300 = vmatprep.subr.mxu0 %v1071
  %1301 = vmatpush2.msra.mxu0 %v1070
  %1302 = vmatprep.subr.mxu0 %v1067
  %1303 = vmatpush2.msra.mxu0 %v1066
  %1304 = vmatprep.subr.mxu0 %v1063
  %1305 = vmatpush2.msra.mxu0 %v1062
  %1306 = vmatprep.subr.mxu0 %v1059
  %1307 = vmatpush2.msra.mxu0 %v1058
  %1308 = vmatprep.subr.mxu0 %v1055
  %1309 = vmatpush2.msra.mxu0 %v1054
  %1310 = vmatprep.subr.mxu0 %v1051
  %1311 = vmatpush2.msra.mxu0 %v1050
  %1312 = vmatprep.subr.mxu0 %v1047
  %1313 = vmatpush2.msra.mxu0 %v1046
  %1314 = vmatprep.subr.mxu0 %v1043
  %1315 = vmatpush2.msra.mxu0 %v1042
  %1316 = vmatprep.subr.mxu0 %v1039
  %1317 = vmatpush2.msra.mxu0 %v1038
  %1318 = vmatprep.subr.mxu0 %v1035
  %1319 = vmatpush2.msra.mxu0 %v1034
  %1320 = vmatprep.subr.mxu0 %v1031
  %1321 = vmatpush2.msra.mxu0 %v1030
  %1322 = vmatprep.subr.mxu0 %v1027
  %1323 = vmatpush2.msra.mxu0 %v1026
  %1324 = vmatprep.subr.mxu0 %v1023
  %1325 = vmatpush2.msra.mxu0 %v1022
  %1326 = vmatprep.mubr.f32.mxu0 %v53
  %1327 = vmatmul.mubr.f32.gmra.mxu0 %v52
  %v1328 = vpop.f32.mrf.mxu0
  %v1329 = vadd.f32 0.0, %v1328
  %v1330 = vpop.f32.mrf.mxu0
  %v1331 = vadd.f32 0.0, %v1330
  %1332 = vdwg.mxu0
  %1333 = vmatprep.subr.mxu0 0.0
  %1334 = vmatpush1.msra.mxu0 0.0
  %1335 = vmatprep.subr.mxu0 0.0
  %1336 = vmatpush1.msra.mxu0 0.0
  %1337 = vmatprep.subr.mxu0 0.0
  %1338 = vmatpush1.msra.mxu0 0.0
  %1339 = vmatprep.subr.mxu0 0.0
  %1340 = vmatpush1.msra.mxu0 0.0
  %1341 = vmatprep.subr.mxu0 0.0
  %1342 = vmatpush1.msra.mxu0 0.0
  %1343 = vmatprep.subr.mxu0 0.0
  %1344 = vmatpush1.msra.mxu0 0.0
  %1345 = vmatprep.subr.mxu0 0.0
  %1346 = vmatpush1.msra.mxu0 0.0
  %1347 = vmatprep.subr.mxu0 0.0
  %1348 = vmatpush1.msra.mxu0 0.0
  %1349 = vmatprep.subr.mxu0 0.0
  %1350 = vmatpush1.msra.mxu0 0.0
  %1351 = vmatprep.subr.mxu0 0.0
  %1352 = vmatpush1.msra.mxu0 0.0
  %1353 = vmatprep.subr.mxu0 %v1118
  %1354 = vmatpush1.msra.mxu0 %v1115
  %1355 = vmatprep.subr.mxu0 %v1103
  %1356 = vmatpush1.msra.mxu0 %v1102
  %1357 = vmatprep.subr.mxu0 %v1099
  %1358 = vmatpush1.msra.mxu0 %v1098
  %1359 = vmatprep.subr.mxu0 %v1095
  %1360 = vmatpush1.msra.mxu0 %v1094
  %1361 = vmatprep.subr.mxu0 %v1091
  %1362 = vmatpush1.msra.mxu0 %v1090
  %1363 = vmatprep.subr.mxu0 %v1087
  %1364 = vmatpush1.msra.mxu0 %v1086
  %1365 = vmatprep.subr.mxu0 0.0
  %1366 = vmatpush2.msra.mxu0 0.0
  %1367 = vmatprep.subr.mxu0 0.0
  %1368 = vmatpush2.msra.mxu0 0.0
  %1369 = vmatprep.subr.mxu0 0.0
  %1370 = vmatpush2.msra.mxu0 0.0
  %1371 = vmatprep.subr.mxu0 0.0
  %1372 = vmatpush2.msra.mxu0 0.0
  %1373 = vmatprep.subr.mxu0 0.0
  %1374 = vmatpush2.msra.mxu0 0.0
  %1375 = vmatprep.subr.mxu0 0.0
  %1376 = vmatpush2.msra.mxu0 0.0
  %1377 = vmatprep.subr.mxu0 0.0
  %1378 = vmatpush2.msra.mxu0 0.0
  %1379 = vmatprep.subr.mxu0 0.0
  %1380 = vmatpush2.msra.mxu0 0.0
  %1381 = vmatprep.subr.mxu0 0.0
  %1382 = vmatpush2.msra.mxu0 0.0
  %1383 = vmatprep.subr.mxu0 0.0
  %1384 = vmatpush2.msra.mxu0 0.0
  %1385 = vmatprep.subr.mxu0 0.0
  %1386 = vmatpush2.msra.mxu0 0.0
  %1387 = vmatprep.subr.mxu0 0.0
  %1388 = vmatpush2.msra.mxu0 0.0
  %1389 = vmatprep.subr.mxu0 0.0
  %1390 = vmatpush2.msra.mxu0 0.0
  %1391 = vmatprep.subr.mxu0 0.0
  %1392 = vmatpush2.msra.mxu0 0.0
  %1393 = vmatprep.subr.mxu0 0.0
  %1394 = vmatpush2.msra.mxu0 0.0
  %1395 = vmatprep.subr.mxu0 0.0
  %1396 = vmatpush2.msra.mxu0 0.0
  %1397 = vmatprep.mubr.f32.mxu0 0.0
  %1398 = vmatmul.mubr.f32.gmra.mxu0 %v209
  %v1399 = vpop.f32.mrf.mxu0
  %v1400 = vadd.f32 %v1329, %v1399
  %v1401 = vpop.f32.mrf.mxu0
  %v1402 = vadd.f32 %v1331, %v1401
  %1403 = vdwg.mxu0
  %v1404 = vmax.f32 %v362, %v810
  %v1405 = vmax.f32 %v364, %v812
  %v1406 = vmax.f32 %v504, %v952
  %v1407 = vmax.f32 %v506, %v954
  %v1408 = vmax.f32 %v1404, %v1258
  %v1409 = vmax.f32 %v1405, %v1260
  %v1410 = vmax.f32 %v1406, %v1400
  %v1411 = vmax.f32 %v1407, %v1402
  %v1412 = vld [vmem:[%s4] sm:$0xf]
  %v1414 = vlaneseq
  %v1415 = vshrl.u32 %v1414, 7
  %v1416 = vsub.s32 0, %v1415
  %v1417 = vrot.slane %v1412, %v1416
  %v1418 = vlaneseq
  %v1419 = vshrl.u32 %v1418, 7
  %v1420 = vsub.s32 1, %v1419
  %v1421 = vrot.slane %v1412, %v1420
  %v1422 = vlaneseq
  %v1423 = vshrl.u32 %v1422, 7
  %v1424 = vsub.s32 2, %v1423
  %v1425 = vrot.slane %v1412, %v1424
  %v1426 = vlaneseq
  %v1427 = vshrl.u32 %v1426, 7
  %v1428 = vsub.s32 3, %v1427
  %v1429 = vrot.slane %v1412, %v1428
  %v1434 = vadd.f32 %v1408, %v1417
  %v1435 = vadd.f32 %v1409, %v1421
  %v1436 = vadd.f32 %v1410, %v1425
  %v1437 = vadd.f32 %v1411, %v1429
  %v1438 = vmax.f32 %v1434, 0.0
  %v1439 = vmax.f32 %v1435, 0.0
  %v1440 = vmax.f32 %v1436, 0.0
  %v1441 = vmax.f32 %v1437, 0.0
  %v1442 = vld [vmem:[%s5] sm:$0xff]
  %v1443 = vld [vmem:[%s5 + $0x8] sm:$0xff]
  %v1444 = vld [vmem:[%s5 + $0x10] sm:$0xff]
  %v1445 = vld [vmem:[%s5 + $0x18] sm:$0xff]
  %v1446 = vld [vmem:[%s5 + $0x20] sm:$0xff]
  %v1447 = vld [vmem:[%s5 + $0x28] sm:$0xff]
  %v1448 = vld [vmem:[%s5 + $0x30] sm:$0xff]
  %v1449 = vld [vmem:[%s5 + $0x38] sm:$0xff]
  %v1450 = vld [vmem:[%s5 + $0x40] sm:$0xff]
  %v1451 = vld [vmem:[%s5 + $0x48] sm:$0xff]
  %v1452 = vld [vmem:[%s5 + $0x50] sm:$0xff]
  %v1453 = vld [vmem:[%s5 + $0x58] sm:$0xff]
  %v1454 = vld [vmem:[%s5 + $0x60] sm:$0xff]
  %v1455 = vld [vmem:[%s5 + $0x68] sm:$0xff]
  %v1456 = vld [vmem:[%s5 + $0x70] sm:$0xff]
  %v1457 = vld [vmem:[%s5 + $0x78] sm:$0xff]
  %v1458 = vld [vmem:[%s5 + $0x80] sm:$0xff]
  %v1459 = vld [vmem:[%s5 + $0x88] sm:$0xff]
  %v1460 = vld [vmem:[%s5 + $0x90] sm:$0xff]
  %v1461 = vld [vmem:[%s5 + $0x98] sm:$0xff]
  %v1462 = vld [vmem:[%s5 + $0xa0] sm:$0xff]
  %v1463 = vld [vmem:[%s5 + $0xa8] sm:$0xff]
  %v1464 = vld [vmem:[%s5 + $0xb0] sm:$0xff]
  %v1465 = vld [vmem:[%s5 + $0xb8] sm:$0xff]
  %v1466 = vld [vmem:[%s5 + $0xc0] sm:$0xff]
  %v1467 = vld [vmem:[%s5 + $0xc8] sm:$0xff]
  %v1468 = vld [vmem:[%s5 + $0xd0] sm:$0xff]
  %v1469 = vld [vmem:[%s5 + $0xd8] sm:$0xff]
  %v1470 = vld [vmem:[%s5 + $0xe0] sm:$0xff]
  %v1471 = vld [vmem:[%s5 + $0xe8] sm:$0xff]
  %v1472 = vld [vmem:[%s5 + $0xf0] sm:$0xff]
  %v1473 = vld [vmem:[%s5 + $0xf8] sm:$0xff]
  %v1474 = vld [vmem:[%s5 + $0x100] sm:$0xff]
  %v1475 = vld [vmem:[%s5 + $0x108] sm:$0xff]
  %v1476 = vld [vmem:[%s5 + $0x110] sm:$0xff]
  %v1477 = vld [vmem:[%s5 + $0x118] sm:$0xff]
  %v1478 = vld [vmem:[%s5 + $0x120] sm:$0xff]
  %v1479 = vld [vmem:[%s5 + $0x128] sm:$0xff]
  %v1480 = vld [vmem:[%s5 + $0x130] sm:$0xff]
  %v1481 = vld [vmem:[%s5 + $0x138] sm:$0xff]
  %v1482 = vld [vmem:[%s5 + $0x140] sm:$0xff]
  %v1483 = vld [vmem:[%s5 + $0x148] sm:$0xff]
  %v1484 = vld [vmem:[%s5 + $0x150] sm:$0xff]
  %v1485 = vld [vmem:[%s5 + $0x158] sm:$0xff]
  %v1486 = vld [vmem:[%s5 + $0x160] sm:$0xff]
  %v1487 = vld [vmem:[%s5 + $0x168] sm:$0xff]
  %v1488 = vld [vmem:[%s5 + $0x170] sm:$0xff]
  %v1489 = vld [vmem:[%s5 + $0x178] sm:$0xff]
  %v1490 = vld [vmem:[%s5 + $0x180] sm:$0xff]
  %v1491 = vld [vmem:[%s5 + $0x188] sm:$0xff]
  %v1492 = vld [vmem:[%s5 + $0x190] sm:$0xff]
  %v1493 = vld [vmem:[%s5 + $0x198] sm:$0xff]
  %v1494 = vld [vmem:[%s5 + $0x1a0] sm:$0xff]
  %v1495 = vld [vmem:[%s5 + $0x1a8] sm:$0xff]
  %v1496 = vld [vmem:[%s5 + $0x1b0] sm:$0xff]
  %v1497 = vld [vmem:[%s5 + $0x1b8] sm:$0xff]
  %v1498 = vld [vmem:[%s5 + $0x1c0] sm:$0xff]
  %v1499 = vld [vmem:[%s5 + $0x1c8] sm:$0xff]
  %v1500 = vld [vmem:[%s5 + $0x1d0] sm:$0xff]
  %v1501 = vld [vmem:[%s5 + $0x1d8] sm:$0xff]
  %v1502 = vld [vmem:[%s5 + $0x1e0] sm:$0xff]
  %v1503 = vld [vmem:[%s5 + $0x1e8] sm:$0xff]
  %v1504 = vld [vmem:[%s5 + $0x1f0] sm:$0xff]
  %v1505 = vld [vmem:[%s5 + $0x1f8] sm:$0xff]
  %v1506 = vld [vmem:[%s5 + $0x200] sm:$0xff]
  %v1507 = vld [vmem:[%s5 + $0x208] sm:$0xff]
  %v1508 = vld [vmem:[%s5 + $0x210] sm:$0xff]
  %v1509 = vld [vmem:[%s5 + $0x218] sm:$0xff]
  %v1510 = vld [vmem:[%s5 + $0x220] sm:$0xff]
  %v1511 = vld [vmem:[%s5 + $0x228] sm:$0xff]
  %v1512 = vld [vmem:[%s5 + $0x230] sm:$0xff]
  %v1513 = vld [vmem:[%s5 + $0x238] sm:$0xff]
  %v1514 = vld [vmem:[%s5 + $0x240] sm:$0xff]
  %v1515 = vld [vmem:[%s5 + $0x248] sm:$0xff]
  %v1516 = vld [vmem:[%s5 + $0x250] sm:$0xff]
  %v1517 = vld [vmem:[%s5 + $0x258] sm:$0xff]
  %v1518 = vld [vmem:[%s5 + $0x260] sm:$0xff]
  %v1519 = vld [vmem:[%s5 + $0x268] sm:$0xff]
  %v1520 = vld [vmem:[%s5 + $0x270] sm:$0xff]
  %v1521 = vld [vmem:[%s5 + $0x278] sm:$0xff]
  %v1522 = vld [vmem:[%s5 + $0x280] sm:$0xff]
  %v1523 = vld [vmem:[%s5 + $0x288] sm:$0xff]
  %v1524 = vld [vmem:[%s5 + $0x290] sm:$0xff]
  %v1525 = vld [vmem:[%s5 + $0x298] sm:$0xff]
  %v1526 = vld [vmem:[%s5 + $0x2a0] sm:$0xff]
  %v1527 = vld [vmem:[%s5 + $0x2a8] sm:$0xff]
  %v1528 = vld [vmem:[%s5 + $0x2b0] sm:$0xff]
  %v1529 = vld [vmem:[%s5 + $0x2b8] sm:$0xff]
  %v1530 = vld [vmem:[%s5 + $0x2c0] sm:$0xff]
  %v1531 = vld [vmem:[%s5 + $0x2c8] sm:$0xff]
  %v1532 = vld [vmem:[%s5 + $0x2d0] sm:$0xff]
  %v1533 = vld [vmem:[%s5 + $0x2d8] sm:$0xff]
  %v1534 = vld [vmem:[%s5 + $0x2e0] sm:$0xff]
  %v1535 = vld [vmem:[%s5 + $0x2e8] sm:$0xff]
  %v1536 = vld [vmem:[%s5 + $0x2f0] sm:$0xff]
  %v1537 = vld [vmem:[%s5 + $0x2f8] sm:$0xff]
  %v1538 = vld [vmem:[%s5 + $0x300] sm:$0xff]
  %v1539 = vld [vmem:[%s5 + $0x308] sm:$0xff]
  %v1540 = vld [vmem:[%s5 + $0x310] sm:$0xff]
  %v1541 = vld [vmem:[%s5 + $0x318] sm:$0xff]
  %v1542 = vld [vmem:[%s5 + $0x320] sm:$0xff]
  %v1543 = vld [vmem:[%s5 + $0x328] sm:$0xff]
  %v1544 = vld [vmem:[%s5 + $0x330] sm:$0xff]
  %v1545 = vld [vmem:[%s5 + $0x338] sm:$0xff]
  %v1546 = vld [vmem:[%s5 + $0x340] sm:$0xff]
  %v1547 = vld [vmem:[%s5 + $0x348] sm:$0xff]
  %v1548 = vld [vmem:[%s5 + $0x350] sm:$0xff]
  %v1549 = vld [vmem:[%s5 + $0x358] sm:$0xff]
  %v1550 = vld [vmem:[%s5 + $0x360] sm:$0xff]
  %v1551 = vld [vmem:[%s5 + $0x368] sm:$0xff]
  %v1552 = vld [vmem:[%s5 + $0x370] sm:$0xff]
  %v1553 = vld [vmem:[%s5 + $0x378] sm:$0xff]
  %v1554 = vld [vmem:[%s5 + $0x380] sm:$0xff]
  %v1555 = vld [vmem:[%s5 + $0x388] sm:$0xff]
  %v1556 = vld [vmem:[%s5 + $0x390] sm:$0xff]
  %v1557 = vld [vmem:[%s5 + $0x398] sm:$0xff]
  %v1558 = vld [vmem:[%s5 + $0x3a0] sm:$0xff]
  %v1559 = vld [vmem:[%s5 + $0x3a8] sm:$0xff]
  %v1560 = vld [vmem:[%s5 + $0x3b0] sm:$0xff]
  %v1561 = vld [vmem:[%s5 + $0x3b8] sm:$0xff]
  %v1562 = vld [vmem:[%s5 + $0x3c0] sm:$0xff]
  %v1563 = vld [vmem:[%s5 + $0x3c8] sm:$0xff]
  %v1564 = vld [vmem:[%s5 + $0x3d0] sm:$0xff]
  %v1565 = vld [vmem:[%s5 + $0x3d8] sm:$0xff]
  %v1566 = vld [vmem:[%s5 + $0x3e0] sm:$0xff]
  %v1567 = vld [vmem:[%s5 + $0x3e8] sm:$0xff]
  %v1568 = vld [vmem:[%s5 + $0x3f0] sm:$0xff]
  %v1569 = vld [vmem:[%s5 + $0x3f8] sm:$0xff]
  %v1570 = vld [vmem:[%s5 + $0x400] sm:$0xff]
  %v1571 = vld [vmem:[%s5 + $0x408] sm:$0xff]
  %v1572 = vld [vmem:[%s5 + $0x410] sm:$0xff]
  %v1573 = vld [vmem:[%s5 + $0x418] sm:$0xff]
  %v1574 = vld [vmem:[%s5 + $0x420] sm:$0xff]
  %v1575 = vld [vmem:[%s5 + $0x428] sm:$0xff]
  %v1576 = vld [vmem:[%s5 + $0x430] sm:$0xff]
  %v1577 = vld [vmem:[%s5 + $0x438] sm:$0xff]
  %v1578 = vld [vmem:[%s5 + $0x440] sm:$0xff]
  %v1579 = vld [vmem:[%s5 + $0x448] sm:$0xff]
  %v1580 = vld [vmem:[%s5 + $0x450] sm:$0xff]
  %v1581 = vld [vmem:[%s5 + $0x458] sm:$0xff]
  %v1582 = vld [vmem:[%s5 + $0x460] sm:$0xff]
  %v1583 = vld [vmem:[%s5 + $0x468] sm:$0xff]
  %v1584 = vld [vmem:[%s5 + $0x470] sm:$0xff]
  %v1585 = vld [vmem:[%s5 + $0x478] sm:$0xff]
  %v1586 = vld [vmem:[%s5 + $0x480] sm:$0xff]
  %v1587 = vld [vmem:[%s5 + $0x488] sm:$0xff]
  %v1588 = vld [vmem:[%s5 + $0x490] sm:$0xff]
  %v1589 = vld [vmem:[%s5 + $0x498] sm:$0xff]
  %v1590 = vld [vmem:[%s5 + $0x4a0] sm:$0xff]
  %v1591 = vld [vmem:[%s5 + $0x4a8] sm:$0xff]
  %v1592 = vld [vmem:[%s5 + $0x4b0] sm:$0xff]
  %v1593 = vld [vmem:[%s5 + $0x4b8] sm:$0xff]
  %v1594 = vld [vmem:[%s5 + $0x4c0] sm:$0xff]
  %v1595 = vld [vmem:[%s5 + $0x4c8] sm:$0xff]
  %v1596 = vld [vmem:[%s5 + $0x4d0] sm:$0xff]
  %v1597 = vld [vmem:[%s5 + $0x4d8] sm:$0xff]
  %v1598 = vld [vmem:[%s5 + $0x4e0] sm:$0xff]
  %v1599 = vld [vmem:[%s5 + $0x4e8] sm:$0xff]
  %v1600 = vld [vmem:[%s5 + $0x4f0] sm:$0xff]
  %v1601 = vld [vmem:[%s5 + $0x4f8] sm:$0xff]
  %v1602 = vld [vmem:[%s5 + $0x500] sm:$0xff]
  %v1603 = vld [vmem:[%s5 + $0x508] sm:$0xff]
  %v1604 = vld [vmem:[%s5 + $0x510] sm:$0xff]
  %v1605 = vld [vmem:[%s5 + $0x518] sm:$0xff]
  %v1606 = vld [vmem:[%s5 + $0x520] sm:$0xff]
  %v1607 = vld [vmem:[%s5 + $0x528] sm:$0xff]
  %v1608 = vld [vmem:[%s5 + $0x530] sm:$0xff]
  %v1609 = vld [vmem:[%s5 + $0x538] sm:$0xff]
  %v1610 = vld [vmem:[%s5 + $0x540] sm:$0xff]
  %v1611 = vld [vmem:[%s5 + $0x548] sm:$0xff]
  %v1612 = vld [vmem:[%s5 + $0x550] sm:$0xff]
  %v1613 = vld [vmem:[%s5 + $0x558] sm:$0xff]
  %v1614 = vld [vmem:[%s5 + $0x560] sm:$0xff]
  %v1615 = vld [vmem:[%s5 + $0x568] sm:$0xff]
  %v1616 = vld [vmem:[%s5 + $0x570] sm:$0xff]
  %v1617 = vld [vmem:[%s5 + $0x578] sm:$0xff]
  %v1618 = vld [vmem:[%s5 + $0x580] sm:$0xff]
  %v1619 = vld [vmem:[%s5 + $0x588] sm:$0xff]
  %v1620 = vld [vmem:[%s5 + $0x590] sm:$0xff]
  %v1621 = vld [vmem:[%s5 + $0x598] sm:$0xff]
  %v1622 = vld [vmem:[%s5 + $0x5a0] sm:$0xff]
  %v1623 = vld [vmem:[%s5 + $0x5a8] sm:$0xff]
  %v1624 = vld [vmem:[%s5 + $0x5b0] sm:$0xff]
  %v1625 = vld [vmem:[%s5 + $0x5b8] sm:$0xff]
  %v1626 = vld [vmem:[%s5 + $0x5c0] sm:$0xff]
  %v1627 = vld [vmem:[%s5 + $0x5c8] sm:$0xff]
  %v1628 = vld [vmem:[%s5 + $0x5d0] sm:$0xff]
  %v1629 = vld [vmem:[%s5 + $0x5d8] sm:$0xff]
  %v1630 = vld [vmem:[%s5 + $0x5e0] sm:$0xff]
  %v1631 = vld [vmem:[%s5 + $0x5e8] sm:$0xff]
  %v1632 = vld [vmem:[%s5 + $0x5f0] sm:$0xff]
  %v1633 = vld [vmem:[%s5 + $0x5f8] sm:$0xff]
  %v1634 = vld [vmem:[%s5 + $0x600] sm:$0xff]
  %v1635 = vld [vmem:[%s5 + $0x608] sm:$0xff]
  %v1636 = vld [vmem:[%s5 + $0x610] sm:$0xff]
  %v1637 = vld [vmem:[%s5 + $0x618] sm:$0xff]
  %v1638 = vld [vmem:[%s5 + $0x620] sm:$0xff]
  %v1639 = vld [vmem:[%s5 + $0x628] sm:$0xff]
  %v1640 = vld [vmem:[%s5 + $0x630] sm:$0xff]
  %v1641 = vld [vmem:[%s5 + $0x638] sm:$0xff]
  %v1642 = vld [vmem:[%s6] sm:$0xf]
  %v1644 = vlaneseq
  %v1645 = vshrl.u32 %v1644, 7
  %v1646 = vsub.s32 0, %v1645
  %v1647 = vrot.slane %v1642, %v1646
  %v1648 = vlaneseq
  %v1649 = vshrl.u32 %v1648, 7
  %v1650 = vsub.s32 1, %v1649
  %v1651 = vrot.slane %v1642, %v1650
  %v1652 = vlaneseq
  %v1653 = vshrl.u32 %v1652, 7
  %v1654 = vsub.s32 2, %v1653
  %v1655 = vrot.slane %v1642, %v1654
  %v1656 = vlaneseq
  %v1657 = vshrl.u32 %v1656, 7
  %v1658 = vsub.s32 3, %v1657
  %v1659 = vrot.slane %v1642, %v1658
  %vm1664 = vcmask 130048
  %v1666 = vsel %vm1664, %v1441, 0
  %1668 = vmatprep.subr.mxu0 %v1503
  %1669 = vmatpush1.msra.mxu0 %v1502
  %1670 = vmatprep.subr.mxu0 %v1499
  %1671 = vmatpush1.msra.mxu0 %v1498
  %1672 = vmatprep.subr.mxu0 %v1495
  %1673 = vmatpush1.msra.mxu0 %v1494
  %1674 = vmatprep.subr.mxu0 %v1491
  %1675 = vmatpush1.msra.mxu0 %v1490
  %1676 = vmatprep.subr.mxu0 %v1487
  %1677 = vmatpush1.msra.mxu0 %v1486
  %1678 = vmatprep.subr.mxu0 %v1483
  %1679 = vmatpush1.msra.mxu0 %v1482
  %1680 = vmatprep.subr.mxu0 %v1479
  %1681 = vmatpush1.msra.mxu0 %v1478
  %1682 = vmatprep.subr.mxu0 %v1475
  %1683 = vmatpush1.msra.mxu0 %v1474
  %1684 = vmatprep.subr.mxu0 %v1471
  %1685 = vmatpush1.msra.mxu0 %v1470
  %1686 = vmatprep.subr.mxu0 %v1467
  %1687 = vmatpush1.msra.mxu0 %v1466
  %1688 = vmatprep.subr.mxu0 %v1463
  %1689 = vmatpush1.msra.mxu0 %v1462
  %1690 = vmatprep.subr.mxu0 %v1459
  %1691 = vmatpush1.msra.mxu0 %v1458
  %1692 = vmatprep.subr.mxu0 %v1455
  %1693 = vmatpush1.msra.mxu0 %v1454
  %1694 = vmatprep.subr.mxu0 %v1451
  %1695 = vmatpush1.msra.mxu0 %v1450
  %1696 = vmatprep.subr.mxu0 %v1447
  %1697 = vmatpush1.msra.mxu0 %v1446
  %1698 = vmatprep.subr.mxu0 %v1443
  %1699 = vmatpush1.msra.mxu0 %v1442
  %1700 = vmatprep.subr.mxu0 %v1567
  %1701 = vmatpush2.msra.mxu0 %v1566
  %1702 = vmatprep.subr.mxu0 %v1563
  %1703 = vmatpush2.msra.mxu0 %v1562
  %1704 = vmatprep.subr.mxu0 %v1559
  %1705 = vmatpush2.msra.mxu0 %v1558
  %1706 = vmatprep.subr.mxu0 %v1555
  %1707 = vmatpush2.msra.mxu0 %v1554
  %1708 = vmatprep.subr.mxu0 %v1551
  %1709 = vmatpush2.msra.mxu0 %v1550
  %1710 = vmatprep.subr.mxu0 %v1547
  %1711 = vmatpush2.msra.mxu0 %v1546
  %1712 = vmatprep.subr.mxu0 %v1543
  %1713 = vmatpush2.msra.mxu0 %v1542
  %1714 = vmatprep.subr.mxu0 %v1539
  %1715 = vmatpush2.msra.mxu0 %v1538
  %1716 = vmatprep.subr.mxu0 %v1535
  %1717 = vmatpush2.msra.mxu0 %v1534
  %1718 = vmatprep.subr.mxu0 %v1531
  %1719 = vmatpush2.msra.mxu0 %v1530
  %1720 = vmatprep.subr.mxu0 %v1527
  %1721 = vmatpush2.msra.mxu0 %v1526
  %1722 = vmatprep.subr.mxu0 %v1523
  %1723 = vmatpush2.msra.mxu0 %v1522
  %1724 = vmatprep.subr.mxu0 %v1519
  %1725 = vmatpush2.msra.mxu0 %v1518
  %1726 = vmatprep.subr.mxu0 %v1515
  %1727 = vmatpush2.msra.mxu0 %v1514
  %1728 = vmatprep.subr.mxu0 %v1511
  %1729 = vmatpush2.msra.mxu0 %v1510
  %1730 = vmatprep.subr.mxu0 %v1507
  %1731 = vmatpush2.msra.mxu0 %v1506
  %1732 = vmatprep.mubr.f32.mxu0 %v1439
  %1733 = vmatmul.mubr.f32.gmra.mxu0 %v1438
  %v1734 = vpop.f32.mrf.mxu0
  %v1735 = vadd.f32 %v1647, %v1734
  %v1736 = vpop.f32.mrf.mxu0
  %v1737 = vadd.f32 %v1651, %v1736
  %1738 = vdwg.mxu0
  %1739 = vmatprep.subr.mxu0 %v1631
  %1740 = vmatpush1.msra.mxu0 %v1630
  %1741 = vmatprep.subr.mxu0 %v1627
  %1742 = vmatpush1.msra.mxu0 %v1626
  %1743 = vmatprep.subr.mxu0 %v1623
  %1744 = vmatpush1.msra.mxu0 %v1622
  %1745 = vmatprep.subr.mxu0 %v1619
  %1746 = vmatpush1.msra.mxu0 %v1618
  %1747 = vmatprep.subr.mxu0 %v1615
  %1748 = vmatpush1.msra.mxu0 %v1614
  %1749 = vmatprep.subr.mxu0 %v1611
  %1750 = vmatpush1.msra.mxu0 %v1610
  %1751 = vmatprep.subr.mxu0 %v1607
  %1752 = vmatpush1.msra.mxu0 %v1606
  %1753 = vmatprep.subr.mxu0 %v1603
  %1754 = vmatpush1.msra.mxu0 %v1602
  %1755 = vmatprep.subr.mxu0 %v1599
  %1756 = vmatpush1.msra.mxu0 %v1598
  %1757 = vmatprep.subr.mxu0 %v1595
  %1758 = vmatpush1.msra.mxu0 %v1594
  %1759 = vmatprep.subr.mxu0 %v1591
  %1760 = vmatpush1.msra.mxu0 %v1590
  %1761 = vmatprep.subr.mxu0 %v1587
  %1762 = vmatpush1.msra.mxu0 %v1586
  %1763 = vmatprep.subr.mxu0 %v1583
  %1764 = vmatpush1.msra.mxu0 %v1582
  %1765 = vmatprep.subr.mxu0 %v1579
  %1766 = vmatpush1.msra.mxu0 %v1578
  %1767 = vmatprep.subr.mxu0 %v1575
  %1768 = vmatpush1.msra.mxu0 %v1574
  %1769 = vmatprep.subr.mxu0 %v1571
  %1770 = vmatpush1.msra.mxu0 %v1570
  %1771 = vmatprep.subr.mxu0 0.0
  %1772 = vmatpush2.msra.mxu0 0.0
  %1773 = vmatprep.subr.mxu0 0.0
  %1774 = vmatpush2.msra.mxu0 0.0
  %1775 = vmatprep.subr.mxu0 0.0
  %1776 = vmatpush2.msra.mxu0 0.0
  %1777 = vmatprep.subr.mxu0 0.0
  %1778 = vmatpush2.msra.mxu0 0.0
  %1779 = vmatprep.subr.mxu0 0.0
  %1780 = vmatpush2.msra.mxu0 0.0
  %1781 = vmatprep.subr.mxu0 0.0
  %1782 = vmatpush2.msra.mxu0 0.0
  %1783 = vmatprep.subr.mxu0 0.0
  %1784 = vmatpush2.msra.mxu0 0.0
  %1785 = vmatprep.subr.mxu0 0.0
  %1786 = vmatpush2.msra.mxu0 0.0
  %1787 = vmatprep.subr.mxu0 0.0
  %1788 = vmatpush2.msra.mxu0 0.0
  %1789 = vmatprep.subr.mxu0 0.0
  %1790 = vmatpush2.msra.mxu0 0.0
  %1791 = vmatprep.subr.mxu0 0.0
  %1792 = vmatpush2.msra.mxu0 0.0
  %1793 = vmatprep.subr.mxu0 0.0
  %1794 = vmatpush2.msra.mxu0 0.0
  %1795 = vmatprep.subr.mxu0 0.0
  %1796 = vmatpush2.msra.mxu0 0.0
  %1797 = vmatprep.subr.mxu0 0.0
  %1798 = vmatpush2.msra.mxu0 0.0
  %1799 = vmatprep.subr.mxu0 %v1639
  %1800 = vmatpush2.msra.mxu0 %v1638
  %1801 = vmatprep.subr.mxu0 %v1635
  %1802 = vmatpush2.msra.mxu0 %v1634
  %1803 = vmatprep.mubr.f32.mxu0 %v1666
  %1804 = vmatmul.mubr.f32.gmra.mxu0 %v1440
  %v1805 = vpop.f32.mrf.mxu0
  %v1806 = vadd.f32 %v1735, %v1805
  %v1807 = vpop.f32.mrf.mxu0
  %v1808 = vadd.f32 %v1737, %v1807
  %1809 = vdwg.mxu0
  %1810 = vmatprep.subr.mxu0 %v1505
  %1811 = vmatpush1.msra.mxu0 %v1504
  %1812 = vmatprep.subr.mxu0 %v1501
  %1813 = vmatpush1.msra.mxu0 %v1500
  %1814 = vmatprep.subr.mxu0 %v1497
  %1815 = vmatpush1.msra.mxu0 %v1496
  %1816 = vmatprep.subr.mxu0 %v1493
  %1817 = vmatpush1.msra.mxu0 %v1492
  %1818 = vmatprep.subr.mxu0 %v1489
  %1819 = vmatpush1.msra.mxu0 %v1488
  %1820 = vmatprep.subr.mxu0 %v1485
  %1821 = vmatpush1.msra.mxu0 %v1484
  %1822 = vmatprep.subr.mxu0 %v1481
  %1823 = vmatpush1.msra.mxu0 %v1480
  %1824 = vmatprep.subr.mxu0 %v1477
  %1825 = vmatpush1.msra.mxu0 %v1476
  %1826 = vmatprep.subr.mxu0 %v1473
  %1827 = vmatpush1.msra.mxu0 %v1472
  %1828 = vmatprep.subr.mxu0 %v1469
  %1829 = vmatpush1.msra.mxu0 %v1468
  %1830 = vmatprep.subr.mxu0 %v1465
  %1831 = vmatpush1.msra.mxu0 %v1464
  %1832 = vmatprep.subr.mxu0 %v1461
  %1833 = vmatpush1.msra.mxu0 %v1460
  %1834 = vmatprep.subr.mxu0 %v1457
  %1835 = vmatpush1.msra.mxu0 %v1456
  %1836 = vmatprep.subr.mxu0 %v1453
  %1837 = vmatpush1.msra.mxu0 %v1452
  %1838 = vmatprep.subr.mxu0 %v1449
  %1839 = vmatpush1.msra.mxu0 %v1448
  %1840 = vmatprep.subr.mxu0 %v1445
  %1841 = vmatpush1.msra.mxu0 %v1444
  %1842 = vmatprep.subr.mxu0 %v1569
  %1843 = vmatpush2.msra.mxu0 %v1568
  %1844 = vmatprep.subr.mxu0 %v1565
  %1845 = vmatpush2.msra.mxu0 %v1564
  %1846 = vmatprep.subr.mxu0 %v1561
  %1847 = vmatpush2.msra.mxu0 %v1560
  %1848 = vmatprep.subr.mxu0 %v1557
  %1849 = vmatpush2.msra.mxu0 %v1556
  %1850 = vmatprep.subr.mxu0 %v1553
  %1851 = vmatpush2.msra.mxu0 %v1552
  %1852 = vmatprep.subr.mxu0 %v1549
  %1853 = vmatpush2.msra.mxu0 %v1548
  %1854 = vmatprep.subr.mxu0 %v1545
  %1855 = vmatpush2.msra.mxu0 %v1544
  %1856 = vmatprep.subr.mxu0 %v1541
  %1857 = vmatpush2.msra.mxu0 %v1540
  %1858 = vmatprep.subr.mxu0 %v1537
  %1859 = vmatpush2.msra.mxu0 %v1536
  %1860 = vmatprep.subr.mxu0 %v1533
  %1861 = vmatpush2.msra.mxu0 %v1532
  %1862 = vmatprep.subr.mxu0 %v1529
  %1863 = vmatpush2.msra.mxu0 %v1528
  %1864 = vmatprep.subr.mxu0 %v1525
  %1865 = vmatpush2.msra.mxu0 %v1524
  %1866 = vmatprep.subr.mxu0 %v1521
  %1867 = vmatpush2.msra.mxu0 %v1520
  %1868 = vmatprep.subr.mxu0 %v1517
  %1869 = vmatpush2.msra.mxu0 %v1516
  %1870 = vmatprep.subr.mxu0 %v1513
  %1871 = vmatpush2.msra.mxu0 %v1512
  %1872 = vmatprep.subr.mxu0 %v1509
  %1873 = vmatpush2.msra.mxu0 %v1508
  %1874 = vmatprep.mubr.f32.mxu0 %v1439
  %1875 = vmatmul.mubr.f32.gmra.mxu0 %v1438
  %v1876 = vpop.f32.mrf.mxu0
  %v1877 = vadd.f32 %v1655, %v1876
  %v1878 = vpop.f32.mrf.mxu0
  %v1879 = vadd.f32 %v1659, %v1878
  %1880 = vdwg.mxu0
  %1881 = vmatprep.subr.mxu0 %v1633
  %1882 = vmatpush1.msra.mxu0 %v1632
  %1883 = vmatprep.subr.mxu0 %v1629
  %1884 = vmatpush1.msra.mxu0 %v1628
  %1885 = vmatprep.subr.mxu0 %v1625
  %1886 = vmatpush1.msra.mxu0 %v1624
  %1887 = vmatprep.subr.mxu0 %v1621
  %1888 = vmatpush1.msra.mxu0 %v1620
  %1889 = vmatprep.subr.mxu0 %v1617
  %1890 = vmatpush1.msra.mxu0 %v1616
  %1891 = vmatprep.subr.mxu0 %v1613
  %1892 = vmatpush1.msra.mxu0 %v1612
  %1893 = vmatprep.subr.mxu0 %v1609
  %1894 = vmatpush1.msra.mxu0 %v1608
  %1895 = vmatprep.subr.mxu0 %v1605
  %1896 = vmatpush1.msra.mxu0 %v1604
  %1897 = vmatprep.subr.mxu0 %v1601
  %1898 = vmatpush1.msra.mxu0 %v1600
  %1899 = vmatprep.subr.mxu0 %v1597
  %1900 = vmatpush1.msra.mxu0 %v1596
  %1901 = vmatprep.subr.mxu0 %v1593
  %1902 = vmatpush1.msra.mxu0 %v1592
  %1903 = vmatprep.subr.mxu0 %v1589
  %1904 = vmatpush1.msra.mxu0 %v1588
  %1905 = vmatprep.subr.mxu0 %v1585
  %1906 = vmatpush1.msra.mxu0 %v1584
  %1907 = vmatprep.subr.mxu0 %v1581
  %1908 = vmatpush1.msra.mxu0 %v1580
  %1909 = vmatprep.subr.mxu0 %v1577
  %1910 = vmatpush1.msra.mxu0 %v1576
  %1911 = vmatprep.subr.mxu0 %v1573
  %1912 = vmatpush1.msra.mxu0 %v1572
  %1913 = vmatprep.subr.mxu0 0.0
  %1914 = vmatpush2.msra.mxu0 0.0
  %1915 = vmatprep.subr.mxu0 0.0
  %1916 = vmatpush2.msra.mxu0 0.0
  %1917 = vmatprep.subr.mxu0 0.0
  %1918 = vmatpush2.msra.mxu0 0.0
  %1919 = vmatprep.subr.mxu0 0.0
  %1920 = vmatpush2.msra.mxu0 0.0
  %1921 = vmatprep.subr.mxu0 0.0
  %1922 = vmatpush2.msra.mxu0 0.0
  %1923 = vmatprep.subr.mxu0 0.0
  %1924 = vmatpush2.msra.mxu0 0.0
  %1925 = vmatprep.subr.mxu0 0.0
  %1926 = vmatpush2.msra.mxu0 0.0
  %1927 = vmatprep.subr.mxu0 0.0
  %1928 = vmatpush2.msra.mxu0 0.0
  %1929 = vmatprep.subr.mxu0 0.0
  %1930 = vmatpush2.msra.mxu0 0.0
  %1931 = vmatprep.subr.mxu0 0.0
  %1932 = vmatpush2.msra.mxu0 0.0
  %1933 = vmatprep.subr.mxu0 0.0
  %1934 = vmatpush2.msra.mxu0 0.0
  %1935 = vmatprep.subr.mxu0 0.0
  %1936 = vmatpush2.msra.mxu0 0.0
  %1937 = vmatprep.subr.mxu0 0.0
  %1938 = vmatpush2.msra.mxu0 0.0
  %1939 = vmatprep.subr.mxu0 0.0
  %1940 = vmatpush2.msra.mxu0 0.0
  %1941 = vmatprep.subr.mxu0 %v1641
  %1942 = vmatpush2.msra.mxu0 %v1640
  %1943 = vmatprep.subr.mxu0 %v1637
  %1944 = vmatpush2.msra.mxu0 %v1636
  %1945 = vmatprep.mubr.f32.mxu0 %v1666
  %1946 = vmatmul.mubr.f32.gmra.mxu0 %v1440
  %v1947 = vpop.f32.mrf.mxu0
  %v1948 = vadd.f32 %v1877, %v1947
  %v1949 = vpop.f32.mrf.mxu0
  %v1950 = vadd.f32 %v1879, %v1949
  %1951 = vdwg.mxu0
  %v1952 = vmax.f32 %v1806, 0.0
  %v1953 = vmax.f32 %v1808, 0.0
  %v1954 = vmax.f32 %v1948, 0.0
  %v1955 = vmax.f32 %v1950, 0.0
  %v1956 = vld [vmem:[%s7] sm:$0xff]
  %v1957 = vld [vmem:[%s7 + $0x8] sm:$0xff]
  %v1958 = vld [vmem:[%s7 + $0x10] sm:$0xff]
  %v1959 = vld [vmem:[%s7 + $0x18] sm:$0xff]
  %v1960 = vld [vmem:[%s7 + $0x20] sm:$0xff]
  %v1961 = vld [vmem:[%s7 + $0x28] sm:$0xff]
  %v1962 = vld [vmem:[%s7 + $0x30] sm:$0xff]
  %v1963 = vld [vmem:[%s7 + $0x38] sm:$0xff]
  %v1964 = vld [vmem:[%s7 + $0x40] sm:$0xff]
  %v1965 = vld [vmem:[%s7 + $0x48] sm:$0xff]
  %v1966 = vld [vmem:[%s7 + $0x50] sm:$0xff]
  %v1967 = vld [vmem:[%s7 + $0x58] sm:$0xff]
  %v1968 = vld [vmem:[%s7 + $0x60] sm:$0xff]
  %v1969 = vld [vmem:[%s7 + $0x68] sm:$0xff]
  %v1970 = vld [vmem:[%s7 + $0x70] sm:$0xff]
  %v1971 = vld [vmem:[%s7 + $0x78] sm:$0xff]
  %v1972 = vld [vmem:[%s7 + $0x80] sm:$0xff]
  %v1973 = vld [vmem:[%s7 + $0x88] sm:$0xff]
  %v1974 = vld [vmem:[%s7 + $0x90] sm:$0xff]
  %v1975 = vld [vmem:[%s7 + $0x98] sm:$0xff]
  %v1976 = vld [vmem:[%s7 + $0xa0] sm:$0xff]
  %v1977 = vld [vmem:[%s7 + $0xa8] sm:$0xff]
  %v1978 = vld [vmem:[%s7 + $0xb0] sm:$0xff]
  %v1979 = vld [vmem:[%s7 + $0xb8] sm:$0xff]
  %v1980 = vld [vmem:[%s7 + $0xc0] sm:$0xff]
  %v1981 = vld [vmem:[%s7 + $0xc8] sm:$0xff]
  %v1982 = vld [vmem:[%s7 + $0xd0] sm:$0xff]
  %v1983 = vld [vmem:[%s7 + $0xd8] sm:$0xff]
  %v1984 = vld [vmem:[%s7 + $0xe0] sm:$0xff]
  %v1985 = vld [vmem:[%s7 + $0xe8] sm:$0xff]
  %v1986 = vld [vmem:[%s7 + $0xf0] sm:$0xff]
  %v1987 = vld [vmem:[%s7 + $0xf8] sm:$0xff]
  %v1988 = vld [vmem:[%s7 + $0x100] sm:$0xff]
  %v1989 = vld [vmem:[%s7 + $0x108] sm:$0xff]
  %v1990 = vld [vmem:[%s7 + $0x110] sm:$0xff]
  %v1991 = vld [vmem:[%s7 + $0x118] sm:$0xff]
  %v1992 = vld [vmem:[%s7 + $0x120] sm:$0xff]
  %v1993 = vld [vmem:[%s7 + $0x128] sm:$0xff]
  %v1994 = vld [vmem:[%s7 + $0x130] sm:$0xff]
  %v1995 = vld [vmem:[%s7 + $0x138] sm:$0xff]
  %v1996 = vld [vmem:[%s7 + $0x140] sm:$0xff]
  %v1997 = vld [vmem:[%s7 + $0x148] sm:$0xff]
  %v1998 = vld [vmem:[%s7 + $0x150] sm:$0xff]
  %v1999 = vld [vmem:[%s7 + $0x158] sm:$0xff]
  %v2000 = vld [vmem:[%s7 + $0x160] sm:$0xff]
  %v2001 = vld [vmem:[%s7 + $0x168] sm:$0xff]
  %v2002 = vld [vmem:[%s7 + $0x170] sm:$0xff]
  %v2003 = vld [vmem:[%s7 + $0x178] sm:$0xff]
  %v2004 = vld [vmem:[%s7 + $0x180] sm:$0xff]
  %v2005 = vld [vmem:[%s7 + $0x188] sm:$0xff]
  %v2006 = vld [vmem:[%s7 + $0x190] sm:$0xff]
  %v2007 = vld [vmem:[%s7 + $0x198] sm:$0xff]
  %v2008 = vld [vmem:[%s7 + $0x1a0] sm:$0xff]
  %v2009 = vld [vmem:[%s7 + $0x1a8] sm:$0xff]
  %v2010 = vld [vmem:[%s7 + $0x1b0] sm:$0xff]
  %v2011 = vld [vmem:[%s7 + $0x1b8] sm:$0xff]
  %v2012 = vld [vmem:[%s7 + $0x1c0] sm:$0xff]
  %v2013 = vld [vmem:[%s7 + $0x1c8] sm:$0xff]
  %v2014 = vld [vmem:[%s7 + $0x1d0] sm:$0xff]
  %v2015 = vld [vmem:[%s7 + $0x1d8] sm:$0xff]
  %v2016 = vld [vmem:[%s7 + $0x1e0] sm:$0xff]
  %v2017 = vld [vmem:[%s7 + $0x1e8] sm:$0xff]
  %v2018 = vld [vmem:[%s7 + $0x1f0] sm:$0xff]
  %v2019 = vld [vmem:[%s7 + $0x1f8] sm:$0xff]
  %v2020 = vld [vmem:[%s7 + $0x200] sm:$0xff]
  %v2021 = vld [vmem:[%s7 + $0x208] sm:$0xff]
  %v2022 = vld [vmem:[%s7 + $0x210] sm:$0xff]
  %v2023 = vld [vmem:[%s7 + $0x218] sm:$0xff]
  %v2024 = vld [vmem:[%s7 + $0x220] sm:$0xff]
  %v2025 = vld [vmem:[%s7 + $0x228] sm:$0xff]
  %v2026 = vld [vmem:[%s7 + $0x230] sm:$0xff]
  %v2027 = vld [vmem:[%s7 + $0x238] sm:$0xff]
  %v2028 = vld [vmem:[%s7 + $0x240] sm:$0xff]
  %v2029 = vld [vmem:[%s7 + $0x248] sm:$0xff]
  %v2030 = vld [vmem:[%s7 + $0x250] sm:$0xff]
  %v2031 = vld [vmem:[%s7 + $0x258] sm:$0xff]
  %v2032 = vld [vmem:[%s7 + $0x260] sm:$0xff]
  %v2033 = vld [vmem:[%s7 + $0x268] sm:$0xff]
  %v2034 = vld [vmem:[%s7 + $0x270] sm:$0xff]
  %v2035 = vld [vmem:[%s7 + $0x278] sm:$0xff]
  %v2036 = vld [vmem:[%s7 + $0x280] sm:$0xff]
  %v2037 = vld [vmem:[%s7 + $0x288] sm:$0xff]
  %v2038 = vld [vmem:[%s7 + $0x290] sm:$0xff]
  %v2039 = vld [vmem:[%s7 + $0x298] sm:$0xff]
  %v2040 = vld [vmem:[%s7 + $0x2a0] sm:$0xff]
  %v2041 = vld [vmem:[%s7 + $0x2a8] sm:$0xff]
  %v2042 = vld [vmem:[%s7 + $0x2b0] sm:$0xff]
  %v2043 = vld [vmem:[%s7 + $0x2b8] sm:$0xff]
  %v2044 = vld [vmem:[%s7 + $0x2c0] sm:$0xff]
  %v2045 = vld [vmem:[%s7 + $0x2c8] sm:$0xff]
  %v2046 = vld [vmem:[%s7 + $0x2d0] sm:$0xff]
  %v2047 = vld [vmem:[%s7 + $0x2d8] sm:$0xff]
  %v2048 = vld [vmem:[%s7 + $0x2e0] sm:$0xff]
  %v2049 = vld [vmem:[%s7 + $0x2e8] sm:$0xff]
  %v2050 = vld [vmem:[%s7 + $0x2f0] sm:$0xff]
  %v2051 = vld [vmem:[%s7 + $0x2f8] sm:$0xff]
  %v2052 = vld [vmem:[%s7 + $0x300] sm:$0xff]
  %v2053 = vld [vmem:[%s7 + $0x308] sm:$0xff]
  %v2054 = vld [vmem:[%s7 + $0x310] sm:$0xff]
  %v2055 = vld [vmem:[%s7 + $0x318] sm:$0xff]
  %v2056 = vld [vmem:[%s7 + $0x320] sm:$0xff]
  %v2057 = vld [vmem:[%s7 + $0x328] sm:$0xff]
  %v2058 = vld [vmem:[%s7 + $0x330] sm:$0xff]
  %v2059 = vld [vmem:[%s7 + $0x338] sm:$0xff]
  %v2060 = vld [vmem:[%s7 + $0x340] sm:$0xff]
  %v2061 = vld [vmem:[%s7 + $0x348] sm:$0xff]
  %v2062 = vld [vmem:[%s7 + $0x350] sm:$0xff]
  %v2063 = vld [vmem:[%s7 + $0x358] sm:$0xff]
  %v2064 = vld [vmem:[%s7 + $0x360] sm:$0xff]
  %v2065 = vld [vmem:[%s7 + $0x368] sm:$0xff]
  %v2066 = vld [vmem:[%s7 + $0x370] sm:$0xff]
  %v2067 = vld [vmem:[%s7 + $0x378] sm:$0xff]
  %v2068 = vld [vmem:[%s7 + $0x380] sm:$0xff]
  %v2069 = vld [vmem:[%s7 + $0x388] sm:$0xff]
  %v2070 = vld [vmem:[%s7 + $0x390] sm:$0xff]
  %v2071 = vld [vmem:[%s7 + $0x398] sm:$0xff]
  %v2072 = vld [vmem:[%s7 + $0x3a0] sm:$0xff]
  %v2073 = vld [vmem:[%s7 + $0x3a8] sm:$0xff]
  %v2074 = vld [vmem:[%s7 + $0x3b0] sm:$0xff]
  %v2075 = vld [vmem:[%s7 + $0x3b8] sm:$0xff]
  %v2076 = vld [vmem:[%s7 + $0x3c0] sm:$0xff]
  %v2077 = vld [vmem:[%s7 + $0x3c8] sm:$0xff]
  %v2078 = vld [vmem:[%s7 + $0x3d0] sm:$0xff]
  %v2079 = vld [vmem:[%s7 + $0x3d8] sm:$0xff]
  %v2080 = vld [vmem:[%s7 + $0x3e0] sm:$0xff]
  %v2081 = vld [vmem:[%s7 + $0x3e8] sm:$0xff]
  %v2082 = vld [vmem:[%s7 + $0x3f0] sm:$0xff]
  %v2083 = vld [vmem:[%s7 + $0x3f8] sm:$0xff]
  %v2084 = vld [vmem:[%s7 + $0x400] sm:$0xff]
  %v2085 = vld [vmem:[%s7 + $0x408] sm:$0xff]
  %v2086 = vld [vmem:[%s7 + $0x410] sm:$0xff]
  %v2087 = vld [vmem:[%s7 + $0x418] sm:$0xff]
  %v2088 = vld [vmem:[%s7 + $0x420] sm:$0xff]
  %v2089 = vld [vmem:[%s7 + $0x428] sm:$0xff]
  %v2090 = vld [vmem:[%s7 + $0x430] sm:$0xff]
  %v2091 = vld [vmem:[%s7 + $0x438] sm:$0xff]
  %v2092 = vld [vmem:[%s7 + $0x440] sm:$0xff]
  %v2093 = vld [vmem:[%s7 + $0x448] sm:$0xff]
  %v2094 = vld [vmem:[%s7 + $0x450] sm:$0xff]
  %v2095 = vld [vmem:[%s7 + $0x458] sm:$0xff]
  %v2096 = vld [vmem:[%s7 + $0x460] sm:$0xff]
  %v2097 = vld [vmem:[%s7 + $0x468] sm:$0xff]
  %v2098 = vld [vmem:[%s7 + $0x470] sm:$0xff]
  %v2099 = vld [vmem:[%s7 + $0x478] sm:$0xff]
  %v2100 = vld [vmem:[%s7 + $0x480] sm:$0xff]
  %v2101 = vld [vmem:[%s7 + $0x488] sm:$0xff]
  %v2102 = vld [vmem:[%s7 + $0x490] sm:$0xff]
  %v2103 = vld [vmem:[%s7 + $0x498] sm:$0xff]
  %v2104 = vld [vmem:[%s7 + $0x4a0] sm:$0xff]
  %v2105 = vld [vmem:[%s7 + $0x4a8] sm:$0xff]
  %v2106 = vld [vmem:[%s7 + $0x4b0] sm:$0xff]
  %v2107 = vld [vmem:[%s7 + $0x4b8] sm:$0xff]
  %v2108 = vld [vmem:[%s7 + $0x4c0] sm:$0xff]
  %v2109 = vld [vmem:[%s7 + $0x4c8] sm:$0xff]
  %v2110 = vld [vmem:[%s7 + $0x4d0] sm:$0xff]
  %v2111 = vld [vmem:[%s7 + $0x4d8] sm:$0xff]
  %v2112 = vld [vmem:[%s7 + $0x4e0] sm:$0xff]
  %v2113 = vld [vmem:[%s7 + $0x4e8] sm:$0xff]
  %v2114 = vld [vmem:[%s7 + $0x4f0] sm:$0xff]
  %v2115 = vld [vmem:[%s7 + $0x4f8] sm:$0xff]
  %v2116 = vld [vmem:[%s7 + $0x500] sm:$0xff]
  %v2117 = vld [vmem:[%s7 + $0x508] sm:$0xff]
  %v2118 = vld [vmem:[%s7 + $0x510] sm:$0xff]
  %v2119 = vld [vmem:[%s7 + $0x518] sm:$0xff]
  %v2120 = vld [vmem:[%s7 + $0x520] sm:$0xff]
  %v2121 = vld [vmem:[%s7 + $0x528] sm:$0xff]
  %v2122 = vld [vmem:[%s7 + $0x530] sm:$0xff]
  %v2123 = vld [vmem:[%s7 + $0x538] sm:$0xff]
  %v2124 = vld [vmem:[%s7 + $0x540] sm:$0xff]
  %v2125 = vld [vmem:[%s7 + $0x548] sm:$0xff]
  %v2126 = vld [vmem:[%s7 + $0x550] sm:$0xff]
  %v2127 = vld [vmem:[%s7 + $0x558] sm:$0xff]
  %v2128 = vld [vmem:[%s7 + $0x560] sm:$0xff]
  %v2129 = vld [vmem:[%s7 + $0x568] sm:$0xff]
  %v2130 = vld [vmem:[%s7 + $0x570] sm:$0xff]
  %v2131 = vld [vmem:[%s7 + $0x578] sm:$0xff]
  %v2132 = vld [vmem:[%s7 + $0x580] sm:$0xff]
  %v2133 = vld [vmem:[%s7 + $0x588] sm:$0xff]
  %v2134 = vld [vmem:[%s7 + $0x590] sm:$0xff]
  %v2135 = vld [vmem:[%s7 + $0x598] sm:$0xff]
  %v2136 = vld [vmem:[%s7 + $0x5a0] sm:$0xff]
  %v2137 = vld [vmem:[%s7 + $0x5a8] sm:$0xff]
  %v2138 = vld [vmem:[%s7 + $0x5b0] sm:$0xff]
  %v2139 = vld [vmem:[%s7 + $0x5b8] sm:$0xff]
  %v2140 = vld [vmem:[%s7 + $0x5c0] sm:$0xff]
  %v2141 = vld [vmem:[%s7 + $0x5c8] sm:$0xff]
  %v2142 = vld [vmem:[%s7 + $0x5d0] sm:$0xff]
  %v2143 = vld [vmem:[%s7 + $0x5d8] sm:$0xff]
  %v2144 = vld [vmem:[%s7 + $0x5e0] sm:$0xff]
  %v2145 = vld [vmem:[%s7 + $0x5e8] sm:$0xff]
  %v2146 = vld [vmem:[%s7 + $0x5f0] sm:$0xff]
  %v2147 = vld [vmem:[%s7 + $0x5f8] sm:$0xff]
  %v2148 = vld [vmem:[%s7 + $0x600] sm:$0xff]
  %v2149 = vld [vmem:[%s7 + $0x608] sm:$0xff]
  %v2150 = vld [vmem:[%s7 + $0x610] sm:$0xff]
  %v2151 = vld [vmem:[%s7 + $0x618] sm:$0xff]
  %v2152 = vld [vmem:[%s7 + $0x620] sm:$0xff]
  %v2153 = vld [vmem:[%s7 + $0x628] sm:$0xff]
  %v2154 = vld [vmem:[%s7 + $0x630] sm:$0xff]
  %v2155 = vld [vmem:[%s7 + $0x638] sm:$0xff]
  %v2156 = vld [vmem:[%s8] sm:$0xf]
  %v2158 = vlaneseq
  %v2159 = vshrl.u32 %v2158, 7
  %v2160 = vsub.s32 0, %v2159
  %v2161 = vrot.slane %v2156, %v2160
  %v2162 = vlaneseq
  %v2163 = vshrl.u32 %v2162, 7
  %v2164 = vsub.s32 1, %v2163
  %v2165 = vrot.slane %v2156, %v2164
  %v2166 = vlaneseq
  %v2167 = vshrl.u32 %v2166, 7
  %v2168 = vsub.s32 2, %v2167
  %v2169 = vrot.slane %v2156, %v2168
  %v2170 = vlaneseq
  %v2171 = vshrl.u32 %v2170, 7
  %v2172 = vsub.s32 3, %v2171
  %v2173 = vrot.slane %v2156, %v2172
  %v2179 = vsel %vm1664, %v1955, 0
  %2181 = vmatprep.subr.mxu0 %v2017
  %2182 = vmatpush1.msra.mxu0 %v2016
  %2183 = vmatprep.subr.mxu0 %v2013
  %2184 = vmatpush1.msra.mxu0 %v2012
  %2185 = vmatprep.subr.mxu0 %v2009
  %2186 = vmatpush1.msra.mxu0 %v2008
  %2187 = vmatprep.subr.mxu0 %v2005
  %2188 = vmatpush1.msra.mxu0 %v2004
  %2189 = vmatprep.subr.mxu0 %v2001
  %2190 = vmatpush1.msra.mxu0 %v2000
  %2191 = vmatprep.subr.mxu0 %v1997
  %2192 = vmatpush1.msra.mxu0 %v1996
  %2193 = vmatprep.subr.mxu0 %v1993
  %2194 = vmatpush1.msra.mxu0 %v1992
  %2195 = vmatprep.subr.mxu0 %v1989
  %2196 = vmatpush1.msra.mxu0 %v1988
  %2197 = vmatprep.subr.mxu0 %v1985
  %2198 = vmatpush1.msra.mxu0 %v1984
  %2199 = vmatprep.subr.mxu0 %v1981
  %2200 = vmatpush1.msra.mxu0 %v1980
  %2201 = vmatprep.subr.mxu0 %v1977
  %2202 = vmatpush1.msra.mxu0 %v1976
  %2203 = vmatprep.subr.mxu0 %v1973
  %2204 = vmatpush1.msra.mxu0 %v1972
  %2205 = vmatprep.subr.mxu0 %v1969
  %2206 = vmatpush1.msra.mxu0 %v1968
  %2207 = vmatprep.subr.mxu0 %v1965
  %2208 = vmatpush1.msra.mxu0 %v1964
  %2209 = vmatprep.subr.mxu0 %v1961
  %2210 = vmatpush1.msra.mxu0 %v1960
  %2211 = vmatprep.subr.mxu0 %v1957
  %2212 = vmatpush1.msra.mxu0 %v1956
  %2213 = vmatprep.subr.mxu0 %v2081
  %2214 = vmatpush2.msra.mxu0 %v2080
  %2215 = vmatprep.subr.mxu0 %v2077
  %2216 = vmatpush2.msra.mxu0 %v2076
  %2217 = vmatprep.subr.mxu0 %v2073
  %2218 = vmatpush2.msra.mxu0 %v2072
  %2219 = vmatprep.subr.mxu0 %v2069
  %2220 = vmatpush2.msra.mxu0 %v2068
  %2221 = vmatprep.subr.mxu0 %v2065
  %2222 = vmatpush2.msra.mxu0 %v2064
  %2223 = vmatprep.subr.mxu0 %v2061
  %2224 = vmatpush2.msra.mxu0 %v2060
  %2225 = vmatprep.subr.mxu0 %v2057
  %2226 = vmatpush2.msra.mxu0 %v2056
  %2227 = vmatprep.subr.mxu0 %v2053
  %2228 = vmatpush2.msra.mxu0 %v2052
  %2229 = vmatprep.subr.mxu0 %v2049
  %2230 = vmatpush2.msra.mxu0 %v2048
  %2231 = vmatprep.subr.mxu0 %v2045
  %2232 = vmatpush2.msra.mxu0 %v2044
  %2233 = vmatprep.subr.mxu0 %v2041
  %2234 = vmatpush2.msra.mxu0 %v2040
  %2235 = vmatprep.subr.mxu0 %v2037
  %2236 = vmatpush2.msra.mxu0 %v2036
  %2237 = vmatprep.subr.mxu0 %v2033
  %2238 = vmatpush2.msra.mxu0 %v2032
  %2239 = vmatprep.subr.mxu0 %v2029
  %2240 = vmatpush2.msra.mxu0 %v2028
  %2241 = vmatprep.subr.mxu0 %v2025
  %2242 = vmatpush2.msra.mxu0 %v2024
  %2243 = vmatprep.subr.mxu0 %v2021
  %2244 = vmatpush2.msra.mxu0 %v2020
  %2245 = vmatprep.mubr.f32.mxu0 %v1953
  %2246 = vmatmul.mubr.f32.gmra.mxu0 %v1952
  %v2247 = vpop.f32.mrf.mxu0
  %v2248 = vadd.f32 %v2161, %v2247
  %v2249 = vpop.f32.mrf.mxu0
  %v2250 = vadd.f32 %v2165, %v2249
  %2251 = vdwg.mxu0
  %2252 = vmatprep.subr.mxu0 %v2145
  %2253 = vmatpush1.msra.mxu0 %v2144
  %2254 = vmatprep.subr.mxu0 %v2141
  %2255 = vmatpush1.msra.mxu0 %v2140
  %2256 = vmatprep.subr.mxu0 %v2137
  %2257 = vmatpush1.msra.mxu0 %v2136
  %2258 = vmatprep.subr.mxu0 %v2133
  %2259 = vmatpush1.msra.mxu0 %v2132
  %2260 = vmatprep.subr.mxu0 %v2129
  %2261 = vmatpush1.msra.mxu0 %v2128
  %2262 = vmatprep.subr.mxu0 %v2125
  %2263 = vmatpush1.msra.mxu0 %v2124
  %2264 = vmatprep.subr.mxu0 %v2121
  %2265 = vmatpush1.msra.mxu0 %v2120
  %2266 = vmatprep.subr.mxu0 %v2117
  %2267 = vmatpush1.msra.mxu0 %v2116
  %2268 = vmatprep.subr.mxu0 %v2113
  %2269 = vmatpush1.msra.mxu0 %v2112
  %2270 = vmatprep.subr.mxu0 %v2109
  %2271 = vmatpush1.msra.mxu0 %v2108
  %2272 = vmatprep.subr.mxu0 %v2105
  %2273 = vmatpush1.msra.mxu0 %v2104
  %2274 = vmatprep.subr.mxu0 %v2101
  %2275 = vmatpush1.msra.mxu0 %v2100
  %2276 = vmatprep.subr.mxu0 %v2097
  %2277 = vmatpush1.msra.mxu0 %v2096
  %2278 = vmatprep.subr.mxu0 %v2093
  %2279 = vmatpush1.msra.mxu0 %v2092
  %2280 = vmatprep.subr.mxu0 %v2089
  %2281 = vmatpush1.msra.mxu0 %v2088
  %2282 = vmatprep.subr.mxu0 %v2085
  %2283 = vmatpush1.msra.mxu0 %v2084
  %2284 = vmatprep.subr.mxu0 0.0
  %2285 = vmatpush2.msra.mxu0 0.0
  %2286 = vmatprep.subr.mxu0 0.0
  %2287 = vmatpush2.msra.mxu0 0.0
  %2288 = vmatprep.subr.mxu0 0.0
  %2289 = vmatpush2.msra.mxu0 0.0
  %2290 = vmatprep.subr.mxu0 0.0
  %2291 = vmatpush2.msra.mxu0 0.0
  %2292 = vmatprep.subr.mxu0 0.0
  %2293 = vmatpush2.msra.mxu0 0.0
  %2294 = vmatprep.subr.mxu0 0.0
  %2295 = vmatpush2.msra.mxu0 0.0
  %2296 = vmatprep.subr.mxu0 0.0
  %2297 = vmatpush2.msra.mxu0 0.0
  %2298 = vmatprep.subr.mxu0 0.0
  %2299 = vmatpush2.msra.mxu0 0.0
  %2300 = vmatprep.subr.mxu0 0.0
  %2301 = vmatpush2.msra.mxu0 0.0
  %2302 = vmatprep.subr.mxu0 0.0
  %2303 = vmatpush2.msra.mxu0 0.0
  %2304 = vmatprep.subr.mxu0 0.0
  %2305 = vmatpush2.msra.mxu0 0.0
  %2306 = vmatprep.subr.mxu0 0.0
  %2307 = vmatpush2.msra.mxu0 0.0
  %2308 = vmatprep.subr.mxu0 0.0
  %2309 = vmatpush2.msra.mxu0 0.0
  %2310 = vmatprep.subr.mxu0 0.0
  %2311 = vmatpush2.msra.mxu0 0.0
  %2312 = vmatprep.subr.mxu0 %v2153
  %2313 = vmatpush2.msra.mxu0 %v2152
  %2314 = vmatprep.subr.mxu0 %v2149
  %2315 = vmatpush2.msra.mxu0 %v2148
  %2316 = vmatprep.mubr.f32.mxu0 %v2179
  %2317 = vmatmul.mubr.f32.gmra.mxu0 %v1954
  %v2318 = vpop.f32.mrf.mxu0
  %v2319 = vadd.f32 %v2248, %v2318
  %v2320 = vpop.f32.mrf.mxu0
  %v2321 = vadd.f32 %v2250, %v2320
  %2322 = vdwg.mxu0
  %2323 = vmatprep.subr.mxu0 %v2019
  %2324 = vmatpush1.msra.mxu0 %v2018
  %2325 = vmatprep.subr.mxu0 %v2015
  %2326 = vmatpush1.msra.mxu0 %v2014
  %2327 = vmatprep.subr.mxu0 %v2011
  %2328 = vmatpush1.msra.mxu0 %v2010
  %2329 = vmatprep.subr.mxu0 %v2007
  %2330 = vmatpush1.msra.mxu0 %v2006
  %2331 = vmatprep.subr.mxu0 %v2003
  %2332 = vmatpush1.msra.mxu0 %v2002
  %2333 = vmatprep.subr.mxu0 %v1999
  %2334 = vmatpush1.msra.mxu0 %v1998
  %2335 = vmatprep.subr.mxu0 %v1995
  %2336 = vmatpush1.msra.mxu0 %v1994
  %2337 = vmatprep.subr.mxu0 %v1991
  %2338 = vmatpush1.msra.mxu0 %v1990
  %2339 = vmatprep.subr.mxu0 %v1987
  %2340 = vmatpush1.msra.mxu0 %v1986
  %2341 = vmatprep.subr.mxu0 %v1983
  %2342 = vmatpush1.msra.mxu0 %v1982
  %2343 = vmatprep.subr.mxu0 %v1979
  %2344 = vmatpush1.msra.mxu0 %v1978
  %2345 = vmatprep.subr.mxu0 %v1975
  %2346 = vmatpush1.msra.mxu0 %v1974
  %2347 = vmatprep.subr.mxu0 %v1971
  %2348 = vmatpush1.msra.mxu0 %v1970
  %2349 = vmatprep.subr.mxu0 %v1967
  %2350 = vmatpush1.msra.mxu0 %v1966
  %2351 = vmatprep.subr.mxu0 %v1963
  %2352 = vmatpush1.msra.mxu0 %v1962
  %2353 = vmatprep.subr.mxu0 %v1959
  %2354 = vmatpush1.msra.mxu0 %v1958
  %2355 = vmatprep.subr.mxu0 %v2083
  %2356 = vmatpush2.msra.mxu0 %v2082
  %2357 = vmatprep.subr.mxu0 %v2079
  %2358 = vmatpush2.msra.mxu0 %v2078
  %2359 = vmatprep.subr.mxu0 %v2075
  %2360 = vmatpush2.msra.mxu0 %v2074
  %2361 = vmatprep.subr.mxu0 %v2071
  %2362 = vmatpush2.msra.mxu0 %v2070
  %2363 = vmatprep.subr.mxu0 %v2067
  %2364 = vmatpush2.msra.mxu0 %v2066
  %2365 = vmatprep.subr.mxu0 %v2063
  %2366 = vmatpush2.msra.mxu0 %v2062
  %2367 = vmatprep.subr.mxu0 %v2059
  %2368 = vmatpush2.msra.mxu0 %v2058
  %2369 = vmatprep.subr.mxu0 %v2055
  %2370 = vmatpush2.msra.mxu0 %v2054
  %2371 = vmatprep.subr.mxu0 %v2051
  %2372 = vmatpush2.msra.mxu0 %v2050
  %2373 = vmatprep.subr.mxu0 %v2047
  %2374 = vmatpush2.msra.mxu0 %v2046
  %2375 = vmatprep.subr.mxu0 %v2043
  %2376 = vmatpush2.msra.mxu0 %v2042
  %2377 = vmatprep.subr.mxu0 %v2039
  %2378 = vmatpush2.msra.mxu0 %v2038
  %2379 = vmatprep.subr.mxu0 %v2035
  %2380 = vmatpush2.msra.mxu0 %v2034
  %2381 = vmatprep.subr.mxu0 %v2031
  %2382 = vmatpush2.msra.mxu0 %v2030
  %2383 = vmatprep.subr.mxu0 %v2027
  %2384 = vmatpush2.msra.mxu0 %v2026
  %2385 = vmatprep.subr.mxu0 %v2023
  %2386 = vmatpush2.msra.mxu0 %v2022
  %2387 = vmatprep.mubr.f32.mxu0 %v1953
  %2388 = vmatmul.mubr.f32.gmra.mxu0 %v1952
  %v2389 = vpop.f32.mrf.mxu0
  %v2390 = vadd.f32 %v2169, %v2389
  %v2391 = vpop.f32.mrf.mxu0
  %v2392 = vadd.f32 %v2173, %v2391
  %2393 = vdwg.mxu0
  %2394 = vmatprep.subr.mxu0 %v2147
  %2395 = vmatpush1.msra.mxu0 %v2146
  %2396 = vmatprep.subr.mxu0 %v2143
  %2397 = vmatpush1.msra.mxu0 %v2142
  %2398 = vmatprep.subr.mxu0 %v2139
  %2399 = vmatpush1.msra.mxu0 %v2138
  %2400 = vmatprep.subr.mxu0 %v2135
  %2401 = vmatpush1.msra.mxu0 %v2134
  %2402 = vmatprep.subr.mxu0 %v2131
  %2403 = vmatpush1.msra.mxu0 %v2130
  %2404 = vmatprep.subr.mxu0 %v2127
  %2405 = vmatpush1.msra.mxu0 %v2126
  %2406 = vmatprep.subr.mxu0 %v2123
  %2407 = vmatpush1.msra.mxu0 %v2122
  %2408 = vmatprep.subr.mxu0 %v2119
  %2409 = vmatpush1.msra.mxu0 %v2118
  %2410 = vmatprep.subr.mxu0 %v2115
  %2411 = vmatpush1.msra.mxu0 %v2114
  %2412 = vmatprep.subr.mxu0 %v2111
  %2413 = vmatpush1.msra.mxu0 %v2110
  %2414 = vmatprep.subr.mxu0 %v2107
  %2415 = vmatpush1.msra.mxu0 %v2106
  %2416 = vmatprep.subr.mxu0 %v2103
  %2417 = vmatpush1.msra.mxu0 %v2102
  %2418 = vmatprep.subr.mxu0 %v2099
  %2419 = vmatpush1.msra.mxu0 %v2098
  %2420 = vmatprep.subr.mxu0 %v2095
  %2421 = vmatpush1.msra.mxu0 %v2094
  %2422 = vmatprep.subr.mxu0 %v2091
  %2423 = vmatpush1.msra.mxu0 %v2090
  %2424 = vmatprep.subr.mxu0 %v2087
  %2425 = vmatpush1.msra.mxu0 %v2086
  %2426 = vmatprep.subr.mxu0 0.0
  %2427 = vmatpush2.msra.mxu0 0.0
  %2428 = vmatprep.subr.mxu0 0.0
  %2429 = vmatpush2.msra.mxu0 0.0
  %2430 = vmatprep.subr.mxu0 0.0
  %2431 = vmatpush2.msra.mxu0 0.0
  %2432 = vmatprep.subr.mxu0 0.0
  %2433 = vmatpush2.msra.mxu0 0.0
  %2434 = vmatprep.subr.mxu0 0.0
  %2435 = vmatpush2.msra.mxu0 0.0
  %2436 = vmatprep.subr.mxu0 0.0
  %2437 = vmatpush2.msra.mxu0 0.0
  %2438 = vmatprep.subr.mxu0 0.0
  %2439 = vmatpush2.msra.mxu0 0.0
  %2440 = vmatprep.subr.mxu0 0.0
  %2441 = vmatpush2.msra.mxu0 0.0
  %2442 = vmatprep.subr.mxu0 0.0
  %2443 = vmatpush2.msra.mxu0 0.0
  %2444 = vmatprep.subr.mxu0 0.0
  %2445 = vmatpush2.msra.mxu0 0.0
  %2446 = vmatprep.subr.mxu0 0.0
  %2447 = vmatpush2.msra.mxu0 0.0
  %2448 = vmatprep.subr.mxu0 0.0
  %2449 = vmatpush2.msra.mxu0 0.0
  %2450 = vmatprep.subr.mxu0 0.0
  %2451 = vmatpush2.msra.mxu0 0.0
  %2452 = vmatprep.subr.mxu0 0.0
  %2453 = vmatpush2.msra.mxu0 0.0
  %2454 = vmatprep.subr.mxu0 %v2155
  %2455 = vmatpush2.msra.mxu0 %v2154
  %2456 = vmatprep.subr.mxu0 %v2151
  %2457 = vmatpush2.msra.mxu0 %v2150
  %2458 = vmatprep.mubr.f32.mxu0 %v2179
  %2459 = vmatmul.mubr.f32.gmra.mxu0 %v1954
  %v2460 = vpop.f32.mrf.mxu0
  %v2461 = vadd.f32 %v2390, %v2460
  %v2462 = vpop.f32.mrf.mxu0
  %v2463 = vadd.f32 %v2392, %v2462
  %2464 = vdwg.mxu0
  %v2465 = vmax.f32 %v2319, 0.0
  %v2466 = vmax.f32 %v2321, 0.0
  %v2467 = vmax.f32 %v2461, 0.0
  %v2468 = vmax.f32 %v2463, 0.0
  %v2469 = vld [vmem:[%s9] sm:$0xff]
  %v2470 = vld [vmem:[%s9 + $0x8] sm:$0xff]
  %v2471 = vld [vmem:[%s9 + $0x10] sm:$0xff]
  %v2472 = vld [vmem:[%s9 + $0x18] sm:$0xff]
  %v2473 = vld [vmem:[%s9 + $0x20] sm:$0xff]
  %v2474 = vld [vmem:[%s9 + $0x28] sm:$0xff]
  %v2475 = vld [vmem:[%s9 + $0x30] sm:$0xff]
  %v2476 = vld [vmem:[%s9 + $0x38] sm:$0xff]
  %v2477 = vld [vmem:[%s9 + $0x40] sm:$0xff]
  %v2478 = vld [vmem:[%s9 + $0x48] sm:$0xff]
  %v2479 = vld [vmem:[%s9 + $0x50] sm:$0xff]
  %v2480 = vld [vmem:[%s9 + $0x58] sm:$0xff]
  %v2481 = vld [vmem:[%s9 + $0x60] sm:$0xff]
  %v2482 = vld [vmem:[%s9 + $0x68] sm:$0xff]
  %v2483 = vld [vmem:[%s9 + $0x70] sm:$0xff]
  %v2484 = vld [vmem:[%s9 + $0x78] sm:$0xff]
  %v2485 = vld [vmem:[%s9 + $0x80] sm:$0xff]
  %v2486 = vld [vmem:[%s9 + $0x88] sm:$0xff]
  %v2487 = vld [vmem:[%s9 + $0x90] sm:$0xff]
  %v2488 = vld [vmem:[%s9 + $0x98] sm:$0xff]
  %v2489 = vld [vmem:[%s9 + $0xa0] sm:$0xff]
  %v2490 = vld [vmem:[%s9 + $0xa8] sm:$0xff]
  %v2491 = vld [vmem:[%s9 + $0xb0] sm:$0xff]
  %v2492 = vld [vmem:[%s9 + $0xb8] sm:$0xff]
  %v2493 = vld [vmem:[%s9 + $0xc0] sm:$0xff]
  %v2494 = vld [vmem:[%s9 + $0xc8] sm:$0xff]
  %v2495 = vld [vmem:[%s9 + $0xd0] sm:$0xff]
  %v2496 = vld [vmem:[%s9 + $0xd8] sm:$0xff]
  %v2497 = vld [vmem:[%s9 + $0xe0] sm:$0xff]
  %v2498 = vld [vmem:[%s9 + $0xe8] sm:$0xff]
  %v2499 = vld [vmem:[%s9 + $0xf0] sm:$0xff]
  %v2500 = vld [vmem:[%s9 + $0xf8] sm:$0xff]
  %v2501 = vld [vmem:[%s9 + $0x100] sm:$0xff]
  %v2502 = vld [vmem:[%s9 + $0x108] sm:$0xff]
  %v2503 = vld [vmem:[%s9 + $0x110] sm:$0xff]
  %v2504 = vld [vmem:[%s9 + $0x118] sm:$0xff]
  %v2505 = vld [vmem:[%s9 + $0x120] sm:$0xff]
  %v2506 = vld [vmem:[%s9 + $0x128] sm:$0xff]
  %v2507 = vld [vmem:[%s9 + $0x130] sm:$0xff]
  %v2508 = vld [vmem:[%s9 + $0x138] sm:$0xff]
  %v2509 = vld [vmem:[%s9 + $0x140] sm:$0xff]
  %v2510 = vld [vmem:[%s9 + $0x148] sm:$0xff]
  %v2511 = vld [vmem:[%s9 + $0x150] sm:$0xff]
  %v2512 = vld [vmem:[%s9 + $0x158] sm:$0xff]
  %v2513 = vld [vmem:[%s9 + $0x160] sm:$0xff]
  %v2514 = vld [vmem:[%s9 + $0x168] sm:$0xff]
  %v2515 = vld [vmem:[%s9 + $0x170] sm:$0xff]
  %v2516 = vld [vmem:[%s9 + $0x178] sm:$0xff]
  %v2517 = vld [vmem:[%s9 + $0x180] sm:$0xff]
  %v2518 = vld [vmem:[%s9 + $0x188] sm:$0xff]
  %v2519 = vld [vmem:[%s9 + $0x190] sm:$0xff]
  %v2520 = vld [vmem:[%s9 + $0x198] sm:$0xff]
  %v2521 = vld [vmem:[%s9 + $0x1a0] sm:$0xff]
  %v2522 = vld [vmem:[%s9 + $0x1a8] sm:$0xff]
  %v2523 = vld [vmem:[%s9 + $0x1b0] sm:$0xff]
  %v2524 = vld [vmem:[%s9 + $0x1b8] sm:$0xff]
  %v2525 = vld [vmem:[%s9 + $0x1c0] sm:$0xff]
  %v2526 = vld [vmem:[%s9 + $0x1c8] sm:$0xff]
  %v2527 = vld [vmem:[%s9 + $0x1d0] sm:$0xff]
  %v2528 = vld [vmem:[%s9 + $0x1d8] sm:$0xff]
  %v2529 = vld [vmem:[%s9 + $0x1e0] sm:$0xff]
  %v2530 = vld [vmem:[%s9 + $0x1e8] sm:$0xff]
  %v2531 = vld [vmem:[%s9 + $0x1f0] sm:$0xff]
  %v2532 = vld [vmem:[%s9 + $0x1f8] sm:$0xff]
  %v2533 = vld [vmem:[%s9 + $0x200] sm:$0xff]
  %v2534 = vld [vmem:[%s9 + $0x208] sm:$0xff]
  %v2535 = vld [vmem:[%s9 + $0x210] sm:$0xff]
  %v2536 = vld [vmem:[%s9 + $0x218] sm:$0xff]
  %v2537 = vld [vmem:[%s9 + $0x220] sm:$0xff]
  %v2538 = vld [vmem:[%s9 + $0x228] sm:$0xff]
  %v2539 = vld [vmem:[%s9 + $0x230] sm:$0xff]
  %v2540 = vld [vmem:[%s9 + $0x238] sm:$0xff]
  %v2541 = vld [vmem:[%s9 + $0x240] sm:$0xff]
  %v2542 = vld [vmem:[%s9 + $0x248] sm:$0xff]
  %v2543 = vld [vmem:[%s9 + $0x250] sm:$0xff]
  %v2544 = vld [vmem:[%s9 + $0x258] sm:$0xff]
  %v2545 = vld [vmem:[%s9 + $0x260] sm:$0xff]
  %v2546 = vld [vmem:[%s9 + $0x268] sm:$0xff]
  %v2547 = vld [vmem:[%s9 + $0x270] sm:$0xff]
  %v2548 = vld [vmem:[%s9 + $0x278] sm:$0xff]
  %v2549 = vld [vmem:[%s9 + $0x280] sm:$0xff]
  %v2550 = vld [vmem:[%s9 + $0x288] sm:$0xff]
  %v2551 = vld [vmem:[%s9 + $0x290] sm:$0xff]
  %v2552 = vld [vmem:[%s9 + $0x298] sm:$0xff]
  %v2553 = vld [vmem:[%s9 + $0x2a0] sm:$0xff]
  %v2554 = vld [vmem:[%s9 + $0x2a8] sm:$0xff]
  %v2555 = vld [vmem:[%s9 + $0x2b0] sm:$0xff]
  %v2556 = vld [vmem:[%s9 + $0x2b8] sm:$0xff]
  %v2557 = vld [vmem:[%s9 + $0x2c0] sm:$0xff]
  %v2558 = vld [vmem:[%s9 + $0x2c8] sm:$0xff]
  %v2559 = vld [vmem:[%s9 + $0x2d0] sm:$0xff]
  %v2560 = vld [vmem:[%s9 + $0x2d8] sm:$0xff]
  %v2561 = vld [vmem:[%s9 + $0x2e0] sm:$0xff]
  %v2562 = vld [vmem:[%s9 + $0x2e8] sm:$0xff]
  %v2563 = vld [vmem:[%s9 + $0x2f0] sm:$0xff]
  %v2564 = vld [vmem:[%s9 + $0x2f8] sm:$0xff]
  %v2565 = vld [vmem:[%s9 + $0x300] sm:$0xff]
  %v2566 = vld [vmem:[%s9 + $0x308] sm:$0xff]
  %v2567 = vld [vmem:[%s9 + $0x310] sm:$0xff]
  %v2568 = vld [vmem:[%s9 + $0x318] sm:$0xff]
  %v2569 = vld [vmem:[%s9 + $0x320] sm:$0xff]
  %v2570 = vld [vmem:[%s9 + $0x328] sm:$0xff]
  %v2571 = vld [vmem:[%s9 + $0x330] sm:$0xff]
  %v2572 = vld [vmem:[%s9 + $0x338] sm:$0xff]
  %v2573 = vld [vmem:[%s10] sm:$0x3]
  %v2575 = vlaneseq
  %v2576 = vshrl.u32 %v2575, 7
  %v2577 = vsub.s32 0, %v2576
  %v2578 = vrot.slane %v2573, %v2577
  %v2579 = vlaneseq
  %v2580 = vshrl.u32 %v2579, 7
  %v2581 = vsub.s32 1, %v2580
  %v2582 = vrot.slane %v2573, %v2581
  %vm2585 = vcmask 261120
  %v2587 = vsel %vm2585, %v2468, 0
  %2589 = vmatprep.subr.mxu0 %v2500
  %2590 = vmatpush1.msra.mxu0 %v2499
  %2591 = vmatprep.subr.mxu0 %v2498
  %2592 = vmatpush1.msra.mxu0 %v2497
  %2593 = vmatprep.subr.mxu0 %v2496
  %2594 = vmatpush1.msra.mxu0 %v2495
  %2595 = vmatprep.subr.mxu0 %v2494
  %2596 = vmatpush1.msra.mxu0 %v2493
  %2597 = vmatprep.subr.mxu0 %v2492
  %2598 = vmatpush1.msra.mxu0 %v2491
  %2599 = vmatprep.subr.mxu0 %v2490
  %2600 = vmatpush1.msra.mxu0 %v2489
  %2601 = vmatprep.subr.mxu0 %v2488
  %2602 = vmatpush1.msra.mxu0 %v2487
  %2603 = vmatprep.subr.mxu0 %v2486
  %2604 = vmatpush1.msra.mxu0 %v2485
  %2605 = vmatprep.subr.mxu0 %v2484
  %2606 = vmatpush1.msra.mxu0 %v2483
  %2607 = vmatprep.subr.mxu0 %v2482
  %2608 = vmatpush1.msra.mxu0 %v2481
  %2609 = vmatprep.subr.mxu0 %v2480
  %2610 = vmatpush1.msra.mxu0 %v2479
  %2611 = vmatprep.subr.mxu0 %v2478
  %2612 = vmatpush1.msra.mxu0 %v2477
  %2613 = vmatprep.subr.mxu0 %v2476
  %2614 = vmatpush1.msra.mxu0 %v2475
  %2615 = vmatprep.subr.mxu0 %v2474
  %2616 = vmatpush1.msra.mxu0 %v2473
  %2617 = vmatprep.subr.mxu0 %v2472
  %2618 = vmatpush1.msra.mxu0 %v2471
  %2619 = vmatprep.subr.mxu0 %v2470
  %2620 = vmatpush1.msra.mxu0 %v2469
  %2621 = vmatprep.subr.mxu0 %v2532
  %2622 = vmatpush2.msra.mxu0 %v2531
  %2623 = vmatprep.subr.mxu0 %v2530
  %2624 = vmatpush2.msra.mxu0 %v2529
  %2625 = vmatprep.subr.mxu0 %v2528
  %2626 = vmatpush2.msra.mxu0 %v2527
  %2627 = vmatprep.subr.mxu0 %v2526
  %2628 = vmatpush2.msra.mxu0 %v2525
  %2629 = vmatprep.subr.mxu0 %v2524
  %2630 = vmatpush2.msra.mxu0 %v2523
  %2631 = vmatprep.subr.mxu0 %v2522
  %2632 = vmatpush2.msra.mxu0 %v2521
  %2633 = vmatprep.subr.mxu0 %v2520
  %2634 = vmatpush2.msra.mxu0 %v2519
  %2635 = vmatprep.subr.mxu0 %v2518
  %2636 = vmatpush2.msra.mxu0 %v2517
  %2637 = vmatprep.subr.mxu0 %v2516
  %2638 = vmatpush2.msra.mxu0 %v2515
  %2639 = vmatprep.subr.mxu0 %v2514
  %2640 = vmatpush2.msra.mxu0 %v2513
  %2641 = vmatprep.subr.mxu0 %v2512
  %2642 = vmatpush2.msra.mxu0 %v2511
  %2643 = vmatprep.subr.mxu0 %v2510
  %2644 = vmatpush2.msra.mxu0 %v2509
  %2645 = vmatprep.subr.mxu0 %v2508
  %2646 = vmatpush2.msra.mxu0 %v2507
  %2647 = vmatprep.subr.mxu0 %v2506
  %2648 = vmatpush2.msra.mxu0 %v2505
  %2649 = vmatprep.subr.mxu0 %v2504
  %2650 = vmatpush2.msra.mxu0 %v2503
  %2651 = vmatprep.subr.mxu0 %v2502
  %2652 = vmatpush2.msra.mxu0 %v2501
  %2653 = vmatprep.mubr.f32.mxu0 %v2466
  %2654 = vmatmul.mubr.f32.gmra.mxu0 %v2465
  %v2655 = vpop.f32.mrf.mxu0
  %v2656 = vadd.f32 %v2578, %v2655
  %v2657 = vpop.f32.mrf.mxu0
  %v2658 = vadd.f32 %v2582, %v2657
  %2659 = vdwg.mxu0
  %2660 = vmatprep.subr.mxu0 %v2564
  %2661 = vmatpush1.msra.mxu0 %v2563
  %2662 = vmatprep.subr.mxu0 %v2562
  %2663 = vmatpush1.msra.mxu0 %v2561
  %2664 = vmatprep.subr.mxu0 %v2560
  %2665 = vmatpush1.msra.mxu0 %v2559
  %2666 = vmatprep.subr.mxu0 %v2558
  %2667 = vmatpush1.msra.mxu0 %v2557
  %2668 = vmatprep.subr.mxu0 %v2556
  %2669 = vmatpush1.msra.mxu0 %v2555
  %2670 = vmatprep.subr.mxu0 %v2554
  %2671 = vmatpush1.msra.mxu0 %v2553
  %2672 = vmatprep.subr.mxu0 %v2552
  %2673 = vmatpush1.msra.mxu0 %v2551
  %2674 = vmatprep.subr.mxu0 %v2550
  %2675 = vmatpush1.msra.mxu0 %v2549
  %2676 = vmatprep.subr.mxu0 %v2548
  %2677 = vmatpush1.msra.mxu0 %v2547
  %2678 = vmatprep.subr.mxu0 %v2546
  %2679 = vmatpush1.msra.mxu0 %v2545
  %2680 = vmatprep.subr.mxu0 %v2544
  %2681 = vmatpush1.msra.mxu0 %v2543
  %2682 = vmatprep.subr.mxu0 %v2542
  %2683 = vmatpush1.msra.mxu0 %v2541
  %2684 = vmatprep.subr.mxu0 %v2540
  %2685 = vmatpush1.msra.mxu0 %v2539
  %2686 = vmatprep.subr.mxu0 %v2538
  %2687 = vmatpush1.msra.mxu0 %v2537
  %2688 = vmatprep.subr.mxu0 %v2536
  %2689 = vmatpush1.msra.mxu0 %v2535
  %2690 = vmatprep.subr.mxu0 %v2534
  %2691 = vmatpush1.msra.mxu0 %v2533
  %2692 = vmatprep.subr.mxu0 0.0
  %2693 = vmatpush2.msra.mxu0 0.0
  %2694 = vmatprep.subr.mxu0 0.0
  %2695 = vmatpush2.msra.mxu0 0.0
  %2696 = vmatprep.subr.mxu0 0.0
  %2697 = vmatpush2.msra.mxu0 0.0
  %2698 = vmatprep.subr.mxu0 0.0
  %2699 = vmatpush2.msra.mxu0 0.0
  %2700 = vmatprep.subr.mxu0 0.0
  %2701 = vmatpush2.msra.mxu0 0.0
  %2702 = vmatprep.subr.mxu0 0.0
  %2703 = vmatpush2.msra.mxu0 0.0
  %2704 = vmatprep.subr.mxu0 0.0
  %2705 = vmatpush2.msra.mxu0 0.0
  %2706 = vmatprep.subr.mxu0 0.0
  %2707 = vmatpush2.msra.mxu0 0.0
  %2708 = vmatprep.subr.mxu0 0.0
  %2709 = vmatpush2.msra.mxu0 0.0
  %2710 = vmatprep.subr.mxu0 0.0
  %2711 = vmatpush2.msra.mxu0 0.0
  %2712 = vmatprep.subr.mxu0 0.0
  %2713 = vmatpush2.msra.mxu0 0.0
  %2714 = vmatprep.subr.mxu0 0.0
  %2715 = vmatpush2.msra.mxu0 0.0
  %2716 = vmatprep.subr.mxu0 %v2572
  %2717 = vmatpush2.msra.mxu0 %v2571
  %2718 = vmatprep.subr.mxu0 %v2570
  %2719 = vmatpush2.msra.mxu0 %v2569
  %2720 = vmatprep.subr.mxu0 %v2568
  %2721 = vmatpush2.msra.mxu0 %v2567
  %2722 = vmatprep.subr.mxu0 %v2566
  %2723 = vmatpush2.msra.mxu0 %v2565
  %2724 = vmatprep.mubr.f32.mxu0 %v2587
  %2725 = vmatmul.mubr.f32.gmra.mxu0 %v2467
  %v2726 = vpop.f32.mrf.mxu0
  %v2727 = vadd.f32 %v2656, %v2726
  %v2728 = vpop.f32.mrf.mxu0
  %v2729 = vadd.f32 %v2658, %v2728
  %2730 = vdwg.mxu0
  %v2731 = vmax.f32 %v2727, 0.0
  %v2732 = vmax.f32 %v2729, 0.0
  %v2733 = vld [vmem:[%s11] sm:$0xff]
  %v2734 = vld [vmem:[%s11 + $0x8] sm:$0xff]
  %v2735 = vld [vmem:[%s11 + $0x10] sm:$0xff]
  %v2736 = vld [vmem:[%s11 + $0x18] sm:$0xff]
  %v2737 = vld [vmem:[%s11 + $0x20] sm:$0xff]
  %v2738 = vld [vmem:[%s11 + $0x28] sm:$0xff]
  %v2739 = vld [vmem:[%s11 + $0x30] sm:$0xff]
  %v2740 = vld [vmem:[%s11 + $0x38] sm:$0xff]
  %v2741 = vld [vmem:[%s11 + $0x40] sm:$0xff]
  %v2742 = vld [vmem:[%s11 + $0x48] sm:$0xff]
  %v2743 = vld [vmem:[%s11 + $0x50] sm:$0xff]
  %v2744 = vld [vmem:[%s11 + $0x58] sm:$0xff]
  %v2745 = vld [vmem:[%s11 + $0x60] sm:$0xff]
  %v2746 = vld [vmem:[%s11 + $0x68] sm:$0xff]
  %v2747 = vld [vmem:[%s11 + $0x70] sm:$0xff]
  %v2748 = vld [vmem:[%s11 + $0x78] sm:$0xff]
  %v2749 = vld [vmem:[%s11 + $0x80] sm:$0xff]
  %v2750 = vld [vmem:[%s11 + $0x88] sm:$0xff]
  %v2751 = vld [vmem:[%s11 + $0x90] sm:$0xff]
  %v2752 = vld [vmem:[%s11 + $0x98] sm:$0xff]
  %v2753 = vld [vmem:[%s11 + $0xa0] sm:$0xff]
  %v2754 = vld [vmem:[%s11 + $0xa8] sm:$0xff]
  %v2755 = vld [vmem:[%s11 + $0xb0] sm:$0xff]
  %v2756 = vld [vmem:[%s11 + $0xb8] sm:$0xff]
  %v2757 = vld [vmem:[%s11 + $0xc0] sm:$0xff]
  %v2758 = vld [vmem:[%s11 + $0xc8] sm:$0xff]
  %v2759 = vld [vmem:[%s11 + $0xd0] sm:$0xff]
  %v2760 = vld [vmem:[%s11 + $0xd8] sm:$0xff]
  %v2761 = vld [vmem:[%s11 + $0xe0] sm:$0xff]
  %v2762 = vld [vmem:[%s11 + $0xe8] sm:$0xff]
  %v2763 = vld [vmem:[%s11 + $0xf0] sm:$0xff]
  %v2764 = vld [vmem:[%s11 + $0xf8] sm:$0xff]
  %v2765 = vld [vmem:[%s11 + $0x100] sm:$0xff]
  %v2766 = vld [vmem:[%s11 + $0x108] sm:$0xff]
  %v2767 = vld [vmem:[%s11 + $0x110] sm:$0xff]
  %v2768 = vld [vmem:[%s11 + $0x118] sm:$0xff]
  %v2769 = vld [vmem:[%s11 + $0x120] sm:$0xff]
  %v2770 = vld [vmem:[%s11 + $0x128] sm:$0xff]
  %v2771 = vld [vmem:[%s11 + $0x130] sm:$0xff]
  %v2772 = vld [vmem:[%s11 + $0x138] sm:$0xff]
  %v2773 = vld [vmem:[%s11 + $0x140] sm:$0xff]
  %v2774 = vld [vmem:[%s11 + $0x148] sm:$0xff]
  %v2775 = vld [vmem:[%s11 + $0x150] sm:$0xff]
  %v2776 = vld [vmem:[%s11 + $0x158] sm:$0xff]
  %v2777 = vld [vmem:[%s11 + $0x160] sm:$0xff]
  %v2778 = vld [vmem:[%s11 + $0x168] sm:$0xff]
  %v2779 = vld [vmem:[%s11 + $0x170] sm:$0xff]
  %v2780 = vld [vmem:[%s11 + $0x178] sm:$0xff]
  %v2781 = vld [vmem:[%s11 + $0x180] sm:$0xff]
  %v2782 = vld [vmem:[%s11 + $0x188] sm:$0xff]
  %v2783 = vld [vmem:[%s11 + $0x190] sm:$0xff]
  %v2784 = vld [vmem:[%s11 + $0x198] sm:$0xff]
  %v2785 = vld [vmem:[%s11 + $0x1a0] sm:$0xff]
  %v2786 = vld [vmem:[%s11 + $0x1a8] sm:$0xff]
  %v2787 = vld [vmem:[%s11 + $0x1b0] sm:$0xff]
  %v2788 = vld [vmem:[%s11 + $0x1b8] sm:$0xff]
  %v2789 = vld [vmem:[%s11 + $0x1c0] sm:$0xff]
  %v2790 = vld [vmem:[%s11 + $0x1c8] sm:$0xff]
  %v2791 = vld [vmem:[%s11 + $0x1d0] sm:$0xff]
  %v2792 = vld [vmem:[%s11 + $0x1d8] sm:$0xff]
  %v2793 = vld [vmem:[%s11 + $0x1e0] sm:$0xff]
  %v2794 = vld [vmem:[%s11 + $0x1e8] sm:$0xff]
  %v2795 = vld [vmem:[%s11 + $0x1f0] sm:$0xff]
  %v2796 = vld [vmem:[%s11 + $0x1f8] sm:$0xff]
  %v2797 = vld [vmem:[%s12] sm:$0x3]
  %v2799 = vlaneseq
  %v2800 = vshrl.u32 %v2799, 7
  %v2801 = vsub.s32 0, %v2800
  %v2802 = vrot.slane %v2797, %v2801
  %v2803 = vlaneseq
  %v2804 = vshrl.u32 %v2803, 7
  %v2805 = vsub.s32 1, %v2804
  %v2806 = vrot.slane %v2797, %v2805
  %2809 = vmatprep.subr.mxu0 %v2764
  %2810 = vmatpush1.msra.mxu0 %v2763
  %2811 = vmatprep.subr.mxu0 %v2762
  %2812 = vmatpush1.msra.mxu0 %v2761
  %2813 = vmatprep.subr.mxu0 %v2760
  %2814 = vmatpush1.msra.mxu0 %v2759
  %2815 = vmatprep.subr.mxu0 %v2758
  %2816 = vmatpush1.msra.mxu0 %v2757
  %2817 = vmatprep.subr.mxu0 %v2756
  %2818 = vmatpush1.msra.mxu0 %v2755
  %2819 = vmatprep.subr.mxu0 %v2754
  %2820 = vmatpush1.msra.mxu0 %v2753
  %2821 = vmatprep.subr.mxu0 %v2752
  %2822 = vmatpush1.msra.mxu0 %v2751
  %2823 = vmatprep.subr.mxu0 %v2750
  %2824 = vmatpush1.msra.mxu0 %v2749
  %2825 = vmatprep.subr.mxu0 %v2748
  %2826 = vmatpush1.msra.mxu0 %v2747
  %2827 = vmatprep.subr.mxu0 %v2746
  %2828 = vmatpush1.msra.mxu0 %v2745
  %2829 = vmatprep.subr.mxu0 %v2744
  %2830 = vmatpush1.msra.mxu0 %v2743
  %2831 = vmatprep.subr.mxu0 %v2742
  %2832 = vmatpush1.msra.mxu0 %v2741
  %2833 = vmatprep.subr.mxu0 %v2740
  %2834 = vmatpush1.msra.mxu0 %v2739
  %2835 = vmatprep.subr.mxu0 %v2738
  %2836 = vmatpush1.msra.mxu0 %v2737
  %2837 = vmatprep.subr.mxu0 %v2736
  %2838 = vmatpush1.msra.mxu0 %v2735
  %2839 = vmatprep.subr.mxu0 %v2734
  %2840 = vmatpush1.msra.mxu0 %v2733
  %2841 = vmatprep.subr.mxu0 %v2796
  %2842 = vmatpush2.msra.mxu0 %v2795
  %2843 = vmatprep.subr.mxu0 %v2794
  %2844 = vmatpush2.msra.mxu0 %v2793
  %2845 = vmatprep.subr.mxu0 %v2792
  %2846 = vmatpush2.msra.mxu0 %v2791
  %2847 = vmatprep.subr.mxu0 %v2790
  %2848 = vmatpush2.msra.mxu0 %v2789
  %2849 = vmatprep.subr.mxu0 %v2788
  %2850 = vmatpush2.msra.mxu0 %v2787
  %2851 = vmatprep.subr.mxu0 %v2786
  %2852 = vmatpush2.msra.mxu0 %v2785
  %2853 = vmatprep.subr.mxu0 %v2784
  %2854 = vmatpush2.msra.mxu0 %v2783
  %2855 = vmatprep.subr.mxu0 %v2782
  %2856 = vmatpush2.msra.mxu0 %v2781
  %2857 = vmatprep.subr.mxu0 %v2780
  %2858 = vmatpush2.msra.mxu0 %v2779
  %2859 = vmatprep.subr.mxu0 %v2778
  %2860 = vmatpush2.msra.mxu0 %v2777
  %2861 = vmatprep.subr.mxu0 %v2776
  %2862 = vmatpush2.msra.mxu0 %v2775
  %2863 = vmatprep.subr.mxu0 %v2774
  %2864 = vmatpush2.msra.mxu0 %v2773
  %2865 = vmatprep.subr.mxu0 %v2772
  %2866 = vmatpush2.msra.mxu0 %v2771
  %2867 = vmatprep.subr.mxu0 %v2770
  %2868 = vmatpush2.msra.mxu0 %v2769
  %2869 = vmatprep.subr.mxu0 %v2768
  %2870 = vmatpush2.msra.mxu0 %v2767
  %2871 = vmatprep.subr.mxu0 %v2766
  %2872 = vmatpush2.msra.mxu0 %v2765
  %2873 = vmatprep.mubr.f32.mxu0 %v2732
  %2874 = vmatmul.mubr.f32.gmra.mxu0 %v2731
  %v2875 = vpop.f32.mrf.mxu0
  %v2876 = vadd.f32 %v2802, %v2875
  %v2877 = vpop.f32.mrf.mxu0
  %v2878 = vadd.f32 %v2806, %v2877
  %2879 = vdwg.mxu0
  %v2880 = vmax.f32 %v2876, 0.0
  %v2881 = vmax.f32 %v2878, 0.0
  %v2882 = vld [vmem:[%s13] sm:$0x3]
  %v2884 = vlaneseq
  %v2885 = vshrl.u32 %v2884, 7
  %v2886 = vsub.s32 0, %v2885
  %v2887 = vrot.slane %v2882, %v2886
  %v2888 = vlaneseq
  %v2889 = vshrl.u32 %v2888, 7
  %v2890 = vsub.s32 1, %v2889
  %v2891 = vrot.slane %v2882, %v2890
  %v2894 = vmul.f32 %v2880, %v2887
  %v2895 = vmul.f32 %v2881, %v2891
  %vm2896 = vcmask 588800
  %v2897 = vsel %vm2896, %v2895, 0.0
  %v2898 = vadd.f32 %v2894, %v2897
  %2899 = vadd.xlane.f32.xlu0 %v2898
  %v2900 = vpop.xlane.xlu0 %2899
  %v2901 = vld [vmem:[#allocation2] sm:$0x1]
  %v2903 = vlaneseq
  %v2904 = vshrl.u32 %v2903, 7
  %v2905 = vsub.s32 0, %v2904
  %v2906 = vrot.slane %v2901, %v2905
  %v2908 = vadd.f32 %v2900, %v2906
  %vm2909 = vcmask 7168
  %2910 = vst.msk [vmem:[%s15] sm:$0xff] %vm2909, %v2908
  // Predicated region
  $region62: #{aoa_cnn_forward.1} parent=0 // pred_check
    _
  $region63: #{aoa_cnn_forward.1} parent=0 // pred_check_branch
    %2912 = sbr.rel (0) target = $region65
  $region64: #{aoa_cnn_forward.1} parent=0 // pred_region
    _
  $region65: #{aoa_cnn_forward.1} parent=0 // pred_fallthru
    _
  // Predicated region
  $region66: #{aoa_cnn_forward.1} parent=0 // pred_check
    _
  $region67: #{aoa_cnn_forward.1} parent=0 // pred_check_branch
    %2914 = sbr.rel (0) target = $region69
  $region68: #{aoa_cnn_forward.1} parent=0 // pred_region
    _
  $region69: #{aoa_cnn_forward.1} parent=0 // pred_fallthru
    _

</llo_original>
